<compile_context>
chip_gen: v7x
topology: tpu7x:2x2x1
jax: 0.10.0
libtpu: 0.0.40
codegen_flags: <defaults>
</compile_context>

<pallas_src>
import jax
import jax.numpy as jnp
from jax.experimental import pallas as pl
from jax.experimental.pallas import tpu as pltpu


# ----------------------------------------------------------------------------
# Fused whole-network kernel
# ----------------------------------------------------------------------------
def _make_kernel(*, N, Cin, C, H, W, num_blocks, WP, S_IMG, M, MP, MARGIN, BUFLEN):
    """Layout: activations live in (C, BUFLEN) f32 VMEM scratch.  Columns
    [MARGIN, MARGIN+MP) hold the zero-padded images flattened as
    n*(HP*WP) + hp*WP + wp; everything else is zero (halo).  A 3x3 tap (ky,kx)
    is the static lane slice starting at MARGIN + ky*WP + kx."""

    def kernel(x_ref, w_ref, b_ref, mask_ref, o_ref,
               xb_ref, y_ref, h_ref, tap_ref):
        # ---- init: x staging buffer fully zero (its gaps ARE the halo);
        #      y/h only need the left margin and right tail zeroed. ----
        xb_ref[...] = jnp.zeros_like(xb_ref)
        edge = jnp.zeros((C, MARGIN), jnp.float32)
        tail = jnp.zeros((C, BUFLEN - MARGIN - MP), jnp.float32)
        for act in (y_ref, h_ref):
            act[:, :MARGIN] = edge
            act[:, MARGIN + MP:] = tail

        # ---- in-kernel input layout: (N, Cin, H*W) -> flat padded halo buffer ----
        for n in range(N):
            for h in range(H):
                dst = MARGIN + n * S_IMG + (h + 1) * WP + 1
                xb_ref[0:Cin, dst:dst + W] = x_ref[n, :, h * W:(h + 1) * W]

        # ---- one conv + folded-BN bias + (residual) + ReLU layer ----
        def layer(src_ref, li, dst_ref, res_ref=None):
            # bf16 cast once per layer; shifted slices then move bf16 data.
            sv = src_ref[...].astype(jnp.bfloat16)              # (C, BUFLEN)
            for t in range(9):                                  # tap-stack build
                s = (t // 3 - 1) * WP + (t % 3 - 1)
                tap_ref[t * C:(t + 1) * C, :] = sv[:, MARGIN + s:MARGIN + s + MP]
            # single MXU matmul per layer: (C, 9C) x (9C, MP) -> (C, MP) f32
            acc = jnp.dot(w_ref[li], tap_ref[...],
                          preferred_element_type=jnp.float32)
            out = acc + b_ref[li]                               # BN scale folded in w
            if res_ref is not None:
                out = out + res_ref[:, MARGIN:MARGIN + MP]      # residual in f32
            # ReLU, then zero halo/garbage/tail -> zero-halo invariant for next layer
            out = jnp.maximum(out, 0.0) * mask_ref[...]
            dst_ref[:, MARGIN:MARGIN + MP] = out                # lane-dense store

        layer(xb_ref, 0, y_ref)                                 # stem
        for b in range(num_blocks):                             # residual blocks
            layer(y_ref, 1 + 2 * b, h_ref)
            layer(h_ref, 2 + 2 * b, y_ref, res_ref=y_ref)

        # ---- in-kernel crop/gather to consumer layout (N, C, H*W) ----
        for n in range(N):
            for h in range(H):
                src = MARGIN + n * S_IMG + (h + 1) * WP + 1
                o_ref[n, :, h * W:(h + 1) * W] = y_ref[:, src:src + W]

    return kernel


# ----------------------------------------------------------------------------
# Parameter construction (deterministic, synthetic) + BN folding + packing
# ----------------------------------------------------------------------------
def _fold_bn(gamma, beta, mean, var, eps=1e-5):
    scale = gamma / jnp.sqrt(var + eps)
    return scale, beta - mean * scale


def make_params(key, in_channels, num_channels, num_blocks):
    def conv_w(k, cin, cout):
        return 0.1 * jax.random.normal(k, (3, 3, cin, cout), jnp.float32)   # HWIO

    def bn(k, c):
        k1, k2, k3, k4 = jax.random.split(k, 4)
        gamma = 1.0 + 0.1 * jax.random.normal(k1, (c,), jnp.float32)
        beta = 0.1 * jax.random.normal(k2, (c,), jnp.float32)
        mean = 0.1 * jax.random.normal(k3, (c,), jnp.float32)
        var = 0.5 + jnp.abs(jax.random.normal(k4, (c,), jnp.float32))
        return _fold_bn(gamma, beta, mean, var)

    keys = jax.random.split(key, 2 + 4 * num_blocks)
    params = {
        "stem_w": conv_w(keys[0], in_channels, num_channels),
        "stem_bn": bn(keys[1], num_channels),
        "blocks": [],
    }
    for b in range(num_blocks):
        k0, k1, k2, k3 = keys[2 + 4 * b: 2 + 4 * (b + 1)]
        params["blocks"].append({
            "w1": conv_w(k0, num_channels, num_channels), "bn1": bn(k1, num_channels),
            "w2": conv_w(k2, num_channels, num_channels), "bn2": bn(k3, num_channels),
        })
    return params


def pack_params(params):
    """One-time host prep: fold BN scale into the conv weights (f32, before bf16
    rounding) and pack tap-major: (L, C, 9*C) bf16 weights + (L, C, 1) f32 bias."""
    C = params["stem_w"].shape[-1]

    def pack(w_hwio, scale):
        kh, kw, cin, cout = w_hwio.shape
        w = w_hwio * scale                                   # fold per-Cout BN scale
        if cin < C:
            w = jnp.pad(w, ((0, 0), (0, 0), (0, C - cin), (0, 0)))
        w = jnp.transpose(w, (3, 0, 1, 2)).reshape(cout, kh * kw * C)
        return w.astype(jnp.bfloat16)                        # row = Cout, col = t*C + ci

    ws = [pack(params["stem_w"], params["stem_bn"][0])]
    bs = [params["stem_bn"][1]]
    for blk in params["blocks"]:
        ws.append(pack(blk["w1"], blk["bn1"][0])); bs.append(blk["bn1"][1])
        ws.append(pack(blk["w2"], blk["bn2"][0])); bs.append(blk["bn2"][1])
    w_all = jnp.stack(ws)                                    # (L, C, 9C) bf16
    b_all = jnp.stack(bs).reshape(len(bs), C, 1).astype(jnp.float32)
    return w_all, b_all


# ----------------------------------------------------------------------------
# RepresentationNetwork forward (NCHW in / NCHW out, matching PyTorch)
# ----------------------------------------------------------------------------
@jax.jit
def representation_network(w_all, b_all, x_nchw):
    N, Cin, H, W = x_nchw.shape
    L, C, K = w_all.shape
    assert K == 9 * C and Cin <= C
    num_blocks = (L - 1) // 2

    HP, WP = H + 2, W + 2
    S_IMG = HP * WP
    M = N * S_IMG
    MP = pl.cdiv(M, 128) * 128                 # lane-dense store width
    MARGIN = pl.cdiv(WP + 1, 128) * 128        # aligned zero margin >= max tap shift
    BUFLEN = MARGIN + MP + MARGIN

    # Interior-validity mask (1, MP): 1 at real output pixels, 0 on each image's
    # halo ring and on the [M, MP) tail.  Constant under jit (folded at compile).
    j = jnp.arange(MP)
    r = j % S_IMG
    hp, wp = r // WP, r % WP
    mask = ((j < M) & (hp >= 1) & (hp <= H) & (wp >= 1) & (wp <= W))
    mask = mask.astype(jnp.float32)[None, :]

    x_in = x_nchw.reshape(N, Cin, H * W).astype(jnp.float32)   # free reshape

    kernel = _make_kernel(N=N, Cin=Cin, C=C, H=H, W=W, num_blocks=num_blocks,
                          WP=WP, S_IMG=S_IMG, M=M, MP=MP, MARGIN=MARGIN,
                          BUFLEN=BUFLEN)

    out = pl.pallas_call(
        kernel,
        out_shape=jax.ShapeDtypeStruct((N, C, H * W), jnp.float32),
        in_specs=[pl.BlockSpec(memory_space=pltpu.MemorySpace.VMEM)] * 4,
        out_specs=pl.BlockSpec(memory_space=pltpu.MemorySpace.VMEM),
        scratch_shapes=[
            pltpu.VMEM((C, BUFLEN), jnp.float32),   # x halo staging buffer
            pltpu.VMEM((C, BUFLEN), jnp.float32),   # y (residual stream, f32)
            pltpu.VMEM((C, BUFLEN), jnp.float32),   # h (intra-block activation)
            pltpu.VMEM((9 * C, MP), jnp.bfloat16),  # tap-stacked matmul RHS (K=9C)
        ],
        compiler_params=pltpu.CompilerParams(vmem_limit_bytes=32 * 1024 * 1024),
    )(x_in, w_all, b_all, mask)

    return out.reshape(N, C, H, W)                              # free reshape -> NCHW


# ----------------------------------------------------------------------------
# Pure-JAX reference (mirrors the kernel's precision: BN scale folded into the
# weight before bf16 rounding, bf16 conv inputs, f32 accumulation)
# ----------------------------------------------------------------------------
def _ref_network(params, x_nchw):
    x = jnp.transpose(x_nchw, (0, 2, 3, 1)).astype(jnp.float32)   # NHWC

    def conv_bn(z, w_hwio, bn):
        scale, bias = bn
        w_eff = (w_hwio * scale).astype(jnp.bfloat16).astype(jnp.float32)
        zb = z.astype(jnp.bfloat16).astype(jnp.float32)
        y = jax.lax.conv_general_dilated(
            zb, w_eff, window_strides=(1, 1), padding="SAME",
            dimension_numbers=("NHWC", "HWIO", "NHWC"))
        return y + bias

    y = jnp.maximum(conv_bn(x, params["stem_w"], params["stem_bn"]), 0.0)
    for blk in params["blocks"]:
        h = jnp.maximum(conv_bn(y, blk["w1"], blk["bn1"]), 0.0)
        y = jnp.maximum(conv_bn(h, blk["w2"], blk["bn2"]) + y, 0.0)
    return jnp.transpose(y, (0, 3, 1, 2))


if __name__ == "__main__":
    # RepresentationNetwork(observation_shape=(3,16,16), stacked_observations=1,
    #                       num_blocks=2, num_channels=16)
    observation_shape = (3, 16, 16)
    stacked_observations = 1
    num_blocks = 2
    num_channels = 16
    in_channels = (observation_shape[0] * (stacked_observations + 1)
                   + stacked_observations)                      # 7
    batch = 2

    key = jax.random.PRNGKey(0)
    k_params, k_x = jax.random.split(key)
    params = make_params(k_params, in_channels, num_channels, num_blocks)
    w_all, b_all = pack_params(params)          # one-time host prep (BN folded)

    x = jax.random.normal(
        k_x, (batch, in_channels, observation_shape[1], observation_shape[2]),
        jnp.float32)

    out = representation_network(w_all, b_all, x)
    out = jax.block_until_ready(out)

    ref = _ref_network(params, x)
    assert out.shape == (batch, num_channels,
                         observation_shape[1], observation_shape[2])
    err = float(jnp.max(jnp.abs(out - ref)))
    assert jnp.allclose(out, ref, atol=1e-3, rtol=1e-3), f"max err {err}"

    print("KERNEL_OK")
</pallas_src>

<mosaic_0001>
module attributes {stable_mosaic.version = 11 : i64} {
  func.func @kernel(%arg0: memref<2x7x256xf32, #tpu.memory_space<vmem>>, %arg1: memref<5x16x144xbf16, #tpu.memory_space<vmem>>, %arg2: memref<5x16x1xf32, #tpu.memory_space<vmem>>, %arg3: memref<1x768xf32, #tpu.memory_space<vmem>>, %arg4: memref<2x16x256xf32, #tpu.memory_space<vmem>>, %arg5: memref<16x1024xf32, #tpu.memory_space<vmem>>, %arg6: memref<16x1024xf32, #tpu.memory_space<vmem>>, %arg7: memref<16x1024xf32, #tpu.memory_space<vmem>>, %arg8: memref<144x768xbf16, #tpu.memory_space<vmem>>) attributes {dimension_semantics = [], scalar_prefetch = 0 : i64, scratch_operands = 4 : i64, tpu.core_type = #tpu.core_type<tc>} {
    %cst = arith.constant 0.000000e+00 : f32
    %0 = vector.broadcast %cst : f32 to vector<16x1024xf32>
    %c0 = arith.constant 0 : index
    %c0_0 = arith.constant 0 : index
    %1 = vector.load %arg5[%c0, %c0_0] : memref<16x1024xf32, #tpu.memory_space<vmem>>, vector<16x1024xf32>
    tpu.vector_store %arg5[%c0, %c0_0], %0 {strides = array<i32>} : memref<16x1024xf32, #tpu.memory_space<vmem>>, vector<16x1024xf32>,
    %cst_1 = arith.constant 0.000000e+00 : f32
    %2 = vector.broadcast %cst_1 : f32 to vector<16x128xf32>
    %cst_2 = arith.constant 0.000000e+00 : f32
    %3 = vector.broadcast %cst_2 : f32 to vector<16x128xf32>
    %c0_3 = arith.constant 0 : index
    %c0_4 = arith.constant 0 : index
    %4 = vector.load %arg6[%c0_3, %c0_4] : memref<16x1024xf32, #tpu.memory_space<vmem>>, vector<16x128xf32>
    tpu.vector_store %arg6[%c0_3, %c0_4], %2 {strides = array<i32>} : memref<16x1024xf32, #tpu.memory_space<vmem>>, vector<16x128xf32>,
    %c0_5 = arith.constant 0 : index
    %c896 = arith.constant 896 : index
    %5 = vector.load %arg6[%c0_5, %c896] : memref<16x1024xf32, #tpu.memory_space<vmem>>, vector<16x128xf32>
    tpu.vector_store %arg6[%c0_5, %c896], %3 {strides = array<i32>} : memref<16x1024xf32, #tpu.memory_space<vmem>>, vector<16x128xf32>,
    %c0_6 = arith.constant 0 : index
    %c0_7 = arith.constant 0 : index
    %6 = vector.load %arg7[%c0_6, %c0_7] : memref<16x1024xf32, #tpu.memory_space<vmem>>, vector<16x128xf32>
    tpu.vector_store %arg7[%c0_6, %c0_7], %2 {strides = array<i32>} : memref<16x1024xf32, #tpu.memory_space<vmem>>, vector<16x128xf32>,
    %c0_8 = arith.constant 0 : index
    %c896_9 = arith.constant 896 : index
    %7 = vector.load %arg7[%c0_8, %c896_9] : memref<16x1024xf32, #tpu.memory_space<vmem>>, vector<16x128xf32>
    tpu.vector_store %arg7[%c0_8, %c896_9], %3 {strides = array<i32>} : memref<16x1024xf32, #tpu.memory_space<vmem>>, vector<16x128xf32>,
    %c0_10 = arith.constant 0 : index
    %c0_11 = arith.constant 0 : index
    %c0_12 = arith.constant 0 : index
    %8 = vector.load %arg0[%c0_10, %c0_11, %c0_12] : memref<2x7x256xf32, #tpu.memory_space<vmem>>, vector<1x7x16xf32>
    %9 = vector.shape_cast %8 : vector<1x7x16xf32> to vector<7x16xf32>
    %c0_13 = arith.constant 0 : index
    %c147 = arith.constant 147 : index
    %10 = vector.load %arg5[%c0_13, %c147] : memref<16x1024xf32, #tpu.memory_space<vmem>>, vector<7x16xf32>
    tpu.vector_store %arg5[%c0_13, %c147], %9 {strides = array<i32>} : memref<16x1024xf32, #tpu.memory_space<vmem>>, vector<7x16xf32>,
    %c0_14 = arith.constant 0 : index
    %c0_15 = arith.constant 0 : index
    %c16 = arith.constant 16 : index
    %11 = vector.load %arg0[%c0_14, %c0_15, %c16] : memref<2x7x256xf32, #tpu.memory_space<vmem>>, vector<1x7x16xf32>
    %12 = vector.shape_cast %11 : vector<1x7x16xf32> to vector<7x16xf32>
    %c0_16 = arith.constant 0 : index
    %c165 = arith.constant 165 : index
    %13 = vector.load %arg5[%c0_16, %c165] : memref<16x1024xf32, #tpu.memory_space<vmem>>, vector<7x16xf32>
    tpu.vector_store %arg5[%c0_16, %c165], %12 {strides = array<i32>} : memref<16x1024xf32, #tpu.memory_space<vmem>>, vector<7x16xf32>,
    %c0_17 = arith.constant 0 : index
    %c0_18 = arith.constant 0 : index
    %c32 = arith.constant 32 : index
    %14 = vector.load %arg0[%c0_17, %c0_18, %c32] : memref<2x7x256xf32, #tpu.memory_space<vmem>>, vector<1x7x16xf32>
    %15 = vector.shape_cast %14 : vector<1x7x16xf32> to vector<7x16xf32>
    %c0_19 = arith.constant 0 : index
    %c183 = arith.constant 183 : index
    %16 = vector.load %arg5[%c0_19, %c183] : memref<16x1024xf32, #tpu.memory_space<vmem>>, vector<7x16xf32>
    tpu.vector_store %arg5[%c0_19, %c183], %15 {strides = array<i32>} : memref<16x1024xf32, #tpu.memory_space<vmem>>, vector<7x16xf32>,
    %c0_20 = arith.constant 0 : index
    %c0_21 = arith.constant 0 : index
    %c48 = arith.constant 48 : index
    %17 = vector.load %arg0[%c0_20, %c0_21, %c48] : memref<2x7x256xf32, #tpu.memory_space<vmem>>, vector<1x7x16xf32>
    %18 = vector.shape_cast %17 : vector<1x7x16xf32> to vector<7x16xf32>
    %c0_22 = arith.constant 0 : index
    %c201 = arith.constant 201 : index
    %19 = vector.load %arg5[%c0_22, %c201] : memref<16x1024xf32, #tpu.memory_space<vmem>>, vector<7x16xf32>
    tpu.vector_store %arg5[%c0_22, %c201], %18 {strides = array<i32>} : memref<16x1024xf32, #tpu.memory_space<vmem>>, vector<7x16xf32>,
    %c0_23 = arith.constant 0 : index
    %c0_24 = arith.constant 0 : index
    %c64 = arith.constant 64 : index
    %20 = vector.load %arg0[%c0_23, %c0_24, %c64] : memref<2x7x256xf32, #tpu.memory_space<vmem>>, vector<1x7x16xf32>
    %21 = vector.shape_cast %20 : vector<1x7x16xf32> to vector<7x16xf32>
    %c0_25 = arith.constant 0 : index
    %c219 = arith.constant 219 : index
    %22 = vector.load %arg5[%c0_25, %c219] : memref<16x1024xf32, #tpu.memory_space<vmem>>, vector<7x16xf32>
    tpu.vector_store %arg5[%c0_25, %c219], %21 {strides = array<i32>} : memref<16x1024xf32, #tpu.memory_space<vmem>>, vector<7x16xf32>,
    %c0_26 = arith.constant 0 : index
    %c0_27 = arith.constant 0 : index
    %c80 = arith.constant 80 : index
    %23 = vector.load %arg0[%c0_26, %c0_27, %c80] : memref<2x7x256xf32, #tpu.memory_space<vmem>>, vector<1x7x16xf32>
    %24 = vector.shape_cast %23 : vector<1x7x16xf32> to vector<7x16xf32>
    %c0_28 = arith.constant 0 : index
    %c237 = arith.constant 237 : index
    %25 = vector.load %arg5[%c0_28, %c237] : memref<16x1024xf32, #tpu.memory_space<vmem>>, vector<7x16xf32>
    tpu.vector_store %arg5[%c0_28, %c237], %24 {strides = array<i32>} : memref<16x1024xf32, #tpu.memory_space<vmem>>, vector<7x16xf32>,
    %c0_29 = arith.constant 0 : index
    %c0_30 = arith.constant 0 : index
    %c96 = arith.constant 96 : index
    %26 = vector.load %arg0[%c0_29, %c0_30, %c96] : memref<2x7x256xf32, #tpu.memory_space<vmem>>, vector<1x7x16xf32>
    %27 = vector.shape_cast %26 : vector<1x7x16xf32> to vector<7x16xf32>
    %c0_31 = arith.constant 0 : index
    %c255 = arith.constant 255 : index
    %28 = vector.load %arg5[%c0_31, %c255] : memref<16x1024xf32, #tpu.memory_space<vmem>>, vector<7x16xf32>
    tpu.vector_store %arg5[%c0_31, %c255], %27 {strides = array<i32>} : memref<16x1024xf32, #tpu.memory_space<vmem>>, vector<7x16xf32>,
    %c0_32 = arith.constant 0 : index
    %c0_33 = arith.constant 0 : index
    %c112 = arith.constant 112 : index
    %29 = vector.load %arg0[%c0_32, %c0_33, %c112] : memref<2x7x256xf32, #tpu.memory_space<vmem>>, vector<1x7x16xf32>
    %30 = vector.shape_cast %29 : vector<1x7x16xf32> to vector<7x16xf32>
    %c0_34 = arith.constant 0 : index
    %c273 = arith.constant 273 : index
    %31 = vector.load %arg5[%c0_34, %c273] : memref<16x1024xf32, #tpu.memory_space<vmem>>, vector<7x16xf32>
    tpu.vector_store %arg5[%c0_34, %c273], %30 {strides = array<i32>} : memref<16x1024xf32, #tpu.memory_space<vmem>>, vector<7x16xf32>,
    %c0_35 = arith.constant 0 : index
    %c0_36 = arith.constant 0 : index
    %c128 = arith.constant 128 : index
    %32 = vector.load %arg0[%c0_35, %c0_36, %c128] : memref<2x7x256xf32, #tpu.memory_space<vmem>>, vector<1x7x16xf32>
    %33 = vector.shape_cast %32 : vector<1x7x16xf32> to vector<7x16xf32>
    %c0_37 = arith.constant 0 : index
    %c291 = arith.constant 291 : index
    %34 = vector.load %arg5[%c0_37, %c291] : memref<16x1024xf32, #tpu.memory_space<vmem>>, vector<7x16xf32>
    tpu.vector_store %arg5[%c0_37, %c291], %33 {strides = array<i32>} : memref<16x1024xf32, #tpu.memory_space<vmem>>, vector<7x16xf32>,
    %c0_38 = arith.constant 0 : index
    %c0_39 = arith.constant 0 : index
    %c144 = arith.constant 144 : index
    %35 = vector.load %arg0[%c0_38, %c0_39, %c144] : memref<2x7x256xf32, #tpu.memory_space<vmem>>, vector<1x7x16xf32>
    %36 = vector.shape_cast %35 : vector<1x7x16xf32> to vector<7x16xf32>
    %c0_40 = arith.constant 0 : index
    %c309 = arith.constant 309 : index
    %37 = vector.load %arg5[%c0_40, %c309] : memref<16x1024xf32, #tpu.memory_space<vmem>>, vector<7x16xf32>
    tpu.vector_store %arg5[%c0_40, %c309], %36 {strides = array<i32>} : memref<16x1024xf32, #tpu.memory_space<vmem>>, vector<7x16xf32>,
    %c0_41 = arith.constant 0 : index
    %c0_42 = arith.constant 0 : index
    %c160 = arith.constant 160 : index
    %38 = vector.load %arg0[%c0_41, %c0_42, %c160] : memref<2x7x256xf32, #tpu.memory_space<vmem>>, vector<1x7x16xf32>
    %39 = vector.shape_cast %38 : vector<1x7x16xf32> to vector<7x16xf32>
    %c0_43 = arith.constant 0 : index
    %c327 = arith.constant 327 : index
    %40 = vector.load %arg5[%c0_43, %c327] : memref<16x1024xf32, #tpu.memory_space<vmem>>, vector<7x16xf32>
    tpu.vector_store %arg5[%c0_43, %c327], %39 {strides = array<i32>} : memref<16x1024xf32, #tpu.memory_space<vmem>>, vector<7x16xf32>,
    %c0_44 = arith.constant 0 : index
    %c0_45 = arith.constant 0 : index
    %c176 = arith.constant 176 : index
    %41 = vector.load %arg0[%c0_44, %c0_45, %c176] : memref<2x7x256xf32, #tpu.memory_space<vmem>>, vector<1x7x16xf32>
    %42 = vector.shape_cast %41 : vector<1x7x16xf32> to vector<7x16xf32>
    %c0_46 = arith.constant 0 : index
    %c345 = arith.constant 345 : index
    %43 = vector.load %arg5[%c0_46, %c345] : memref<16x1024xf32, #tpu.memory_space<vmem>>, vector<7x16xf32>
    tpu.vector_store %arg5[%c0_46, %c345], %42 {strides = array<i32>} : memref<16x1024xf32, #tpu.memory_space<vmem>>, vector<7x16xf32>,
    %c0_47 = arith.constant 0 : index
    %c0_48 = arith.constant 0 : index
    %c192 = arith.constant 192 : index
    %44 = vector.load %arg0[%c0_47, %c0_48, %c192] : memref<2x7x256xf32, #tpu.memory_space<vmem>>, vector<1x7x16xf32>
    %45 = vector.shape_cast %44 : vector<1x7x16xf32> to vector<7x16xf32>
    %c0_49 = arith.constant 0 : index
    %c363 = arith.constant 363 : index
    %46 = vector.load %arg5[%c0_49, %c363] : memref<16x1024xf32, #tpu.memory_space<vmem>>, vector<7x16xf32>
    tpu.vector_store %arg5[%c0_49, %c363], %45 {strides = array<i32>} : memref<16x1024xf32, #tpu.memory_space<vmem>>, vector<7x16xf32>,
    %c0_50 = arith.constant 0 : index
    %c0_51 = arith.constant 0 : index
    %c208 = arith.constant 208 : index
    %47 = vector.load %arg0[%c0_50, %c0_51, %c208] : memref<2x7x256xf32, #tpu.memory_space<vmem>>, vector<1x7x16xf32>
    %48 = vector.shape_cast %47 : vector<1x7x16xf32> to vector<7x16xf32>
    %c0_52 = arith.constant 0 : index
    %c381 = arith.constant 381 : index
    %49 = vector.load %arg5[%c0_52, %c381] : memref<16x1024xf32, #tpu.memory_space<vmem>>, vector<7x16xf32>
    tpu.vector_store %arg5[%c0_52, %c381], %48 {strides = array<i32>} : memref<16x1024xf32, #tpu.memory_space<vmem>>, vector<7x16xf32>,
    %c0_53 = arith.constant 0 : index
    %c0_54 = arith.constant 0 : index
    %c224 = arith.constant 224 : index
    %50 = vector.load %arg0[%c0_53, %c0_54, %c224] : memref<2x7x256xf32, #tpu.memory_space<vmem>>, vector<1x7x16xf32>
    %51 = vector.shape_cast %50 : vector<1x7x16xf32> to vector<7x16xf32>
    %c0_55 = arith.constant 0 : index
    %c399 = arith.constant 399 : index
    %52 = vector.load %arg5[%c0_55, %c399] : memref<16x1024xf32, #tpu.memory_space<vmem>>, vector<7x16xf32>
    tpu.vector_store %arg5[%c0_55, %c399], %51 {strides = array<i32>} : memref<16x1024xf32, #tpu.memory_space<vmem>>, vector<7x16xf32>,
    %c0_56 = arith.constant 0 : index
    %c0_57 = arith.constant 0 : index
    %c240 = arith.constant 240 : index
    %53 = vector.load %arg0[%c0_56, %c0_57, %c240] : memref<2x7x256xf32, #tpu.memory_space<vmem>>, vector<1x7x16xf32>
    %54 = vector.shape_cast %53 : vector<1x7x16xf32> to vector<7x16xf32>
    %c0_58 = arith.constant 0 : index
    %c417 = arith.constant 417 : index
    %55 = vector.load %arg5[%c0_58, %c417] : memref<16x1024xf32, #tpu.memory_space<vmem>>, vector<7x16xf32>
    tpu.vector_store %arg5[%c0_58, %c417], %54 {strides = array<i32>} : memref<16x1024xf32, #tpu.memory_space<vmem>>, vector<7x16xf32>,
    %c1 = arith.constant 1 : index
    %c0_59 = arith.constant 0 : index
    %c0_60 = arith.constant 0 : index
    %56 = vector.load %arg0[%c1, %c0_59, %c0_60] : memref<2x7x256xf32, #tpu.memory_space<vmem>>, vector<1x7x16xf32>
    %57 = vector.shape_cast %56 : vector<1x7x16xf32> to vector<7x16xf32>
    %c0_61 = arith.constant 0 : index
    %c471 = arith.constant 471 : index
    %58 = vector.load %arg5[%c0_61, %c471] : memref<16x1024xf32, #tpu.memory_space<vmem>>, vector<7x16xf32>
    tpu.vector_store %arg5[%c0_61, %c471], %57 {strides = array<i32>} : memref<16x1024xf32, #tpu.memory_space<vmem>>, vector<7x16xf32>,
    %c1_62 = arith.constant 1 : index
    %c0_63 = arith.constant 0 : index
    %c16_64 = arith.constant 16 : index
    %59 = vector.load %arg0[%c1_62, %c0_63, %c16_64] : memref<2x7x256xf32, #tpu.memory_space<vmem>>, vector<1x7x16xf32>
    %60 = vector.shape_cast %59 : vector<1x7x16xf32> to vector<7x16xf32>
    %c0_65 = arith.constant 0 : index
    %c489 = arith.constant 489 : index
    %61 = vector.load %arg5[%c0_65, %c489] : memref<16x1024xf32, #tpu.memory_space<vmem>>, vector<7x16xf32>
    tpu.vector_store %arg5[%c0_65, %c489], %60 {strides = array<i32>} : memref<16x1024xf32, #tpu.memory_space<vmem>>, vector<7x16xf32>,
    %c1_66 = arith.constant 1 : index
    %c0_67 = arith.constant 0 : index
    %c32_68 = arith.constant 32 : index
    %62 = vector.load %arg0[%c1_66, %c0_67, %c32_68] : memref<2x7x256xf32, #tpu.memory_space<vmem>>, vector<1x7x16xf32>
    %63 = vector.shape_cast %62 : vector<1x7x16xf32> to vector<7x16xf32>
    %c0_69 = arith.constant 0 : index
    %c507 = arith.constant 507 : index
    %64 = vector.load %arg5[%c0_69, %c507] : memref<16x1024xf32, #tpu.memory_space<vmem>>, vector<7x16xf32>
    tpu.vector_store %arg5[%c0_69, %c507], %63 {strides = array<i32>} : memref<16x1024xf32, #tpu.memory_space<vmem>>, vector<7x16xf32>,
    %c1_70 = arith.constant 1 : index
    %c0_71 = arith.constant 0 : index
    %c48_72 = arith.constant 48 : index
    %65 = vector.load %arg0[%c1_70, %c0_71, %c48_72] : memref<2x7x256xf32, #tpu.memory_space<vmem>>, vector<1x7x16xf32>
    %66 = vector.shape_cast %65 : vector<1x7x16xf32> to vector<7x16xf32>
    %c0_73 = arith.constant 0 : index
    %c525 = arith.constant 525 : index
    %67 = vector.load %arg5[%c0_73, %c525] : memref<16x1024xf32, #tpu.memory_space<vmem>>, vector<7x16xf32>
    tpu.vector_store %arg5[%c0_73, %c525], %66 {strides = array<i32>} : memref<16x1024xf32, #tpu.memory_space<vmem>>, vector<7x16xf32>,
    %c1_74 = arith.constant 1 : index
    %c0_75 = arith.constant 0 : index
    %c64_76 = arith.constant 64 : index
    %68 = vector.load %arg0[%c1_74, %c0_75, %c64_76] : memref<2x7x256xf32, #tpu.memory_space<vmem>>, vector<1x7x16xf32>
    %69 = vector.shape_cast %68 : vector<1x7x16xf32> to vector<7x16xf32>
    %c0_77 = arith.constant 0 : index
    %c543 = arith.constant 543 : index
    %70 = vector.load %arg5[%c0_77, %c543] : memref<16x1024xf32, #tpu.memory_space<vmem>>, vector<7x16xf32>
    tpu.vector_store %arg5[%c0_77, %c543], %69 {strides = array<i32>} : memref<16x1024xf32, #tpu.memory_space<vmem>>, vector<7x16xf32>,
    %c1_78 = arith.constant 1 : index
    %c0_79 = arith.constant 0 : index
    %c80_80 = arith.constant 80 : index
    %71 = vector.load %arg0[%c1_78, %c0_79, %c80_80] : memref<2x7x256xf32, #tpu.memory_space<vmem>>, vector<1x7x16xf32>
    %72 = vector.shape_cast %71 : vector<1x7x16xf32> to vector<7x16xf32>
    %c0_81 = arith.constant 0 : index
    %c561 = arith.constant 561 : index
    %73 = vector.load %arg5[%c0_81, %c561] : memref<16x1024xf32, #tpu.memory_space<vmem>>, vector<7x16xf32>
    tpu.vector_store %arg5[%c0_81, %c561], %72 {strides = array<i32>} : memref<16x1024xf32, #tpu.memory_space<vmem>>, vector<7x16xf32>,
    %c1_82 = arith.constant 1 : index
    %c0_83 = arith.constant 0 : index
    %c96_84 = arith.constant 96 : index
    %74 = vector.load %arg0[%c1_82, %c0_83, %c96_84] : memref<2x7x256xf32, #tpu.memory_space<vmem>>, vector<1x7x16xf32>
    %75 = vector.shape_cast %74 : vector<1x7x16xf32> to vector<7x16xf32>
    %c0_85 = arith.constant 0 : index
    %c579 = arith.constant 579 : index
    %76 = vector.load %arg5[%c0_85, %c579] : memref<16x1024xf32, #tpu.memory_space<vmem>>, vector<7x16xf32>
    tpu.vector_store %arg5[%c0_85, %c579], %75 {strides = array<i32>} : memref<16x1024xf32, #tpu.memory_space<vmem>>, vector<7x16xf32>,
    %c1_86 = arith.constant 1 : index
    %c0_87 = arith.constant 0 : index
    %c112_88 = arith.constant 112 : index
    %77 = vector.load %arg0[%c1_86, %c0_87, %c112_88] : memref<2x7x256xf32, #tpu.memory_space<vmem>>, vector<1x7x16xf32>
    %78 = vector.shape_cast %77 : vector<1x7x16xf32> to vector<7x16xf32>
    %c0_89 = arith.constant 0 : index
    %c597 = arith.constant 597 : index
    %79 = vector.load %arg5[%c0_89, %c597] : memref<16x1024xf32, #tpu.memory_space<vmem>>, vector<7x16xf32>
    tpu.vector_store %arg5[%c0_89, %c597], %78 {strides = array<i32>} : memref<16x1024xf32, #tpu.memory_space<vmem>>, vector<7x16xf32>,
    %c1_90 = arith.constant 1 : index
    %c0_91 = arith.constant 0 : index
    %c128_92 = arith.constant 128 : index
    %80 = vector.load %arg0[%c1_90, %c0_91, %c128_92] : memref<2x7x256xf32, #tpu.memory_space<vmem>>, vector<1x7x16xf32>
    %81 = vector.shape_cast %80 : vector<1x7x16xf32> to vector<7x16xf32>
    %c0_93 = arith.constant 0 : index
    %c615 = arith.constant 615 : index
    %82 = vector.load %arg5[%c0_93, %c615] : memref<16x1024xf32, #tpu.memory_space<vmem>>, vector<7x16xf32>
    tpu.vector_store %arg5[%c0_93, %c615], %81 {strides = array<i32>} : memref<16x1024xf32, #tpu.memory_space<vmem>>, vector<7x16xf32>,
    %c1_94 = arith.constant 1 : index
    %c0_95 = arith.constant 0 : index
    %c144_96 = arith.constant 144 : index
    %83 = vector.load %arg0[%c1_94, %c0_95, %c144_96] : memref<2x7x256xf32, #tpu.memory_space<vmem>>, vector<1x7x16xf32>
    %84 = vector.shape_cast %83 : vector<1x7x16xf32> to vector<7x16xf32>
    %c0_97 = arith.constant 0 : index
    %c633 = arith.constant 633 : index
    %85 = vector.load %arg5[%c0_97, %c633] : memref<16x1024xf32, #tpu.memory_space<vmem>>, vector<7x16xf32>
    tpu.vector_store %arg5[%c0_97, %c633], %84 {strides = array<i32>} : memref<16x1024xf32, #tpu.memory_space<vmem>>, vector<7x16xf32>,
    %c1_98 = arith.constant 1 : index
    %c0_99 = arith.constant 0 : index
    %c160_100 = arith.constant 160 : index
    %86 = vector.load %arg0[%c1_98, %c0_99, %c160_100] : memref<2x7x256xf32, #tpu.memory_space<vmem>>, vector<1x7x16xf32>
    %87 = vector.shape_cast %86 : vector<1x7x16xf32> to vector<7x16xf32>
    %c0_101 = arith.constant 0 : index
    %c651 = arith.constant 651 : index
    %88 = vector.load %arg5[%c0_101, %c651] : memref<16x1024xf32, #tpu.memory_space<vmem>>, vector<7x16xf32>
    tpu.vector_store %arg5[%c0_101, %c651], %87 {strides = array<i32>} : memref<16x1024xf32, #tpu.memory_space<vmem>>, vector<7x16xf32>,
    %c1_102 = arith.constant 1 : index
    %c0_103 = arith.constant 0 : index
    %c176_104 = arith.constant 176 : index
    %89 = vector.load %arg0[%c1_102, %c0_103, %c176_104] : memref<2x7x256xf32, #tpu.memory_space<vmem>>, vector<1x7x16xf32>
    %90 = vector.shape_cast %89 : vector<1x7x16xf32> to vector<7x16xf32>
    %c0_105 = arith.constant 0 : index
    %c669 = arith.constant 669 : index
    %91 = vector.load %arg5[%c0_105, %c669] : memref<16x1024xf32, #tpu.memory_space<vmem>>, vector<7x16xf32>
    tpu.vector_store %arg5[%c0_105, %c669], %90 {strides = array<i32>} : memref<16x1024xf32, #tpu.memory_space<vmem>>, vector<7x16xf32>,
    %c1_106 = arith.constant 1 : index
    %c0_107 = arith.constant 0 : index
    %c192_108 = arith.constant 192 : index
    %92 = vector.load %arg0[%c1_106, %c0_107, %c192_108] : memref<2x7x256xf32, #tpu.memory_space<vmem>>, vector<1x7x16xf32>
    %93 = vector.shape_cast %92 : vector<1x7x16xf32> to vector<7x16xf32>
    %c0_109 = arith.constant 0 : index
    %c687 = arith.constant 687 : index
    %94 = vector.load %arg5[%c0_109, %c687] : memref<16x1024xf32, #tpu.memory_space<vmem>>, vector<7x16xf32>
    tpu.vector_store %arg5[%c0_109, %c687], %93 {strides = array<i32>} : memref<16x1024xf32, #tpu.memory_space<vmem>>, vector<7x16xf32>,
    %c1_110 = arith.constant 1 : index
    %c0_111 = arith.constant 0 : index
    %c208_112 = arith.constant 208 : index
    %95 = vector.load %arg0[%c1_110, %c0_111, %c208_112] : memref<2x7x256xf32, #tpu.memory_space<vmem>>, vector<1x7x16xf32>
    %96 = vector.shape_cast %95 : vector<1x7x16xf32> to vector<7x16xf32>
    %c0_113 = arith.constant 0 : index
    %c705 = arith.constant 705 : index
    %97 = vector.load %arg5[%c0_113, %c705] : memref<16x1024xf32, #tpu.memory_space<vmem>>, vector<7x16xf32>
    tpu.vector_store %arg5[%c0_113, %c705], %96 {strides = array<i32>} : memref<16x1024xf32, #tpu.memory_space<vmem>>, vector<7x16xf32>,
    %c1_114 = arith.constant 1 : index
    %c0_115 = arith.constant 0 : index
    %c224_116 = arith.constant 224 : index
    %98 = vector.load %arg0[%c1_114, %c0_115, %c224_116] : memref<2x7x256xf32, #tpu.memory_space<vmem>>, vector<1x7x16xf32>
    %99 = vector.shape_cast %98 : vector<1x7x16xf32> to vector<7x16xf32>
    %c0_117 = arith.constant 0 : index
    %c723 = arith.constant 723 : index
    %100 = vector.load %arg5[%c0_117, %c723] : memref<16x1024xf32, #tpu.memory_space<vmem>>, vector<7x16xf32>
    tpu.vector_store %arg5[%c0_117, %c723], %99 {strides = array<i32>} : memref<16x1024xf32, #tpu.memory_space<vmem>>, vector<7x16xf32>,
    %c1_118 = arith.constant 1 : index
    %c0_119 = arith.constant 0 : index
    %c240_120 = arith.constant 240 : index
    %101 = vector.load %arg0[%c1_118, %c0_119, %c240_120] : memref<2x7x256xf32, #tpu.memory_space<vmem>>, vector<1x7x16xf32>
    %102 = vector.shape_cast %101 : vector<1x7x16xf32> to vector<7x16xf32>
    %c0_121 = arith.constant 0 : index
    %c741 = arith.constant 741 : index
    %103 = vector.load %arg5[%c0_121, %c741] : memref<16x1024xf32, #tpu.memory_space<vmem>>, vector<7x16xf32>
    tpu.vector_store %arg5[%c0_121, %c741], %102 {strides = array<i32>} : memref<16x1024xf32, #tpu.memory_space<vmem>>, vector<7x16xf32>,
    %c0_122 = arith.constant 0 : index
    %c0_123 = arith.constant 0 : index
    %104 = vector.load %arg5[%c0_122, %c0_123] : memref<16x1024xf32, #tpu.memory_space<vmem>>, vector<16x1024xf32>
    %105 = arith.truncf %104 : vector<16x1024xf32> to vector<16x1024xbf16>
    %106 = vector.extract_strided_slice %105 {offsets = [0, 109], sizes = [16, 768], strides = [1, 1]} : vector<16x1024xbf16> to vector<16x768xbf16>
    %c0_124 = arith.constant 0 : index
    %c0_125 = arith.constant 0 : index
    %107 = vector.load %arg8[%c0_124, %c0_125] : memref<144x768xbf16, #tpu.memory_space<vmem>>, vector<16x768xbf16>
    tpu.vector_store %arg8[%c0_124, %c0_125], %106 {strides = array<i32>} : memref<144x768xbf16, #tpu.memory_space<vmem>>, vector<16x768xbf16>,
    %108 = vector.extract_strided_slice %105 {offsets = [0, 110], sizes = [16, 768], strides = [1, 1]} : vector<16x1024xbf16> to vector<16x768xbf16>
    %c16_126 = arith.constant 16 : index
    %c0_127 = arith.constant 0 : index
    %109 = vector.load %arg8[%c16_126, %c0_127] : memref<144x768xbf16, #tpu.memory_space<vmem>>, vector<16x768xbf16>
    tpu.vector_store %arg8[%c16_126, %c0_127], %108 {strides = array<i32>} : memref<144x768xbf16, #tpu.memory_space<vmem>>, vector<16x768xbf16>,
    %110 = vector.extract_strided_slice %105 {offsets = [0, 111], sizes = [16, 768], strides = [1, 1]} : vector<16x1024xbf16> to vector<16x768xbf16>
    %c32_128 = arith.constant 32 : index
    %c0_129 = arith.constant 0 : index
    %111 = vector.load %arg8[%c32_128, %c0_129] : memref<144x768xbf16, #tpu.memory_space<vmem>>, vector<16x768xbf16>
    tpu.vector_store %arg8[%c32_128, %c0_129], %110 {strides = array<i32>} : memref<144x768xbf16, #tpu.memory_space<vmem>>, vector<16x768xbf16>,
    %112 = vector.extract_strided_slice %105 {offsets = [0, 127], sizes = [16, 768], strides = [1, 1]} : vector<16x1024xbf16> to vector<16x768xbf16>
    %c48_130 = arith.constant 48 : index
    %c0_131 = arith.constant 0 : index
    %113 = vector.load %arg8[%c48_130, %c0_131] : memref<144x768xbf16, #tpu.memory_space<vmem>>, vector<16x768xbf16>
    tpu.vector_store %arg8[%c48_130, %c0_131], %112 {strides = array<i32>} : memref<144x768xbf16, #tpu.memory_space<vmem>>, vector<16x768xbf16>,
    %114 = vector.extract_strided_slice %105 {offsets = [0, 128], sizes = [16, 768], strides = [1, 1]} : vector<16x1024xbf16> to vector<16x768xbf16>
    %c64_132 = arith.constant 64 : index
    %c0_133 = arith.constant 0 : index
    %115 = vector.load %arg8[%c64_132, %c0_133] : memref<144x768xbf16, #tpu.memory_space<vmem>>, vector<16x768xbf16>
    tpu.vector_store %arg8[%c64_132, %c0_133], %114 {strides = array<i32>} : memref<144x768xbf16, #tpu.memory_space<vmem>>, vector<16x768xbf16>,
    %116 = vector.extract_strided_slice %105 {offsets = [0, 129], sizes = [16, 768], strides = [1, 1]} : vector<16x1024xbf16> to vector<16x768xbf16>
    %c80_134 = arith.constant 80 : index
    %c0_135 = arith.constant 0 : index
    %117 = vector.load %arg8[%c80_134, %c0_135] : memref<144x768xbf16, #tpu.memory_space<vmem>>, vector<16x768xbf16>
    tpu.vector_store %arg8[%c80_134, %c0_135], %116 {strides = array<i32>} : memref<144x768xbf16, #tpu.memory_space<vmem>>, vector<16x768xbf16>,
    %118 = vector.extract_strided_slice %105 {offsets = [0, 145], sizes = [16, 768], strides = [1, 1]} : vector<16x1024xbf16> to vector<16x768xbf16>
    %c96_136 = arith.constant 96 : index
    %c0_137 = arith.constant 0 : index
    %119 = vector.load %arg8[%c96_136, %c0_137] : memref<144x768xbf16, #tpu.memory_space<vmem>>, vector<16x768xbf16>
    tpu.vector_store %arg8[%c96_136, %c0_137], %118 {strides = array<i32>} : memref<144x768xbf16, #tpu.memory_space<vmem>>, vector<16x768xbf16>,
    %120 = vector.extract_strided_slice %105 {offsets = [0, 146], sizes = [16, 768], strides = [1, 1]} : vector<16x1024xbf16> to vector<16x768xbf16>
    %c112_138 = arith.constant 112 : index
    %c0_139 = arith.constant 0 : index
    %121 = vector.load %arg8[%c112_138, %c0_139] : memref<144x768xbf16, #tpu.memory_space<vmem>>, vector<16x768xbf16>
    tpu.vector_store %arg8[%c112_138, %c0_139], %120 {strides = array<i32>} : memref<144x768xbf16, #tpu.memory_space<vmem>>, vector<16x768xbf16>,
    %122 = vector.extract_strided_slice %105 {offsets = [0, 147], sizes = [16, 768], strides = [1, 1]} : vector<16x1024xbf16> to vector<16x768xbf16>
    %c128_140 = arith.constant 128 : index
    %c0_141 = arith.constant 0 : index
    %123 = vector.load %arg8[%c128_140, %c0_141] : memref<144x768xbf16, #tpu.memory_space<vmem>>, vector<16x768xbf16>
    tpu.vector_store %arg8[%c128_140, %c0_141], %122 {strides = array<i32>} : memref<144x768xbf16, #tpu.memory_space<vmem>>, vector<16x768xbf16>,
    %c0_142 = arith.constant 0 : index
    %c0_143 = arith.constant 0 : index
    %c0_144 = arith.constant 0 : index
    %124 = vector.load %arg1[%c0_142, %c0_143, %c0_144] : memref<5x16x144xbf16, #tpu.memory_space<vmem>>, vector<1x16x144xbf16>
    %125 = vector.shape_cast %124 : vector<1x16x144xbf16> to vector<16x144xbf16>
    %c0_145 = arith.constant 0 : index
    %c0_146 = arith.constant 0 : index
    %126 = vector.load %arg8[%c0_145, %c0_146] : memref<144x768xbf16, #tpu.memory_space<vmem>>, vector<144x768xbf16>
    %cst_147 = arith.constant dense<0.000000e+00> : vector<16x768xf32>
    %127 = tpu.matmul %125, %126, %cst_147 {dimension_numbers = #tpu.dot_dimension_numbers<[1], [0], [0], [1], [0, 0, 1, 1], [], []>} : vector<16x144xbf16>, vector<144x768xbf16>, vector<16x768xf32> -> vector<16x768xf32>
    %c0_148 = arith.constant 0 : index
    %c0_149 = arith.constant 0 : index
    %c0_150 = arith.constant 0 : index
    %128 = vector.load %arg2[%c0_148, %c0_149, %c0_150] : memref<5x16x1xf32, #tpu.memory_space<vmem>>, vector<1x16x1xf32>
    %129 = vector.shape_cast %128 : vector<1x16x1xf32> to vector<16x1xf32>
    %130 = vector.broadcast %129 : vector<16x1xf32> to vector<16x768xf32>
    %131 = arith.addf %127, %130 : vector<16x768xf32>
    %cst_151 = arith.constant 0.000000e+00 : f32
    %132 = vector.broadcast %cst_151 : f32 to vector<16x768xf32>
    %133 = arith.maximumf %131, %132 : vector<16x768xf32>
    %c0_152 = arith.constant 0 : index
    %c0_153 = arith.constant 0 : index
    %134 = vector.load %arg3[%c0_152, %c0_153] : memref<1x768xf32, #tpu.memory_space<vmem>>, vector<1x768xf32>
    %135 = vector.broadcast %134 : vector<1x768xf32> to vector<16x768xf32>
    %136 = arith.mulf %133, %135 : vector<16x768xf32>
    %c0_154 = arith.constant 0 : index
    %c128_155 = arith.constant 128 : index
    %137 = vector.load %arg6[%c0_154, %c128_155] : memref<16x1024xf32, #tpu.memory_space<vmem>>, vector<16x768xf32>
    tpu.vector_store %arg6[%c0_154, %c128_155], %136 {strides = array<i32>} : memref<16x1024xf32, #tpu.memory_space<vmem>>, vector<16x768xf32>,
    %c0_156 = arith.constant 0 : index
    %c0_157 = arith.constant 0 : index
    %138 = vector.load %arg6[%c0_156, %c0_157] : memref<16x1024xf32, #tpu.memory_space<vmem>>, vector<16x1024xf32>
    %139 = arith.truncf %138 : vector<16x1024xf32> to vector<16x1024xbf16>
    %140 = vector.extract_strided_slice %139 {offsets = [0, 109], sizes = [16, 768], strides = [1, 1]} : vector<16x1024xbf16> to vector<16x768xbf16>
    %c0_158 = arith.constant 0 : index
    %c0_159 = arith.constant 0 : index
    %141 = vector.load %arg8[%c0_158, %c0_159] : memref<144x768xbf16, #tpu.memory_space<vmem>>, vector<16x768xbf16>
    tpu.vector_store %arg8[%c0_158, %c0_159], %140 {strides = array<i32>} : memref<144x768xbf16, #tpu.memory_space<vmem>>, vector<16x768xbf16>,
    %142 = vector.extract_strided_slice %139 {offsets = [0, 110], sizes = [16, 768], strides = [1, 1]} : vector<16x1024xbf16> to vector<16x768xbf16>
    %c16_160 = arith.constant 16 : index
    %c0_161 = arith.constant 0 : index
    %143 = vector.load %arg8[%c16_160, %c0_161] : memref<144x768xbf16, #tpu.memory_space<vmem>>, vector<16x768xbf16>
    tpu.vector_store %arg8[%c16_160, %c0_161], %142 {strides = array<i32>} : memref<144x768xbf16, #tpu.memory_space<vmem>>, vector<16x768xbf16>,
    %144 = vector.extract_strided_slice %139 {offsets = [0, 111], sizes = [16, 768], strides = [1, 1]} : vector<16x1024xbf16> to vector<16x768xbf16>
    %c32_162 = arith.constant 32 : index
    %c0_163 = arith.constant 0 : index
    %145 = vector.load %arg8[%c32_162, %c0_163] : memref<144x768xbf16, #tpu.memory_space<vmem>>, vector<16x768xbf16>
    tpu.vector_store %arg8[%c32_162, %c0_163], %144 {strides = array<i32>} : memref<144x768xbf16, #tpu.memory_space<vmem>>, vector<16x768xbf16>,
    %146 = vector.extract_strided_slice %139 {offsets = [0, 127], sizes = [16, 768], strides = [1, 1]} : vector<16x1024xbf16> to vector<16x768xbf16>
    %c48_164 = arith.constant 48 : index
    %c0_165 = arith.constant 0 : index
    %147 = vector.load %arg8[%c48_164, %c0_165] : memref<144x768xbf16, #tpu.memory_space<vmem>>, vector<16x768xbf16>
    tpu.vector_store %arg8[%c48_164, %c0_165], %146 {strides = array<i32>} : memref<144x768xbf16, #tpu.memory_space<vmem>>, vector<16x768xbf16>,
    %148 = vector.extract_strided_slice %139 {offsets = [0, 128], sizes = [16, 768], strides = [1, 1]} : vector<16x1024xbf16> to vector<16x768xbf16>
    %c64_166 = arith.constant 64 : index
    %c0_167 = arith.constant 0 : index
    %149 = vector.load %arg8[%c64_166, %c0_167] : memref<144x768xbf16, #tpu.memory_space<vmem>>, vector<16x768xbf16>
    tpu.vector_store %arg8[%c64_166, %c0_167], %148 {strides = array<i32>} : memref<144x768xbf16, #tpu.memory_space<vmem>>, vector<16x768xbf16>,
    %150 = vector.extract_strided_slice %139 {offsets = [0, 129], sizes = [16, 768], strides = [1, 1]} : vector<16x1024xbf16> to vector<16x768xbf16>
    %c80_168 = arith.constant 80 : index
    %c0_169 = arith.constant 0 : index
    %151 = vector.load %arg8[%c80_168, %c0_169] : memref<144x768xbf16, #tpu.memory_space<vmem>>, vector<16x768xbf16>
    tpu.vector_store %arg8[%c80_168, %c0_169], %150 {strides = array<i32>} : memref<144x768xbf16, #tpu.memory_space<vmem>>, vector<16x768xbf16>,
    %152 = vector.extract_strided_slice %139 {offsets = [0, 145], sizes = [16, 768], strides = [1, 1]} : vector<16x1024xbf16> to vector<16x768xbf16>
    %c96_170 = arith.constant 96 : index
    %c0_171 = arith.constant 0 : index
    %153 = vector.load %arg8[%c96_170, %c0_171] : memref<144x768xbf16, #tpu.memory_space<vmem>>, vector<16x768xbf16>
    tpu.vector_store %arg8[%c96_170, %c0_171], %152 {strides = array<i32>} : memref<144x768xbf16, #tpu.memory_space<vmem>>, vector<16x768xbf16>,
    %154 = vector.extract_strided_slice %139 {offsets = [0, 146], sizes = [16, 768], strides = [1, 1]} : vector<16x1024xbf16> to vector<16x768xbf16>
    %c112_172 = arith.constant 112 : index
    %c0_173 = arith.constant 0 : index
    %155 = vector.load %arg8[%c112_172, %c0_173] : memref<144x768xbf16, #tpu.memory_space<vmem>>, vector<16x768xbf16>
    tpu.vector_store %arg8[%c112_172, %c0_173], %154 {strides = array<i32>} : memref<144x768xbf16, #tpu.memory_space<vmem>>, vector<16x768xbf16>,
    %156 = vector.extract_strided_slice %139 {offsets = [0, 147], sizes = [16, 768], strides = [1, 1]} : vector<16x1024xbf16> to vector<16x768xbf16>
    %c128_174 = arith.constant 128 : index
    %c0_175 = arith.constant 0 : index
    %157 = vector.load %arg8[%c128_174, %c0_175] : memref<144x768xbf16, #tpu.memory_space<vmem>>, vector<16x768xbf16>
    tpu.vector_store %arg8[%c128_174, %c0_175], %156 {strides = array<i32>} : memref<144x768xbf16, #tpu.memory_space<vmem>>, vector<16x768xbf16>,
    %c1_176 = arith.constant 1 : index
    %c0_177 = arith.constant 0 : index
    %c0_178 = arith.constant 0 : index
    %158 = vector.load %arg1[%c1_176, %c0_177, %c0_178] : memref<5x16x144xbf16, #tpu.memory_space<vmem>>, vector<1x16x144xbf16>
    %159 = vector.shape_cast %158 : vector<1x16x144xbf16> to vector<16x144xbf16>
    %c0_179 = arith.constant 0 : index
    %c0_180 = arith.constant 0 : index
    %160 = vector.load %arg8[%c0_179, %c0_180] : memref<144x768xbf16, #tpu.memory_space<vmem>>, vector<144x768xbf16>
    %cst_181 = arith.constant dense<0.000000e+00> : vector<16x768xf32>
    %161 = tpu.matmul %159, %160, %cst_181 {dimension_numbers = #tpu.dot_dimension_numbers<[1], [0], [0], [1], [0, 0, 1, 1], [], []>} : vector<16x144xbf16>, vector<144x768xbf16>, vector<16x768xf32> -> vector<16x768xf32>
    %c1_182 = arith.constant 1 : index
    %c0_183 = arith.constant 0 : index
    %c0_184 = arith.constant 0 : index
    %162 = vector.load %arg2[%c1_182, %c0_183, %c0_184] : memref<5x16x1xf32, #tpu.memory_space<vmem>>, vector<1x16x1xf32>
    %163 = vector.shape_cast %162 : vector<1x16x1xf32> to vector<16x1xf32>
    %164 = vector.broadcast %163 : vector<16x1xf32> to vector<16x768xf32>
    %165 = arith.addf %161, %164 : vector<16x768xf32>
    %cst_185 = arith.constant 0.000000e+00 : f32
    %166 = vector.broadcast %cst_185 : f32 to vector<16x768xf32>
    %167 = arith.maximumf %165, %166 : vector<16x768xf32>
    %c0_186 = arith.constant 0 : index
    %c0_187 = arith.constant 0 : index
    %168 = vector.load %arg3[%c0_186, %c0_187] : memref<1x768xf32, #tpu.memory_space<vmem>>, vector<1x768xf32>
    %169 = vector.broadcast %168 : vector<1x768xf32> to vector<16x768xf32>
    %170 = arith.mulf %167, %169 : vector<16x768xf32>
    %c0_188 = arith.constant 0 : index
    %c128_189 = arith.constant 128 : index
    %171 = vector.load %arg7[%c0_188, %c128_189] : memref<16x1024xf32, #tpu.memory_space<vmem>>, vector<16x768xf32>
    tpu.vector_store %arg7[%c0_188, %c128_189], %170 {strides = array<i32>} : memref<16x1024xf32, #tpu.memory_space<vmem>>, vector<16x768xf32>,
    %c0_190 = arith.constant 0 : index
    %c0_191 = arith.constant 0 : index
    %172 = vector.load %arg7[%c0_190, %c0_191] : memref<16x1024xf32, #tpu.memory_space<vmem>>, vector<16x1024xf32>
    %173 = arith.truncf %172 : vector<16x1024xf32> to vector<16x1024xbf16>
    %174 = vector.extract_strided_slice %173 {offsets = [0, 109], sizes = [16, 768], strides = [1, 1]} : vector<16x1024xbf16> to vector<16x768xbf16>
    %c0_192 = arith.constant 0 : index
    %c0_193 = arith.constant 0 : index
    %175 = vector.load %arg8[%c0_192, %c0_193] : memref<144x768xbf16, #tpu.memory_space<vmem>>, vector<16x768xbf16>
    tpu.vector_store %arg8[%c0_192, %c0_193], %174 {strides = array<i32>} : memref<144x768xbf16, #tpu.memory_space<vmem>>, vector<16x768xbf16>,
    %176 = vector.extract_strided_slice %173 {offsets = [0, 110], sizes = [16, 768], strides = [1, 1]} : vector<16x1024xbf16> to vector<16x768xbf16>
    %c16_194 = arith.constant 16 : index
    %c0_195 = arith.constant 0 : index
    %177 = vector.load %arg8[%c16_194, %c0_195] : memref<144x768xbf16, #tpu.memory_space<vmem>>, vector<16x768xbf16>
    tpu.vector_store %arg8[%c16_194, %c0_195], %176 {strides = array<i32>} : memref<144x768xbf16, #tpu.memory_space<vmem>>, vector<16x768xbf16>,
    %178 = vector.extract_strided_slice %173 {offsets = [0, 111], sizes = [16, 768], strides = [1, 1]} : vector<16x1024xbf16> to vector<16x768xbf16>
    %c32_196 = arith.constant 32 : index
    %c0_197 = arith.constant 0 : index
    %179 = vector.load %arg8[%c32_196, %c0_197] : memref<144x768xbf16, #tpu.memory_space<vmem>>, vector<16x768xbf16>
    tpu.vector_store %arg8[%c32_196, %c0_197], %178 {strides = array<i32>} : memref<144x768xbf16, #tpu.memory_space<vmem>>, vector<16x768xbf16>,
    %180 = vector.extract_strided_slice %173 {offsets = [0, 127], sizes = [16, 768], strides = [1, 1]} : vector<16x1024xbf16> to vector<16x768xbf16>
    %c48_198 = arith.constant 48 : index
    %c0_199 = arith.constant 0 : index
    %181 = vector.load %arg8[%c48_198, %c0_199] : memref<144x768xbf16, #tpu.memory_space<vmem>>, vector<16x768xbf16>
    tpu.vector_store %arg8[%c48_198, %c0_199], %180 {strides = array<i32>} : memref<144x768xbf16, #tpu.memory_space<vmem>>, vector<16x768xbf16>,
    %182 = vector.extract_strided_slice %173 {offsets = [0, 128], sizes = [16, 768], strides = [1, 1]} : vector<16x1024xbf16> to vector<16x768xbf16>
    %c64_200 = arith.constant 64 : index
    %c0_201 = arith.constant 0 : index
    %183 = vector.load %arg8[%c64_200, %c0_201] : memref<144x768xbf16, #tpu.memory_space<vmem>>, vector<16x768xbf16>
    tpu.vector_store %arg8[%c64_200, %c0_201], %182 {strides = array<i32>} : memref<144x768xbf16, #tpu.memory_space<vmem>>, vector<16x768xbf16>,
    %184 = vector.extract_strided_slice %173 {offsets = [0, 129], sizes = [16, 768], strides = [1, 1]} : vector<16x1024xbf16> to vector<16x768xbf16>
    %c80_202 = arith.constant 80 : index
    %c0_203 = arith.constant 0 : index
    %185 = vector.load %arg8[%c80_202, %c0_203] : memref<144x768xbf16, #tpu.memory_space<vmem>>, vector<16x768xbf16>
    tpu.vector_store %arg8[%c80_202, %c0_203], %184 {strides = array<i32>} : memref<144x768xbf16, #tpu.memory_space<vmem>>, vector<16x768xbf16>,
    %186 = vector.extract_strided_slice %173 {offsets = [0, 145], sizes = [16, 768], strides = [1, 1]} : vector<16x1024xbf16> to vector<16x768xbf16>
    %c96_204 = arith.constant 96 : index
    %c0_205 = arith.constant 0 : index
    %187 = vector.load %arg8[%c96_204, %c0_205] : memref<144x768xbf16, #tpu.memory_space<vmem>>, vector<16x768xbf16>
    tpu.vector_store %arg8[%c96_204, %c0_205], %186 {strides = array<i32>} : memref<144x768xbf16, #tpu.memory_space<vmem>>, vector<16x768xbf16>,
    %188 = vector.extract_strided_slice %173 {offsets = [0, 146], sizes = [16, 768], strides = [1, 1]} : vector<16x1024xbf16> to vector<16x768xbf16>
    %c112_206 = arith.constant 112 : index
    %c0_207 = arith.constant 0 : index
    %189 = vector.load %arg8[%c112_206, %c0_207] : memref<144x768xbf16, #tpu.memory_space<vmem>>, vector<16x768xbf16>
    tpu.vector_store %arg8[%c112_206, %c0_207], %188 {strides = array<i32>} : memref<144x768xbf16, #tpu.memory_space<vmem>>, vector<16x768xbf16>,
    %190 = vector.extract_strided_slice %173 {offsets = [0, 147], sizes = [16, 768], strides = [1, 1]} : vector<16x1024xbf16> to vector<16x768xbf16>
    %c128_208 = arith.constant 128 : index
    %c0_209 = arith.constant 0 : index
    %191 = vector.load %arg8[%c128_208, %c0_209] : memref<144x768xbf16, #tpu.memory_space<vmem>>, vector<16x768xbf16>
    tpu.vector_store %arg8[%c128_208, %c0_209], %190 {strides = array<i32>} : memref<144x768xbf16, #tpu.memory_space<vmem>>, vector<16x768xbf16>,
    %c2 = arith.constant 2 : index
    %c0_210 = arith.constant 0 : index
    %c0_211 = arith.constant 0 : index
    %192 = vector.load %arg1[%c2, %c0_210, %c0_211] : memref<5x16x144xbf16, #tpu.memory_space<vmem>>, vector<1x16x144xbf16>
    %193 = vector.shape_cast %192 : vector<1x16x144xbf16> to vector<16x144xbf16>
    %c0_212 = arith.constant 0 : index
    %c0_213 = arith.constant 0 : index
    %194 = vector.load %arg8[%c0_212, %c0_213] : memref<144x768xbf16, #tpu.memory_space<vmem>>, vector<144x768xbf16>
    %cst_214 = arith.constant dense<0.000000e+00> : vector<16x768xf32>
    %195 = tpu.matmul %193, %194, %cst_214 {dimension_numbers = #tpu.dot_dimension_numbers<[1], [0], [0], [1], [0, 0, 1, 1], [], []>} : vector<16x144xbf16>, vector<144x768xbf16>, vector<16x768xf32> -> vector<16x768xf32>
    %c2_215 = arith.constant 2 : index
    %c0_216 = arith.constant 0 : index
    %c0_217 = arith.constant 0 : index
    %196 = vector.load %arg2[%c2_215, %c0_216, %c0_217] : memref<5x16x1xf32, #tpu.memory_space<vmem>>, vector<1x16x1xf32>
    %197 = vector.shape_cast %196 : vector<1x16x1xf32> to vector<16x1xf32>
    %198 = vector.broadcast %197 : vector<16x1xf32> to vector<16x768xf32>
    %199 = arith.addf %195, %198 : vector<16x768xf32>
    %c0_218 = arith.constant 0 : index
    %c128_219 = arith.constant 128 : index
    %200 = vector.load %arg6[%c0_218, %c128_219] : memref<16x1024xf32, #tpu.memory_space<vmem>>, vector<16x768xf32>
    %201 = arith.addf %199, %200 : vector<16x768xf32>
    %cst_220 = arith.constant 0.000000e+00 : f32
    %202 = vector.broadcast %cst_220 : f32 to vector<16x768xf32>
    %203 = arith.maximumf %201, %202 : vector<16x768xf32>
    %c0_221 = arith.constant 0 : index
    %c0_222 = arith.constant 0 : index
    %204 = vector.load %arg3[%c0_221, %c0_222] : memref<1x768xf32, #tpu.memory_space<vmem>>, vector<1x768xf32>
    %205 = vector.broadcast %204 : vector<1x768xf32> to vector<16x768xf32>
    %206 = arith.mulf %203, %205 : vector<16x768xf32>
    %c0_223 = arith.constant 0 : index
    %c128_224 = arith.constant 128 : index
    %207 = vector.load %arg6[%c0_223, %c128_224] : memref<16x1024xf32, #tpu.memory_space<vmem>>, vector<16x768xf32>
    tpu.vector_store %arg6[%c0_223, %c128_224], %206 {strides = array<i32>} : memref<16x1024xf32, #tpu.memory_space<vmem>>, vector<16x768xf32>,
    %c0_225 = arith.constant 0 : index
    %c0_226 = arith.constant 0 : index
    %208 = vector.load %arg6[%c0_225, %c0_226] : memref<16x1024xf32, #tpu.memory_space<vmem>>, vector<16x1024xf32>
    %209 = arith.truncf %208 : vector<16x1024xf32> to vector<16x1024xbf16>
    %210 = vector.extract_strided_slice %209 {offsets = [0, 109], sizes = [16, 768], strides = [1, 1]} : vector<16x1024xbf16> to vector<16x768xbf16>
    %c0_227 = arith.constant 0 : index
    %c0_228 = arith.constant 0 : index
    %211 = vector.load %arg8[%c0_227, %c0_228] : memref<144x768xbf16, #tpu.memory_space<vmem>>, vector<16x768xbf16>
    tpu.vector_store %arg8[%c0_227, %c0_228], %210 {strides = array<i32>} : memref<144x768xbf16, #tpu.memory_space<vmem>>, vector<16x768xbf16>,
    %212 = vector.extract_strided_slice %209 {offsets = [0, 110], sizes = [16, 768], strides = [1, 1]} : vector<16x1024xbf16> to vector<16x768xbf16>
    %c16_229 = arith.constant 16 : index
    %c0_230 = arith.constant 0 : index
    %213 = vector.load %arg8[%c16_229, %c0_230] : memref<144x768xbf16, #tpu.memory_space<vmem>>, vector<16x768xbf16>
    tpu.vector_store %arg8[%c16_229, %c0_230], %212 {strides = array<i32>} : memref<144x768xbf16, #tpu.memory_space<vmem>>, vector<16x768xbf16>,
    %214 = vector.extract_strided_slice %209 {offsets = [0, 111], sizes = [16, 768], strides = [1, 1]} : vector<16x1024xbf16> to vector<16x768xbf16>
    %c32_231 = arith.constant 32 : index
    %c0_232 = arith.constant 0 : index
    %215 = vector.load %arg8[%c32_231, %c0_232] : memref<144x768xbf16, #tpu.memory_space<vmem>>, vector<16x768xbf16>
    tpu.vector_store %arg8[%c32_231, %c0_232], %214 {strides = array<i32>} : memref<144x768xbf16, #tpu.memory_space<vmem>>, vector<16x768xbf16>,
    %216 = vector.extract_strided_slice %209 {offsets = [0, 127], sizes = [16, 768], strides = [1, 1]} : vector<16x1024xbf16> to vector<16x768xbf16>
    %c48_233 = arith.constant 48 : index
    %c0_234 = arith.constant 0 : index
    %217 = vector.load %arg8[%c48_233, %c0_234] : memref<144x768xbf16, #tpu.memory_space<vmem>>, vector<16x768xbf16>
    tpu.vector_store %arg8[%c48_233, %c0_234], %216 {strides = array<i32>} : memref<144x768xbf16, #tpu.memory_space<vmem>>, vector<16x768xbf16>,
    %218 = vector.extract_strided_slice %209 {offsets = [0, 128], sizes = [16, 768], strides = [1, 1]} : vector<16x1024xbf16> to vector<16x768xbf16>
    %c64_235 = arith.constant 64 : index
    %c0_236 = arith.constant 0 : index
    %219 = vector.load %arg8[%c64_235, %c0_236] : memref<144x768xbf16, #tpu.memory_space<vmem>>, vector<16x768xbf16>
    tpu.vector_store %arg8[%c64_235, %c0_236], %218 {strides = array<i32>} : memref<144x768xbf16, #tpu.memory_space<vmem>>, vector<16x768xbf16>,
    %220 = vector.extract_strided_slice %209 {offsets = [0, 129], sizes = [16, 768], strides = [1, 1]} : vector<16x1024xbf16> to vector<16x768xbf16>
    %c80_237 = arith.constant 80 : index
    %c0_238 = arith.constant 0 : index
    %221 = vector.load %arg8[%c80_237, %c0_238] : memref<144x768xbf16, #tpu.memory_space<vmem>>, vector<16x768xbf16>
    tpu.vector_store %arg8[%c80_237, %c0_238], %220 {strides = array<i32>} : memref<144x768xbf16, #tpu.memory_space<vmem>>, vector<16x768xbf16>,
    %222 = vector.extract_strided_slice %209 {offsets = [0, 145], sizes = [16, 768], strides = [1, 1]} : vector<16x1024xbf16> to vector<16x768xbf16>
    %c96_239 = arith.constant 96 : index
    %c0_240 = arith.constant 0 : index
    %223 = vector.load %arg8[%c96_239, %c0_240] : memref<144x768xbf16, #tpu.memory_space<vmem>>, vector<16x768xbf16>
    tpu.vector_store %arg8[%c96_239, %c0_240], %222 {strides = array<i32>} : memref<144x768xbf16, #tpu.memory_space<vmem>>, vector<16x768xbf16>,
    %224 = vector.extract_strided_slice %209 {offsets = [0, 146], sizes = [16, 768], strides = [1, 1]} : vector<16x1024xbf16> to vector<16x768xbf16>
    %c112_241 = arith.constant 112 : index
    %c0_242 = arith.constant 0 : index
    %225 = vector.load %arg8[%c112_241, %c0_242] : memref<144x768xbf16, #tpu.memory_space<vmem>>, vector<16x768xbf16>
    tpu.vector_store %arg8[%c112_241, %c0_242], %224 {strides = array<i32>} : memref<144x768xbf16, #tpu.memory_space<vmem>>, vector<16x768xbf16>,
    %226 = vector.extract_strided_slice %209 {offsets = [0, 147], sizes = [16, 768], strides = [1, 1]} : vector<16x1024xbf16> to vector<16x768xbf16>
    %c128_243 = arith.constant 128 : index
    %c0_244 = arith.constant 0 : index
    %227 = vector.load %arg8[%c128_243, %c0_244] : memref<144x768xbf16, #tpu.memory_space<vmem>>, vector<16x768xbf16>
    tpu.vector_store %arg8[%c128_243, %c0_244], %226 {strides = array<i32>} : memref<144x768xbf16, #tpu.memory_space<vmem>>, vector<16x768xbf16>,
    %c3 = arith.constant 3 : index
    %c0_245 = arith.constant 0 : index
    %c0_246 = arith.constant 0 : index
    %228 = vector.load %arg1[%c3, %c0_245, %c0_246] : memref<5x16x144xbf16, #tpu.memory_space<vmem>>, vector<1x16x144xbf16>
    %229 = vector.shape_cast %228 : vector<1x16x144xbf16> to vector<16x144xbf16>
    %c0_247 = arith.constant 0 : index
    %c0_248 = arith.constant 0 : index
    %230 = vector.load %arg8[%c0_247, %c0_248] : memref<144x768xbf16, #tpu.memory_space<vmem>>, vector<144x768xbf16>
    %cst_249 = arith.constant dense<0.000000e+00> : vector<16x768xf32>
    %231 = tpu.matmul %229, %230, %cst_249 {dimension_numbers = #tpu.dot_dimension_numbers<[1], [0], [0], [1], [0, 0, 1, 1], [], []>} : vector<16x144xbf16>, vector<144x768xbf16>, vector<16x768xf32> -> vector<16x768xf32>
    %c3_250 = arith.constant 3 : index
    %c0_251 = arith.constant 0 : index
    %c0_252 = arith.constant 0 : index
    %232 = vector.load %arg2[%c3_250, %c0_251, %c0_252] : memref<5x16x1xf32, #tpu.memory_space<vmem>>, vector<1x16x1xf32>
    %233 = vector.shape_cast %232 : vector<1x16x1xf32> to vector<16x1xf32>
    %234 = vector.broadcast %233 : vector<16x1xf32> to vector<16x768xf32>
    %235 = arith.addf %231, %234 : vector<16x768xf32>
    %cst_253 = arith.constant 0.000000e+00 : f32
    %236 = vector.broadcast %cst_253 : f32 to vector<16x768xf32>
    %237 = arith.maximumf %235, %236 : vector<16x768xf32>
    %c0_254 = arith.constant 0 : index
    %c0_255 = arith.constant 0 : index
    %238 = vector.load %arg3[%c0_254, %c0_255] : memref<1x768xf32, #tpu.memory_space<vmem>>, vector<1x768xf32>
    %239 = vector.broadcast %238 : vector<1x768xf32> to vector<16x768xf32>
    %240 = arith.mulf %237, %239 : vector<16x768xf32>
    %c0_256 = arith.constant 0 : index
    %c128_257 = arith.constant 128 : index
    %241 = vector.load %arg7[%c0_256, %c128_257] : memref<16x1024xf32, #tpu.memory_space<vmem>>, vector<16x768xf32>
    tpu.vector_store %arg7[%c0_256, %c128_257], %240 {strides = array<i32>} : memref<16x1024xf32, #tpu.memory_space<vmem>>, vector<16x768xf32>,
    %c0_258 = arith.constant 0 : index
    %c0_259 = arith.constant 0 : index
    %242 = vector.load %arg7[%c0_258, %c0_259] : memref<16x1024xf32, #tpu.memory_space<vmem>>, vector<16x1024xf32>
    %243 = arith.truncf %242 : vector<16x1024xf32> to vector<16x1024xbf16>
    %244 = vector.extract_strided_slice %243 {offsets = [0, 109], sizes = [16, 768], strides = [1, 1]} : vector<16x1024xbf16> to vector<16x768xbf16>
    %c0_260 = arith.constant 0 : index
    %c0_261 = arith.constant 0 : index
    %245 = vector.load %arg8[%c0_260, %c0_261] : memref<144x768xbf16, #tpu.memory_space<vmem>>, vector<16x768xbf16>
    tpu.vector_store %arg8[%c0_260, %c0_261], %244 {strides = array<i32>} : memref<144x768xbf16, #tpu.memory_space<vmem>>, vector<16x768xbf16>,
    %246 = vector.extract_strided_slice %243 {offsets = [0, 110], sizes = [16, 768], strides = [1, 1]} : vector<16x1024xbf16> to vector<16x768xbf16>
    %c16_262 = arith.constant 16 : index
    %c0_263 = arith.constant 0 : index
    %247 = vector.load %arg8[%c16_262, %c0_263] : memref<144x768xbf16, #tpu.memory_space<vmem>>, vector<16x768xbf16>
    tpu.vector_store %arg8[%c16_262, %c0_263], %246 {strides = array<i32>} : memref<144x768xbf16, #tpu.memory_space<vmem>>, vector<16x768xbf16>,
    %248 = vector.extract_strided_slice %243 {offsets = [0, 111], sizes = [16, 768], strides = [1, 1]} : vector<16x1024xbf16> to vector<16x768xbf16>
    %c32_264 = arith.constant 32 : index
    %c0_265 = arith.constant 0 : index
    %249 = vector.load %arg8[%c32_264, %c0_265] : memref<144x768xbf16, #tpu.memory_space<vmem>>, vector<16x768xbf16>
    tpu.vector_store %arg8[%c32_264, %c0_265], %248 {strides = array<i32>} : memref<144x768xbf16, #tpu.memory_space<vmem>>, vector<16x768xbf16>,
    %250 = vector.extract_strided_slice %243 {offsets = [0, 127], sizes = [16, 768], strides = [1, 1]} : vector<16x1024xbf16> to vector<16x768xbf16>
    %c48_266 = arith.constant 48 : index
    %c0_267 = arith.constant 0 : index
    %251 = vector.load %arg8[%c48_266, %c0_267] : memref<144x768xbf16, #tpu.memory_space<vmem>>, vector<16x768xbf16>
    tpu.vector_store %arg8[%c48_266, %c0_267], %250 {strides = array<i32>} : memref<144x768xbf16, #tpu.memory_space<vmem>>, vector<16x768xbf16>,
    %252 = vector.extract_strided_slice %243 {offsets = [0, 128], sizes = [16, 768], strides = [1, 1]} : vector<16x1024xbf16> to vector<16x768xbf16>
    %c64_268 = arith.constant 64 : index
    %c0_269 = arith.constant 0 : index
    %253 = vector.load %arg8[%c64_268, %c0_269] : memref<144x768xbf16, #tpu.memory_space<vmem>>, vector<16x768xbf16>
    tpu.vector_store %arg8[%c64_268, %c0_269], %252 {strides = array<i32>} : memref<144x768xbf16, #tpu.memory_space<vmem>>, vector<16x768xbf16>,
    %254 = vector.extract_strided_slice %243 {offsets = [0, 129], sizes = [16, 768], strides = [1, 1]} : vector<16x1024xbf16> to vector<16x768xbf16>
    %c80_270 = arith.constant 80 : index
    %c0_271 = arith.constant 0 : index
    %255 = vector.load %arg8[%c80_270, %c0_271] : memref<144x768xbf16, #tpu.memory_space<vmem>>, vector<16x768xbf16>
    tpu.vector_store %arg8[%c80_270, %c0_271], %254 {strides = array<i32>} : memref<144x768xbf16, #tpu.memory_space<vmem>>, vector<16x768xbf16>,
    %256 = vector.extract_strided_slice %243 {offsets = [0, 145], sizes = [16, 768], strides = [1, 1]} : vector<16x1024xbf16> to vector<16x768xbf16>
    %c96_272 = arith.constant 96 : index
    %c0_273 = arith.constant 0 : index
    %257 = vector.load %arg8[%c96_272, %c0_273] : memref<144x768xbf16, #tpu.memory_space<vmem>>, vector<16x768xbf16>
    tpu.vector_store %arg8[%c96_272, %c0_273], %256 {strides = array<i32>} : memref<144x768xbf16, #tpu.memory_space<vmem>>, vector<16x768xbf16>,
    %258 = vector.extract_strided_slice %243 {offsets = [0, 146], sizes = [16, 768], strides = [1, 1]} : vector<16x1024xbf16> to vector<16x768xbf16>
    %c112_274 = arith.constant 112 : index
    %c0_275 = arith.constant 0 : index
    %259 = vector.load %arg8[%c112_274, %c0_275] : memref<144x768xbf16, #tpu.memory_space<vmem>>, vector<16x768xbf16>
    tpu.vector_store %arg8[%c112_274, %c0_275], %258 {strides = array<i32>} : memref<144x768xbf16, #tpu.memory_space<vmem>>, vector<16x768xbf16>,
    %260 = vector.extract_strided_slice %243 {offsets = [0, 147], sizes = [16, 768], strides = [1, 1]} : vector<16x1024xbf16> to vector<16x768xbf16>
    %c128_276 = arith.constant 128 : index
    %c0_277 = arith.constant 0 : index
    %261 = vector.load %arg8[%c128_276, %c0_277] : memref<144x768xbf16, #tpu.memory_space<vmem>>, vector<16x768xbf16>
    tpu.vector_store %arg8[%c128_276, %c0_277], %260 {strides = array<i32>} : memref<144x768xbf16, #tpu.memory_space<vmem>>, vector<16x768xbf16>,
    %c4 = arith.constant 4 : index
    %c0_278 = arith.constant 0 : index
    %c0_279 = arith.constant 0 : index
    %262 = vector.load %arg1[%c4, %c0_278, %c0_279] : memref<5x16x144xbf16, #tpu.memory_space<vmem>>, vector<1x16x144xbf16>
    %263 = vector.shape_cast %262 : vector<1x16x144xbf16> to vector<16x144xbf16>
    %c0_280 = arith.constant 0 : index
    %c0_281 = arith.constant 0 : index
    %264 = vector.load %arg8[%c0_280, %c0_281] : memref<144x768xbf16, #tpu.memory_space<vmem>>, vector<144x768xbf16>
    %cst_282 = arith.constant dense<0.000000e+00> : vector<16x768xf32>
    %265 = tpu.matmul %263, %264, %cst_282 {dimension_numbers = #tpu.dot_dimension_numbers<[1], [0], [0], [1], [0, 0, 1, 1], [], []>} : vector<16x144xbf16>, vector<144x768xbf16>, vector<16x768xf32> -> vector<16x768xf32>
    %c4_283 = arith.constant 4 : index
    %c0_284 = arith.constant 0 : index
    %c0_285 = arith.constant 0 : index
    %266 = vector.load %arg2[%c4_283, %c0_284, %c0_285] : memref<5x16x1xf32, #tpu.memory_space<vmem>>, vector<1x16x1xf32>
    %267 = vector.shape_cast %266 : vector<1x16x1xf32> to vector<16x1xf32>
    %268 = vector.broadcast %267 : vector<16x1xf32> to vector<16x768xf32>
    %269 = arith.addf %265, %268 : vector<16x768xf32>
    %c0_286 = arith.constant 0 : index
    %c128_287 = arith.constant 128 : index
    %270 = vector.load %arg6[%c0_286, %c128_287] : memref<16x1024xf32, #tpu.memory_space<vmem>>, vector<16x768xf32>
    %271 = arith.addf %269, %270 : vector<16x768xf32>
    %cst_288 = arith.constant 0.000000e+00 : f32
    %272 = vector.broadcast %cst_288 : f32 to vector<16x768xf32>
    %273 = arith.maximumf %271, %272 : vector<16x768xf32>
    %c0_289 = arith.constant 0 : index
    %c0_290 = arith.constant 0 : index
    %274 = vector.load %arg3[%c0_289, %c0_290] : memref<1x768xf32, #tpu.memory_space<vmem>>, vector<1x768xf32>
    %275 = vector.broadcast %274 : vector<1x768xf32> to vector<16x768xf32>
    %276 = arith.mulf %273, %275 : vector<16x768xf32>
    %c0_291 = arith.constant 0 : index
    %c128_292 = arith.constant 128 : index
    %277 = vector.load %arg6[%c0_291, %c128_292] : memref<16x1024xf32, #tpu.memory_space<vmem>>, vector<16x768xf32>
    tpu.vector_store %arg6[%c0_291, %c128_292], %276 {strides = array<i32>} : memref<16x1024xf32, #tpu.memory_space<vmem>>, vector<16x768xf32>,
    %c0_293 = arith.constant 0 : index
    %c147_294 = arith.constant 147 : index
    %278 = vector.load %arg6[%c0_293, %c147_294] : memref<16x1024xf32, #tpu.memory_space<vmem>>, vector<16x16xf32>
    %c0_295 = arith.constant 0 : index
    %c0_296 = arith.constant 0 : index
    %c0_297 = arith.constant 0 : index
    %279 = vector.load %arg4[%c0_295, %c0_296, %c0_297] : memref<2x16x256xf32, #tpu.memory_space<vmem>>, vector<1x16x16xf32>
    %280 = vector.shape_cast %279 : vector<1x16x16xf32> to vector<16x16xf32>
    %281 = vector.shape_cast %278 : vector<16x16xf32> to vector<1x16x16xf32>
    tpu.vector_store %arg4[%c0_295, %c0_296, %c0_297], %281 {strides = array<i32>} : memref<2x16x256xf32, #tpu.memory_space<vmem>>, vector<1x16x16xf32>,
    %c0_298 = arith.constant 0 : index
    %c165_299 = arith.constant 165 : index
    %282 = vector.load %arg6[%c0_298, %c165_299] : memref<16x1024xf32, #tpu.memory_space<vmem>>, vector<16x16xf32>
    %c0_300 = arith.constant 0 : index
    %c0_301 = arith.constant 0 : index
    %c16_302 = arith.constant 16 : index
    %283 = vector.load %arg4[%c0_300, %c0_301, %c16_302] : memref<2x16x256xf32, #tpu.memory_space<vmem>>, vector<1x16x16xf32>
    %284 = vector.shape_cast %283 : vector<1x16x16xf32> to vector<16x16xf32>
    %285 = vector.shape_cast %282 : vector<16x16xf32> to vector<1x16x16xf32>
    tpu.vector_store %arg4[%c0_300, %c0_301, %c16_302], %285 {strides = array<i32>} : memref<2x16x256xf32, #tpu.memory_space<vmem>>, vector<1x16x16xf32>,
    %c0_303 = arith.constant 0 : index
    %c183_304 = arith.constant 183 : index
    %286 = vector.load %arg6[%c0_303, %c183_304] : memref<16x1024xf32, #tpu.memory_space<vmem>>, vector<16x16xf32>
    %c0_305 = arith.constant 0 : index
    %c0_306 = arith.constant 0 : index
    %c32_307 = arith.constant 32 : index
    %287 = vector.load %arg4[%c0_305, %c0_306, %c32_307] : memref<2x16x256xf32, #tpu.memory_space<vmem>>, vector<1x16x16xf32>
    %288 = vector.shape_cast %287 : vector<1x16x16xf32> to vector<16x16xf32>
    %289 = vector.shape_cast %286 : vector<16x16xf32> to vector<1x16x16xf32>
    tpu.vector_store %arg4[%c0_305, %c0_306, %c32_307], %289 {strides = array<i32>} : memref<2x16x256xf32, #tpu.memory_space<vmem>>, vector<1x16x16xf32>,
    %c0_308 = arith.constant 0 : index
    %c201_309 = arith.constant 201 : index
    %290 = vector.load %arg6[%c0_308, %c201_309] : memref<16x1024xf32, #tpu.memory_space<vmem>>, vector<16x16xf32>
    %c0_310 = arith.constant 0 : index
    %c0_311 = arith.constant 0 : index
    %c48_312 = arith.constant 48 : index
    %291 = vector.load %arg4[%c0_310, %c0_311, %c48_312] : memref<2x16x256xf32, #tpu.memory_space<vmem>>, vector<1x16x16xf32>
    %292 = vector.shape_cast %291 : vector<1x16x16xf32> to vector<16x16xf32>
    %293 = vector.shape_cast %290 : vector<16x16xf32> to vector<1x16x16xf32>
    tpu.vector_store %arg4[%c0_310, %c0_311, %c48_312], %293 {strides = array<i32>} : memref<2x16x256xf32, #tpu.memory_space<vmem>>, vector<1x16x16xf32>,
    %c0_313 = arith.constant 0 : index
    %c219_314 = arith.constant 219 : index
    %294 = vector.load %arg6[%c0_313, %c219_314] : memref<16x1024xf32, #tpu.memory_space<vmem>>, vector<16x16xf32>
    %c0_315 = arith.constant 0 : index
    %c0_316 = arith.constant 0 : index
    %c64_317 = arith.constant 64 : index
    %295 = vector.load %arg4[%c0_315, %c0_316, %c64_317] : memref<2x16x256xf32, #tpu.memory_space<vmem>>, vector<1x16x16xf32>
    %296 = vector.shape_cast %295 : vector<1x16x16xf32> to vector<16x16xf32>
    %297 = vector.shape_cast %294 : vector<16x16xf32> to vector<1x16x16xf32>
    tpu.vector_store %arg4[%c0_315, %c0_316, %c64_317], %297 {strides = array<i32>} : memref<2x16x256xf32, #tpu.memory_space<vmem>>, vector<1x16x16xf32>,
    %c0_318 = arith.constant 0 : index
    %c237_319 = arith.constant 237 : index
    %298 = vector.load %arg6[%c0_318, %c237_319] : memref<16x1024xf32, #tpu.memory_space<vmem>>, vector<16x16xf32>
    %c0_320 = arith.constant 0 : index
    %c0_321 = arith.constant 0 : index
    %c80_322 = arith.constant 80 : index
    %299 = vector.load %arg4[%c0_320, %c0_321, %c80_322] : memref<2x16x256xf32, #tpu.memory_space<vmem>>, vector<1x16x16xf32>
    %300 = vector.shape_cast %299 : vector<1x16x16xf32> to vector<16x16xf32>
    %301 = vector.shape_cast %298 : vector<16x16xf32> to vector<1x16x16xf32>
    tpu.vector_store %arg4[%c0_320, %c0_321, %c80_322], %301 {strides = array<i32>} : memref<2x16x256xf32, #tpu.memory_space<vmem>>, vector<1x16x16xf32>,
    %c0_323 = arith.constant 0 : index
    %c255_324 = arith.constant 255 : index
    %302 = vector.load %arg6[%c0_323, %c255_324] : memref<16x1024xf32, #tpu.memory_space<vmem>>, vector<16x16xf32>
    %c0_325 = arith.constant 0 : index
    %c0_326 = arith.constant 0 : index
    %c96_327 = arith.constant 96 : index
    %303 = vector.load %arg4[%c0_325, %c0_326, %c96_327] : memref<2x16x256xf32, #tpu.memory_space<vmem>>, vector<1x16x16xf32>
    %304 = vector.shape_cast %303 : vector<1x16x16xf32> to vector<16x16xf32>
    %305 = vector.shape_cast %302 : vector<16x16xf32> to vector<1x16x16xf32>
    tpu.vector_store %arg4[%c0_325, %c0_326, %c96_327], %305 {strides = array<i32>} : memref<2x16x256xf32, #tpu.memory_space<vmem>>, vector<1x16x16xf32>,
    %c0_328 = arith.constant 0 : index
    %c273_329 = arith.constant 273 : index
    %306 = vector.load %arg6[%c0_328, %c273_329] : memref<16x1024xf32, #tpu.memory_space<vmem>>, vector<16x16xf32>
    %c0_330 = arith.constant 0 : index
    %c0_331 = arith.constant 0 : index
    %c112_332 = arith.constant 112 : index
    %307 = vector.load %arg4[%c0_330, %c0_331, %c112_332] : memref<2x16x256xf32, #tpu.memory_space<vmem>>, vector<1x16x16xf32>
    %308 = vector.shape_cast %307 : vector<1x16x16xf32> to vector<16x16xf32>
    %309 = vector.shape_cast %306 : vector<16x16xf32> to vector<1x16x16xf32>
    tpu.vector_store %arg4[%c0_330, %c0_331, %c112_332], %309 {strides = array<i32>} : memref<2x16x256xf32, #tpu.memory_space<vmem>>, vector<1x16x16xf32>,
    %c0_333 = arith.constant 0 : index
    %c291_334 = arith.constant 291 : index
    %310 = vector.load %arg6[%c0_333, %c291_334] : memref<16x1024xf32, #tpu.memory_space<vmem>>, vector<16x16xf32>
    %c0_335 = arith.constant 0 : index
    %c0_336 = arith.constant 0 : index
    %c128_337 = arith.constant 128 : index
    %311 = vector.load %arg4[%c0_335, %c0_336, %c128_337] : memref<2x16x256xf32, #tpu.memory_space<vmem>>, vector<1x16x16xf32>
    %312 = vector.shape_cast %311 : vector<1x16x16xf32> to vector<16x16xf32>
    %313 = vector.shape_cast %310 : vector<16x16xf32> to vector<1x16x16xf32>
    tpu.vector_store %arg4[%c0_335, %c0_336, %c128_337], %313 {strides = array<i32>} : memref<2x16x256xf32, #tpu.memory_space<vmem>>, vector<1x16x16xf32>,
    %c0_338 = arith.constant 0 : index
    %c309_339 = arith.constant 309 : index
    %314 = vector.load %arg6[%c0_338, %c309_339] : memref<16x1024xf32, #tpu.memory_space<vmem>>, vector<16x16xf32>
    %c0_340 = arith.constant 0 : index
    %c0_341 = arith.constant 0 : index
    %c144_342 = arith.constant 144 : index
    %315 = vector.load %arg4[%c0_340, %c0_341, %c144_342] : memref<2x16x256xf32, #tpu.memory_space<vmem>>, vector<1x16x16xf32>
    %316 = vector.shape_cast %315 : vector<1x16x16xf32> to vector<16x16xf32>
    %317 = vector.shape_cast %314 : vector<16x16xf32> to vector<1x16x16xf32>
    tpu.vector_store %arg4[%c0_340, %c0_341, %c144_342], %317 {strides = array<i32>} : memref<2x16x256xf32, #tpu.memory_space<vmem>>, vector<1x16x16xf32>,
    %c0_343 = arith.constant 0 : index
    %c327_344 = arith.constant 327 : index
    %318 = vector.load %arg6[%c0_343, %c327_344] : memref<16x1024xf32, #tpu.memory_space<vmem>>, vector<16x16xf32>
    %c0_345 = arith.constant 0 : index
    %c0_346 = arith.constant 0 : index
    %c160_347 = arith.constant 160 : index
    %319 = vector.load %arg4[%c0_345, %c0_346, %c160_347] : memref<2x16x256xf32, #tpu.memory_space<vmem>>, vector<1x16x16xf32>
    %320 = vector.shape_cast %319 : vector<1x16x16xf32> to vector<16x16xf32>
    %321 = vector.shape_cast %318 : vector<16x16xf32> to vector<1x16x16xf32>
    tpu.vector_store %arg4[%c0_345, %c0_346, %c160_347], %321 {strides = array<i32>} : memref<2x16x256xf32, #tpu.memory_space<vmem>>, vector<1x16x16xf32>,
    %c0_348 = arith.constant 0 : index
    %c345_349 = arith.constant 345 : index
    %322 = vector.load %arg6[%c0_348, %c345_349] : memref<16x1024xf32, #tpu.memory_space<vmem>>, vector<16x16xf32>
    %c0_350 = arith.constant 0 : index
    %c0_351 = arith.constant 0 : index
    %c176_352 = arith.constant 176 : index
    %323 = vector.load %arg4[%c0_350, %c0_351, %c176_352] : memref<2x16x256xf32, #tpu.memory_space<vmem>>, vector<1x16x16xf32>
    %324 = vector.shape_cast %323 : vector<1x16x16xf32> to vector<16x16xf32>
    %325 = vector.shape_cast %322 : vector<16x16xf32> to vector<1x16x16xf32>
    tpu.vector_store %arg4[%c0_350, %c0_351, %c176_352], %325 {strides = array<i32>} : memref<2x16x256xf32, #tpu.memory_space<vmem>>, vector<1x16x16xf32>,
    %c0_353 = arith.constant 0 : index
    %c363_354 = arith.constant 363 : index
    %326 = vector.load %arg6[%c0_353, %c363_354] : memref<16x1024xf32, #tpu.memory_space<vmem>>, vector<16x16xf32>
    %c0_355 = arith.constant 0 : index
    %c0_356 = arith.constant 0 : index
    %c192_357 = arith.constant 192 : index
    %327 = vector.load %arg4[%c0_355, %c0_356, %c192_357] : memref<2x16x256xf32, #tpu.memory_space<vmem>>, vector<1x16x16xf32>
    %328 = vector.shape_cast %327 : vector<1x16x16xf32> to vector<16x16xf32>
    %329 = vector.shape_cast %326 : vector<16x16xf32> to vector<1x16x16xf32>
    tpu.vector_store %arg4[%c0_355, %c0_356, %c192_357], %329 {strides = array<i32>} : memref<2x16x256xf32, #tpu.memory_space<vmem>>, vector<1x16x16xf32>,
    %c0_358 = arith.constant 0 : index
    %c381_359 = arith.constant 381 : index
    %330 = vector.load %arg6[%c0_358, %c381_359] : memref<16x1024xf32, #tpu.memory_space<vmem>>, vector<16x16xf32>
    %c0_360 = arith.constant 0 : index
    %c0_361 = arith.constant 0 : index
    %c208_362 = arith.constant 208 : index
    %331 = vector.load %arg4[%c0_360, %c0_361, %c208_362] : memref<2x16x256xf32, #tpu.memory_space<vmem>>, vector<1x16x16xf32>
    %332 = vector.shape_cast %331 : vector<1x16x16xf32> to vector<16x16xf32>
    %333 = vector.shape_cast %330 : vector<16x16xf32> to vector<1x16x16xf32>
    tpu.vector_store %arg4[%c0_360, %c0_361, %c208_362], %333 {strides = array<i32>} : memref<2x16x256xf32, #tpu.memory_space<vmem>>, vector<1x16x16xf32>,
    %c0_363 = arith.constant 0 : index
    %c399_364 = arith.constant 399 : index
    %334 = vector.load %arg6[%c0_363, %c399_364] : memref<16x1024xf32, #tpu.memory_space<vmem>>, vector<16x16xf32>
    %c0_365 = arith.constant 0 : index
    %c0_366 = arith.constant 0 : index
    %c224_367 = arith.constant 224 : index
    %335 = vector.load %arg4[%c0_365, %c0_366, %c224_367] : memref<2x16x256xf32, #tpu.memory_space<vmem>>, vector<1x16x16xf32>
    %336 = vector.shape_cast %335 : vector<1x16x16xf32> to vector<16x16xf32>
    %337 = vector.shape_cast %334 : vector<16x16xf32> to vector<1x16x16xf32>
    tpu.vector_store %arg4[%c0_365, %c0_366, %c224_367], %337 {strides = array<i32>} : memref<2x16x256xf32, #tpu.memory_space<vmem>>, vector<1x16x16xf32>,
    %c0_368 = arith.constant 0 : index
    %c417_369 = arith.constant 417 : index
    %338 = vector.load %arg6[%c0_368, %c417_369] : memref<16x1024xf32, #tpu.memory_space<vmem>>, vector<16x16xf32>
    %c0_370 = arith.constant 0 : index
    %c0_371 = arith.constant 0 : index
    %c240_372 = arith.constant 240 : index
    %339 = vector.load %arg4[%c0_370, %c0_371, %c240_372] : memref<2x16x256xf32, #tpu.memory_space<vmem>>, vector<1x16x16xf32>
    %340 = vector.shape_cast %339 : vector<1x16x16xf32> to vector<16x16xf32>
    %341 = vector.shape_cast %338 : vector<16x16xf32> to vector<1x16x16xf32>
    tpu.vector_store %arg4[%c0_370, %c0_371, %c240_372], %341 {strides = array<i32>} : memref<2x16x256xf32, #tpu.memory_space<vmem>>, vector<1x16x16xf32>,
    %c0_373 = arith.constant 0 : index
    %c471_374 = arith.constant 471 : index
    %342 = vector.load %arg6[%c0_373, %c471_374] : memref<16x1024xf32, #tpu.memory_space<vmem>>, vector<16x16xf32>
    %c1_375 = arith.constant 1 : index
    %c0_376 = arith.constant 0 : index
    %c0_377 = arith.constant 0 : index
    %343 = vector.load %arg4[%c1_375, %c0_376, %c0_377] : memref<2x16x256xf32, #tpu.memory_space<vmem>>, vector<1x16x16xf32>
    %344 = vector.shape_cast %343 : vector<1x16x16xf32> to vector<16x16xf32>
    %345 = vector.shape_cast %342 : vector<16x16xf32> to vector<1x16x16xf32>
    tpu.vector_store %arg4[%c1_375, %c0_376, %c0_377], %345 {strides = array<i32>} : memref<2x16x256xf32, #tpu.memory_space<vmem>>, vector<1x16x16xf32>,
    %c0_378 = arith.constant 0 : index
    %c489_379 = arith.constant 489 : index
    %346 = vector.load %arg6[%c0_378, %c489_379] : memref<16x1024xf32, #tpu.memory_space<vmem>>, vector<16x16xf32>
    %c1_380 = arith.constant 1 : index
    %c0_381 = arith.constant 0 : index
    %c16_382 = arith.constant 16 : index
    %347 = vector.load %arg4[%c1_380, %c0_381, %c16_382] : memref<2x16x256xf32, #tpu.memory_space<vmem>>, vector<1x16x16xf32>
    %348 = vector.shape_cast %347 : vector<1x16x16xf32> to vector<16x16xf32>
    %349 = vector.shape_cast %346 : vector<16x16xf32> to vector<1x16x16xf32>
    tpu.vector_store %arg4[%c1_380, %c0_381, %c16_382], %349 {strides = array<i32>} : memref<2x16x256xf32, #tpu.memory_space<vmem>>, vector<1x16x16xf32>,
    %c0_383 = arith.constant 0 : index
    %c507_384 = arith.constant 507 : index
    %350 = vector.load %arg6[%c0_383, %c507_384] : memref<16x1024xf32, #tpu.memory_space<vmem>>, vector<16x16xf32>
    %c1_385 = arith.constant 1 : index
    %c0_386 = arith.constant 0 : index
    %c32_387 = arith.constant 32 : index
    %351 = vector.load %arg4[%c1_385, %c0_386, %c32_387] : memref<2x16x256xf32, #tpu.memory_space<vmem>>, vector<1x16x16xf32>
    %352 = vector.shape_cast %351 : vector<1x16x16xf32> to vector<16x16xf32>
    %353 = vector.shape_cast %350 : vector<16x16xf32> to vector<1x16x16xf32>
    tpu.vector_store %arg4[%c1_385, %c0_386, %c32_387], %353 {strides = array<i32>} : memref<2x16x256xf32, #tpu.memory_space<vmem>>, vector<1x16x16xf32>,
    %c0_388 = arith.constant 0 : index
    %c525_389 = arith.constant 525 : index
    %354 = vector.load %arg6[%c0_388, %c525_389] : memref<16x1024xf32, #tpu.memory_space<vmem>>, vector<16x16xf32>
    %c1_390 = arith.constant 1 : index
    %c0_391 = arith.constant 0 : index
    %c48_392 = arith.constant 48 : index
    %355 = vector.load %arg4[%c1_390, %c0_391, %c48_392] : memref<2x16x256xf32, #tpu.memory_space<vmem>>, vector<1x16x16xf32>
    %356 = vector.shape_cast %355 : vector<1x16x16xf32> to vector<16x16xf32>
    %357 = vector.shape_cast %354 : vector<16x16xf32> to vector<1x16x16xf32>
    tpu.vector_store %arg4[%c1_390, %c0_391, %c48_392], %357 {strides = array<i32>} : memref<2x16x256xf32, #tpu.memory_space<vmem>>, vector<1x16x16xf32>,
    %c0_393 = arith.constant 0 : index
    %c543_394 = arith.constant 543 : index
    %358 = vector.load %arg6[%c0_393, %c543_394] : memref<16x1024xf32, #tpu.memory_space<vmem>>, vector<16x16xf32>
    %c1_395 = arith.constant 1 : index
    %c0_396 = arith.constant 0 : index
    %c64_397 = arith.constant 64 : index
    %359 = vector.load %arg4[%c1_395, %c0_396, %c64_397] : memref<2x16x256xf32, #tpu.memory_space<vmem>>, vector<1x16x16xf32>
    %360 = vector.shape_cast %359 : vector<1x16x16xf32> to vector<16x16xf32>
    %361 = vector.shape_cast %358 : vector<16x16xf32> to vector<1x16x16xf32>
    tpu.vector_store %arg4[%c1_395, %c0_396, %c64_397], %361 {strides = array<i32>} : memref<2x16x256xf32, #tpu.memory_space<vmem>>, vector<1x16x16xf32>,
    %c0_398 = arith.constant 0 : index
    %c561_399 = arith.constant 561 : index
    %362 = vector.load %arg6[%c0_398, %c561_399] : memref<16x1024xf32, #tpu.memory_space<vmem>>, vector<16x16xf32>
    %c1_400 = arith.constant 1 : index
    %c0_401 = arith.constant 0 : index
    %c80_402 = arith.constant 80 : index
    %363 = vector.load %arg4[%c1_400, %c0_401, %c80_402] : memref<2x16x256xf32, #tpu.memory_space<vmem>>, vector<1x16x16xf32>
    %364 = vector.shape_cast %363 : vector<1x16x16xf32> to vector<16x16xf32>
    %365 = vector.shape_cast %362 : vector<16x16xf32> to vector<1x16x16xf32>
    tpu.vector_store %arg4[%c1_400, %c0_401, %c80_402], %365 {strides = array<i32>} : memref<2x16x256xf32, #tpu.memory_space<vmem>>, vector<1x16x16xf32>,
    %c0_403 = arith.constant 0 : index
    %c579_404 = arith.constant 579 : index
    %366 = vector.load %arg6[%c0_403, %c579_404] : memref<16x1024xf32, #tpu.memory_space<vmem>>, vector<16x16xf32>
    %c1_405 = arith.constant 1 : index
    %c0_406 = arith.constant 0 : index
    %c96_407 = arith.constant 96 : index
    %367 = vector.load %arg4[%c1_405, %c0_406, %c96_407] : memref<2x16x256xf32, #tpu.memory_space<vmem>>, vector<1x16x16xf32>
    %368 = vector.shape_cast %367 : vector<1x16x16xf32> to vector<16x16xf32>
    %369 = vector.shape_cast %366 : vector<16x16xf32> to vector<1x16x16xf32>
    tpu.vector_store %arg4[%c1_405, %c0_406, %c96_407], %369 {strides = array<i32>} : memref<2x16x256xf32, #tpu.memory_space<vmem>>, vector<1x16x16xf32>,
    %c0_408 = arith.constant 0 : index
    %c597_409 = arith.constant 597 : index
    %370 = vector.load %arg6[%c0_408, %c597_409] : memref<16x1024xf32, #tpu.memory_space<vmem>>, vector<16x16xf32>
    %c1_410 = arith.constant 1 : index
    %c0_411 = arith.constant 0 : index
    %c112_412 = arith.constant 112 : index
    %371 = vector.load %arg4[%c1_410, %c0_411, %c112_412] : memref<2x16x256xf32, #tpu.memory_space<vmem>>, vector<1x16x16xf32>
    %372 = vector.shape_cast %371 : vector<1x16x16xf32> to vector<16x16xf32>
    %373 = vector.shape_cast %370 : vector<16x16xf32> to vector<1x16x16xf32>
    tpu.vector_store %arg4[%c1_410, %c0_411, %c112_412], %373 {strides = array<i32>} : memref<2x16x256xf32, #tpu.memory_space<vmem>>, vector<1x16x16xf32>,
    %c0_413 = arith.constant 0 : index
    %c615_414 = arith.constant 615 : index
    %374 = vector.load %arg6[%c0_413, %c615_414] : memref<16x1024xf32, #tpu.memory_space<vmem>>, vector<16x16xf32>
    %c1_415 = arith.constant 1 : index
    %c0_416 = arith.constant 0 : index
    %c128_417 = arith.constant 128 : index
    %375 = vector.load %arg4[%c1_415, %c0_416, %c128_417] : memref<2x16x256xf32, #tpu.memory_space<vmem>>, vector<1x16x16xf32>
    %376 = vector.shape_cast %375 : vector<1x16x16xf32> to vector<16x16xf32>
    %377 = vector.shape_cast %374 : vector<16x16xf32> to vector<1x16x16xf32>
    tpu.vector_store %arg4[%c1_415, %c0_416, %c128_417], %377 {strides = array<i32>} : memref<2x16x256xf32, #tpu.memory_space<vmem>>, vector<1x16x16xf32>,
    %c0_418 = arith.constant 0 : index
    %c633_419 = arith.constant 633 : index
    %378 = vector.load %arg6[%c0_418, %c633_419] : memref<16x1024xf32, #tpu.memory_space<vmem>>, vector<16x16xf32>
    %c1_420 = arith.constant 1 : index
    %c0_421 = arith.constant 0 : index
    %c144_422 = arith.constant 144 : index
    %379 = vector.load %arg4[%c1_420, %c0_421, %c144_422] : memref<2x16x256xf32, #tpu.memory_space<vmem>>, vector<1x16x16xf32>
    %380 = vector.shape_cast %379 : vector<1x16x16xf32> to vector<16x16xf32>
    %381 = vector.shape_cast %378 : vector<16x16xf32> to vector<1x16x16xf32>
    tpu.vector_store %arg4[%c1_420, %c0_421, %c144_422], %381 {strides = array<i32>} : memref<2x16x256xf32, #tpu.memory_space<vmem>>, vector<1x16x16xf32>,
    %c0_423 = arith.constant 0 : index
    %c651_424 = arith.constant 651 : index
    %382 = vector.load %arg6[%c0_423, %c651_424] : memref<16x1024xf32, #tpu.memory_space<vmem>>, vector<16x16xf32>
    %c1_425 = arith.constant 1 : index
    %c0_426 = arith.constant 0 : index
    %c160_427 = arith.constant 160 : index
    %383 = vector.load %arg4[%c1_425, %c0_426, %c160_427] : memref<2x16x256xf32, #tpu.memory_space<vmem>>, vector<1x16x16xf32>
    %384 = vector.shape_cast %383 : vector<1x16x16xf32> to vector<16x16xf32>
    %385 = vector.shape_cast %382 : vector<16x16xf32> to vector<1x16x16xf32>
    tpu.vector_store %arg4[%c1_425, %c0_426, %c160_427], %385 {strides = array<i32>} : memref<2x16x256xf32, #tpu.memory_space<vmem>>, vector<1x16x16xf32>,
    %c0_428 = arith.constant 0 : index
    %c669_429 = arith.constant 669 : index
    %386 = vector.load %arg6[%c0_428, %c669_429] : memref<16x1024xf32, #tpu.memory_space<vmem>>, vector<16x16xf32>
    %c1_430 = arith.constant 1 : index
    %c0_431 = arith.constant 0 : index
    %c176_432 = arith.constant 176 : index
    %387 = vector.load %arg4[%c1_430, %c0_431, %c176_432] : memref<2x16x256xf32, #tpu.memory_space<vmem>>, vector<1x16x16xf32>
    %388 = vector.shape_cast %387 : vector<1x16x16xf32> to vector<16x16xf32>
    %389 = vector.shape_cast %386 : vector<16x16xf32> to vector<1x16x16xf32>
    tpu.vector_store %arg4[%c1_430, %c0_431, %c176_432], %389 {strides = array<i32>} : memref<2x16x256xf32, #tpu.memory_space<vmem>>, vector<1x16x16xf32>,
    %c0_433 = arith.constant 0 : index
    %c687_434 = arith.constant 687 : index
    %390 = vector.load %arg6[%c0_433, %c687_434] : memref<16x1024xf32, #tpu.memory_space<vmem>>, vector<16x16xf32>
    %c1_435 = arith.constant 1 : index
    %c0_436 = arith.constant 0 : index
    %c192_437 = arith.constant 192 : index
    %391 = vector.load %arg4[%c1_435, %c0_436, %c192_437] : memref<2x16x256xf32, #tpu.memory_space<vmem>>, vector<1x16x16xf32>
    %392 = vector.shape_cast %391 : vector<1x16x16xf32> to vector<16x16xf32>
    %393 = vector.shape_cast %390 : vector<16x16xf32> to vector<1x16x16xf32>
    tpu.vector_store %arg4[%c1_435, %c0_436, %c192_437], %393 {strides = array<i32>} : memref<2x16x256xf32, #tpu.memory_space<vmem>>, vector<1x16x16xf32>,
    %c0_438 = arith.constant 0 : index
    %c705_439 = arith.constant 705 : index
    %394 = vector.load %arg6[%c0_438, %c705_439] : memref<16x1024xf32, #tpu.memory_space<vmem>>, vector<16x16xf32>
    %c1_440 = arith.constant 1 : index
    %c0_441 = arith.constant 0 : index
    %c208_442 = arith.constant 208 : index
    %395 = vector.load %arg4[%c1_440, %c0_441, %c208_442] : memref<2x16x256xf32, #tpu.memory_space<vmem>>, vector<1x16x16xf32>
    %396 = vector.shape_cast %395 : vector<1x16x16xf32> to vector<16x16xf32>
    %397 = vector.shape_cast %394 : vector<16x16xf32> to vector<1x16x16xf32>
    tpu.vector_store %arg4[%c1_440, %c0_441, %c208_442], %397 {strides = array<i32>} : memref<2x16x256xf32, #tpu.memory_space<vmem>>, vector<1x16x16xf32>,
    %c0_443 = arith.constant 0 : index
    %c723_444 = arith.constant 723 : index
    %398 = vector.load %arg6[%c0_443, %c723_444] : memref<16x1024xf32, #tpu.memory_space<vmem>>, vector<16x16xf32>
    %c1_445 = arith.constant 1 : index
    %c0_446 = arith.constant 0 : index
    %c224_447 = arith.constant 224 : index
    %399 = vector.load %arg4[%c1_445, %c0_446, %c224_447] : memref<2x16x256xf32, #tpu.memory_space<vmem>>, vector<1x16x16xf32>
    %400 = vector.shape_cast %399 : vector<1x16x16xf32> to vector<16x16xf32>
    %401 = vector.shape_cast %398 : vector<16x16xf32> to vector<1x16x16xf32>
    tpu.vector_store %arg4[%c1_445, %c0_446, %c224_447], %401 {strides = array<i32>} : memref<2x16x256xf32, #tpu.memory_space<vmem>>, vector<1x16x16xf32>,
    %c0_448 = arith.constant 0 : index
    %c741_449 = arith.constant 741 : index
    %402 = vector.load %arg6[%c0_448, %c741_449] : memref<16x1024xf32, #tpu.memory_space<vmem>>, vector<16x16xf32>
    %c1_450 = arith.constant 1 : index
    %c0_451 = arith.constant 0 : index
    %c240_452 = arith.constant 240 : index
    %403 = vector.load %arg4[%c1_450, %c0_451, %c240_452] : memref<2x16x256xf32, #tpu.memory_space<vmem>>, vector<1x16x16xf32>
    %404 = vector.shape_cast %403 : vector<1x16x16xf32> to vector<16x16xf32>
    %405 = vector.shape_cast %402 : vector<16x16xf32> to vector<1x16x16xf32>
    tpu.vector_store %arg4[%c1_450, %c0_451, %c240_452], %405 {strides = array<i32>} : memref<2x16x256xf32, #tpu.memory_space<vmem>>, vector<1x16x16xf32>,
    return
  }
}

</mosaic_0001>

<llo_original>
// kernel: representation_network.1
$region0: #{representation_network.1}
  #allocation0 [shape = 'u32[]', space=smem, size = 0x4, offset = 0x4, fixed_abs, tag = 'smem constant byte address 0x4 - core index']
  #allocation1 [shape = 'u32[144,128]{1,0:T(1,128)}', space=vmem, size = 0x12000, scoped, tag = 'internal scratch']
  #allocation2 [shape = 'f32[16,1024]{1,0:T(8,128)}', space=vmem, size = 0x10000, scoped, tag = 'scratch operand']
  #allocation3 [shape = 'f32[16,1024]{1,0:T(8,128)}', space=vmem, size = 0x10000, scoped, tag = 'scratch operand']
  #allocation4 [shape = 'f32[16,1024]{1,0:T(8,128)}', space=vmem, size = 0x10000, scoped, tag = 'scratch operand']
  #allocation5 [shape = 'bf16[144,768]{1,0:T(16,128)(2,1)}', space=vmem, size = 0x36000, scoped, tag = 'scratch operand']
  %s0 = inlined_call_operand.vmem [shape: f32[2,7,256], index: 0, kind: input, shape index: {}]
  %s1 = inlined_call_operand.vmem [shape: bf16[5,16,144], index: 1, kind: input, shape index: {}]
  %s2 = inlined_call_operand.vmem [shape: f32[5,16,1], index: 2, kind: input, shape index: {}]
  %s3 = inlined_call_operand.vmem [shape: f32[1,768], index: 3, kind: input, shape index: {}]
  %s4 = inlined_call_operand.vmem [shape: f32[2,16,256], index: 4, kind: output, shape index: {}]
  %s5 = sld [smem:[#allocation0]]
  $region26: #{representation_network.1} parent=0
    _
  %s7 = ssub.s32 1, %s5
  %s8 = scalar_select 0, %s7, %s5
  // Predicated region
  $region2: #{representation_network.1} parent=0 // pred_check
    _
  $region3: #{representation_network.1} parent=0 // pred_check_branch
    %10 = sbr.rel (0) target = $region5
  $region4: #{representation_network.1} parent=0 // pred_region
    _
  $region5: #{representation_network.1} parent=0 // pred_fallthru
    _
  // Predicated region
  $region6: #{representation_network.1} parent=0 // pred_check
    _
  $region7: #{representation_network.1} parent=0 // pred_check_branch
    %12 = sbr.rel (0) target = $region9
  $region8: #{representation_network.1} parent=0 // pred_region
    _
  $region9: #{representation_network.1} parent=0 // pred_fallthru
    _
  // Predicated region
  $region10: #{representation_network.1} parent=0 // pred_check
    _
  $region11: #{representation_network.1} parent=0 // pred_check_branch
    %14 = sbr.rel (0) target = $region13
  $region12: #{representation_network.1} parent=0 // pred_region
    _
  $region13: #{representation_network.1} parent=0 // pred_fallthru
    _
  // Predicated region
  $region14: #{representation_network.1} parent=0 // pred_check
    _
  $region15: #{representation_network.1} parent=0 // pred_check_branch
    %16 = sbr.rel (0) target = $region17
  $region16: #{representation_network.1} parent=0 // pred_region
    _
  $region17: #{representation_network.1} parent=0 // pred_fallthru
    _
  %18 = vst [vmem:[#allocation2] sm:$0xff] 0.0
  %19 = vst [vmem:[#allocation2 + $0x8] sm:$0xff] 0.0
  %20 = vst [vmem:[#allocation2 + $0x10] sm:$0xff] 0.0
  %21 = vst [vmem:[#allocation2 + $0x18] sm:$0xff] 0.0
  %22 = vst [vmem:[#allocation2 + $0x20] sm:$0xff] 0.0
  %23 = vst [vmem:[#allocation2 + $0x28] sm:$0xff] 0.0
  %24 = vst [vmem:[#allocation2 + $0x30] sm:$0xff] 0.0
  %25 = vst [vmem:[#allocation2 + $0x38] sm:$0xff] 0.0
  %26 = vst [vmem:[#allocation2 + $0x40] sm:$0xff] 0.0
  %27 = vst [vmem:[#allocation2 + $0x48] sm:$0xff] 0.0
  %28 = vst [vmem:[#allocation2 + $0x50] sm:$0xff] 0.0
  %29 = vst [vmem:[#allocation2 + $0x58] sm:$0xff] 0.0
  %30 = vst [vmem:[#allocation2 + $0x60] sm:$0xff] 0.0
  %31 = vst [vmem:[#allocation2 + $0x68] sm:$0xff] 0.0
  %32 = vst [vmem:[#allocation2 + $0x70] sm:$0xff] 0.0
  %33 = vst [vmem:[#allocation2 + $0x78] sm:$0xff] 0.0
  %34 = vst [vmem:[#allocation3] sm:$0xff] 0.0
  %35 = vst [vmem:[#allocation3 + $0x40] sm:$0xff] 0.0
  %36 = vst [vmem:[#allocation3 + $0x38] sm:$0xff] 0.0
  %37 = vst [vmem:[#allocation3 + $0x78] sm:$0xff] 0.0
  %38 = vst [vmem:[#allocation4] sm:$0xff] 0.0
  %39 = vst [vmem:[#allocation4 + $0x40] sm:$0xff] 0.0
  %40 = vst [vmem:[#allocation4 + $0x38] sm:$0xff] 0.0
  %41 = vst [vmem:[#allocation4 + $0x78] sm:$0xff] 0.0
  %v42 = vld [vmem:[%s0] sm:$0x7f]
  %44 = vrot.lane.b32.xlu0 %v42, 19
  %v45 = vpop.permute.xlu0 %44
  %vm47 = vcmask 284824
  %48 = vst.msk [vmem:[#allocation2 + $0x8] sm:$0x7f] %vm47, %v45
  %v49 = vld [vmem:[%s0] sm:$0x7f]
  %51 = vrot.lane.b32.xlu0 %v49, 21
  %v52 = vpop.permute.xlu0 %51
  %vm54 = vcmask 432424
  %55 = vst.msk [vmem:[#allocation2 + $0x8] sm:$0x7f] %vm54, %v52
  %v56 = vld [vmem:[%s0] sm:$0x7f]
  %58 = vrot.lane.b32.xlu0 %v56, 23
  %v59 = vpop.permute.xlu0 %58
  %vm61 = vcmask 580024
  %62 = vst.msk [vmem:[#allocation2 + $0x8] sm:$0x7f] %vm61, %v59
  %v63 = vld [vmem:[%s0] sm:$0x7f]
  %65 = vrot.lane.b32.xlu0 %v63, 25
  %v66 = vpop.permute.xlu0 %65
  %vm68 = vcmask 727624
  %69 = vst.msk [vmem:[#allocation2 + $0x8] sm:$0x7f] %vm68, %v66
  %v70 = vld [vmem:[%s0] sm:$0x7f]
  %72 = vrot.lane.b32.xlu0 %v70, 27
  %v73 = vpop.permute.xlu0 %72
  %vm75 = vcmask 875224
  %76 = vst.msk [vmem:[#allocation2 + $0x8] sm:$0x7f] %vm75, %v73
  %v77 = vld [vmem:[%s0] sm:$0x7f]
  %79 = vrot.lane.b32.xlu0 %v77, 29
  %v80 = vpop.permute.xlu0 %79
  %vm82 = vcmask 1022824
  %83 = vst.msk [vmem:[#allocation2 + $0x8] sm:$0x7f] %vm82, %v80
  %v84 = vld [vmem:[%s0] sm:$0x7f]
  %86 = vrot.lane.b32.xlu0 %v84, 31
  %v87 = vpop.permute.xlu0 %86
  %vm89 = vcmask 1047544
  %90 = vst.msk [vmem:[#allocation2 + $0x8] sm:$0x7f] %vm89, %v87
  %vm91 = vcmask 120832
  %92 = vst.msk [vmem:[#allocation2 + $0x10] sm:$0x7f] %vm91, %v87
  %v93 = vld [vmem:[%s0] sm:$0x7f]
  %95 = vrot.lane.b32.xlu0 %v93, 33
  %v96 = vpop.permute.xlu0 %95
  %vm98 = vcmask 268424
  %99 = vst.msk [vmem:[#allocation2 + $0x10] sm:$0x7f] %vm98, %v96
  %v100 = vld [vmem:[%s0 + $0x8] sm:$0x7f]
  %102 = vrot.lane.b32.xlu0 %v100, 35
  %v103 = vpop.permute.xlu0 %102
  %vm105 = vcmask 416024
  %106 = vst.msk [vmem:[#allocation2 + $0x10] sm:$0x7f] %vm105, %v103
  %v107 = vld [vmem:[%s0 + $0x8] sm:$0x7f]
  %109 = vrot.lane.b32.xlu0 %v107, 37
  %v110 = vpop.permute.xlu0 %109
  %vm112 = vcmask 563624
  %113 = vst.msk [vmem:[#allocation2 + $0x10] sm:$0x7f] %vm112, %v110
  %v114 = vld [vmem:[%s0 + $0x8] sm:$0x7f]
  %116 = vrot.lane.b32.xlu0 %v114, 39
  %v117 = vpop.permute.xlu0 %116
  %vm119 = vcmask 711224
  %120 = vst.msk [vmem:[#allocation2 + $0x10] sm:$0x7f] %vm119, %v117
  %v121 = vld [vmem:[%s0 + $0x8] sm:$0x7f]
  %123 = vrot.lane.b32.xlu0 %v121, 41
  %v124 = vpop.permute.xlu0 %123
  %vm126 = vcmask 858824
  %127 = vst.msk [vmem:[#allocation2 + $0x10] sm:$0x7f] %vm126, %v124
  %v128 = vld [vmem:[%s0 + $0x8] sm:$0x7f]
  %130 = vrot.lane.b32.xlu0 %v128, 43
  %v131 = vpop.permute.xlu0 %130
  %vm133 = vcmask 1006424
  %134 = vst.msk [vmem:[#allocation2 + $0x10] sm:$0x7f] %vm133, %v131
  %v135 = vld [vmem:[%s0 + $0x8] sm:$0x7f]
  %137 = vrot.lane.b32.xlu0 %v135, 45
  %v138 = vpop.permute.xlu0 %137
  %vm140 = vcmask 1047528
  %141 = vst.msk [vmem:[#allocation2 + $0x10] sm:$0x7f] %vm140, %v138
  %vm142 = vcmask 104448
  %143 = vst.msk [vmem:[#allocation2 + $0x18] sm:$0x7f] %vm142, %v138
  %v144 = vld [vmem:[%s0 + $0x8] sm:$0x7f]
  %146 = vrot.lane.b32.xlu0 %v144, 47
  %v147 = vpop.permute.xlu0 %146
  %vm149 = vcmask 252024
  %150 = vst.msk [vmem:[#allocation2 + $0x18] sm:$0x7f] %vm149, %v147
  %v151 = vld [vmem:[%s0 + $0x8] sm:$0x7f]
  %153 = vrot.lane.b32.xlu0 %v151, 49
  %v154 = vpop.permute.xlu0 %153
  %vm156 = vcmask 399624
  %157 = vst.msk [vmem:[#allocation2 + $0x18] sm:$0x7f] %vm156, %v154
  %s158 = scalar_lea.vmem %s0, 16
  %v159 = vld [vmem:[%s158] sm:$0x7f]
  %161 = vrot.lane.b32.xlu0 %v159, 87
  %v162 = vpop.permute.xlu0 %161
  %vm164 = vcmask 842424
  %165 = vst.msk [vmem:[#allocation2 + $0x18] sm:$0x7f] %vm164, %v162
  %v166 = vld [vmem:[%s158] sm:$0x7f]
  %168 = vrot.lane.b32.xlu0 %v166, 89
  %v169 = vpop.permute.xlu0 %168
  %vm171 = vcmask 990024
  %172 = vst.msk [vmem:[#allocation2 + $0x18] sm:$0x7f] %vm171, %v169
  %v173 = vld [vmem:[%s158] sm:$0x7f]
  %175 = vrot.lane.b32.xlu0 %v173, 91
  %v176 = vpop.permute.xlu0 %175
  %vm178 = vcmask 1047512
  %179 = vst.msk [vmem:[#allocation2 + $0x18] sm:$0x7f] %vm178, %v176
  %vm180 = vcmask 88064
  %181 = vst.msk [vmem:[#allocation2 + $0x20] sm:$0x7f] %vm180, %v176
  %v182 = vld [vmem:[%s158] sm:$0x7f]
  %184 = vrot.lane.b32.xlu0 %v182, 93
  %v185 = vpop.permute.xlu0 %184
  %vm187 = vcmask 235624
  %188 = vst.msk [vmem:[#allocation2 + $0x20] sm:$0x7f] %vm187, %v185
  %v189 = vld [vmem:[%s158] sm:$0x7f]
  %191 = vrot.lane.b32.xlu0 %v189, 95
  %v192 = vpop.permute.xlu0 %191
  %vm194 = vcmask 383224
  %195 = vst.msk [vmem:[#allocation2 + $0x20] sm:$0x7f] %vm194, %v192
  %v196 = vld [vmem:[%s158] sm:$0x7f]
  %198 = vrot.lane.b32.xlu0 %v196, 97
  %v199 = vpop.permute.xlu0 %198
  %vm201 = vcmask 530824
  %202 = vst.msk [vmem:[#allocation2 + $0x20] sm:$0x7f] %vm201, %v199
  %v203 = vld [vmem:[%s158] sm:$0x7f]
  %205 = vrot.lane.b32.xlu0 %v203, 99
  %v206 = vpop.permute.xlu0 %205
  %vm208 = vcmask 678424
  %209 = vst.msk [vmem:[#allocation2 + $0x20] sm:$0x7f] %vm208, %v206
  %v210 = vld [vmem:[%s158] sm:$0x7f]
  %212 = vrot.lane.b32.xlu0 %v210, 101
  %v213 = vpop.permute.xlu0 %212
  %vm215 = vcmask 826024
  %216 = vst.msk [vmem:[#allocation2 + $0x20] sm:$0x7f] %vm215, %v213
  %v217 = vld [vmem:[%s158 + $0x8] sm:$0x7f]
  %219 = vrot.lane.b32.xlu0 %v217, 103
  %v220 = vpop.permute.xlu0 %219
  %vm222 = vcmask 973624
  %223 = vst.msk [vmem:[#allocation2 + $0x20] sm:$0x7f] %vm222, %v220
  %v224 = vld [vmem:[%s158 + $0x8] sm:$0x7f]
  %226 = vrot.lane.b32.xlu0 %v224, 105
  %v227 = vpop.permute.xlu0 %226
  %vm229 = vcmask 1047496
  %230 = vst.msk [vmem:[#allocation2 + $0x20] sm:$0x7f] %vm229, %v227
  %vm231 = vcmask 71680
  %232 = vst.msk [vmem:[#allocation2 + $0x28] sm:$0x7f] %vm231, %v227
  %v233 = vld [vmem:[%s158 + $0x8] sm:$0x7f]
  %235 = vrot.lane.b32.xlu0 %v233, 107
  %v236 = vpop.permute.xlu0 %235
  %vm238 = vcmask 219224
  %239 = vst.msk [vmem:[#allocation2 + $0x28] sm:$0x7f] %vm238, %v236
  %v240 = vld [vmem:[%s158 + $0x8] sm:$0x7f]
  %242 = vrot.lane.b32.xlu0 %v240, 109
  %v243 = vpop.permute.xlu0 %242
  %vm245 = vcmask 366824
  %246 = vst.msk [vmem:[#allocation2 + $0x28] sm:$0x7f] %vm245, %v243
  %v247 = vld [vmem:[%s158 + $0x8] sm:$0x7f]
  %249 = vrot.lane.b32.xlu0 %v247, 111
  %v250 = vpop.permute.xlu0 %249
  %vm252 = vcmask 514424
  %253 = vst.msk [vmem:[#allocation2 + $0x28] sm:$0x7f] %vm252, %v250
  %v254 = vld [vmem:[%s158 + $0x8] sm:$0x7f]
  %256 = vrot.lane.b32.xlu0 %v254, 113
  %v257 = vpop.permute.xlu0 %256
  %vm259 = vcmask 662024
  %260 = vst.msk [vmem:[#allocation2 + $0x28] sm:$0x7f] %vm259, %v257
  %v261 = vld [vmem:[%s158 + $0x8] sm:$0x7f]
  %263 = vrot.lane.b32.xlu0 %v261, 115
  %v264 = vpop.permute.xlu0 %263
  %vm266 = vcmask 809624
  %267 = vst.msk [vmem:[#allocation2 + $0x28] sm:$0x7f] %vm266, %v264
  %v268 = vld [vmem:[%s158 + $0x8] sm:$0x7f]
  %270 = vrot.lane.b32.xlu0 %v268, 117
  %v271 = vpop.permute.xlu0 %270
  %vm273 = vcmask 957224
  %274 = vst.msk [vmem:[#allocation2 + $0x28] sm:$0x7f] %vm273, %v271
  %v275 = vld [vmem:[#allocation2] sm:$0xff]
  %v276 = vld [vmem:[#allocation2 + $0x8] sm:$0xff]
  %v277 = vld [vmem:[#allocation2 + $0x10] sm:$0xff]
  %v278 = vld [vmem:[#allocation2 + $0x18] sm:$0xff]
  %v279 = vld [vmem:[#allocation2 + $0x20] sm:$0xff]
  %v280 = vld [vmem:[#allocation2 + $0x28] sm:$0xff]
  %v281 = vld [vmem:[#allocation2 + $0x30] sm:$0xff]
  %v282 = vld [vmem:[#allocation2 + $0x38] sm:$0xff]
  %v283 = vld [vmem:[#allocation2 + $0x40] sm:$0xff]
  %v284 = vld [vmem:[#allocation2 + $0x48] sm:$0xff]
  %v285 = vld [vmem:[#allocation2 + $0x50] sm:$0xff]
  %v286 = vld [vmem:[#allocation2 + $0x58] sm:$0xff]
  %v287 = vld [vmem:[#allocation2 + $0x60] sm:$0xff]
  %v288 = vld [vmem:[#allocation2 + $0x68] sm:$0xff]
  %v289 = vld [vmem:[#allocation2 + $0x70] sm:$0xff]
  %v290 = vld [vmem:[#allocation2 + $0x78] sm:$0xff]
  %v291 = vpack.c.bf16 %v283, %v275
  %v292 = vpack.c.bf16 %v284, %v276
  %v293 = vpack.c.bf16 %v285, %v277
  %v294 = vpack.c.bf16 %v286, %v278
  %v295 = vpack.c.bf16 %v287, %v279
  %v296 = vpack.c.bf16 %v288, %v280
  %v297 = vpack.c.bf16 %v289, %v281
  %v298 = vpack.c.bf16 %v290, %v282
  %306 = vrot.lane.b32.xlu0 %v291, 19
  %v307 = vpop.permute.xlu0 %306
  %308 = vrot.lane.b32.xlu0 %v292, 19
  %v309 = vpop.permute.xlu0 %308
  %310 = vrot.lane.b32.xlu0 %v293, 19
  %v311 = vpop.permute.xlu0 %310
  %312 = vrot.lane.b32.xlu0 %v294, 19
  %v313 = vpop.permute.xlu0 %312
  %314 = vrot.lane.b32.xlu0 %v295, 19
  %v315 = vpop.permute.xlu0 %314
  %316 = vrot.lane.b32.xlu0 %v296, 19
  %v317 = vpop.permute.xlu0 %316
  %318 = vrot.lane.b32.xlu0 %v297, 19
  %v319 = vpop.permute.xlu0 %318
  %vm320 = vcmask 154624
  %v321 = vsel %vm320, %v307, %v309
  %v322 = vsel %vm320, %v309, %v311
  %v323 = vsel %vm320, %v311, %v313
  %v324 = vsel %vm320, %v313, %v315
  %v325 = vsel %vm320, %v315, %v317
  %v326 = vsel %vm320, %v317, %v319
  %333 = vst [vmem:[#allocation5] sm:$0xff] %v321
  %334 = vst [vmem:[#allocation5 + $0x8] sm:$0xff] %v322
  %335 = vst [vmem:[#allocation5 + $0x10] sm:$0xff] %v323
  %336 = vst [vmem:[#allocation5 + $0x18] sm:$0xff] %v324
  %337 = vst [vmem:[#allocation5 + $0x20] sm:$0xff] %v325
  %338 = vst [vmem:[#allocation5 + $0x28] sm:$0xff] %v326
  %339 = vrot.lane.b32.xlu0 %v291, 18
  %v340 = vpop.permute.xlu0 %339
  %341 = vrot.lane.b32.xlu0 %v292, 18
  %v342 = vpop.permute.xlu0 %341
  %343 = vrot.lane.b32.xlu0 %v293, 18
  %v344 = vpop.permute.xlu0 %343
  %345 = vrot.lane.b32.xlu0 %v294, 18
  %v346 = vpop.permute.xlu0 %345
  %347 = vrot.lane.b32.xlu0 %v295, 18
  %v348 = vpop.permute.xlu0 %347
  %349 = vrot.lane.b32.xlu0 %v296, 18
  %v350 = vpop.permute.xlu0 %349
  %351 = vrot.lane.b32.xlu0 %v297, 18
  %v352 = vpop.permute.xlu0 %351
  %vm353 = vcmask 146432
  %v354 = vsel %vm353, %v340, %v342
  %v355 = vsel %vm353, %v342, %v344
  %v356 = vsel %vm353, %v344, %v346
  %v357 = vsel %vm353, %v346, %v348
  %v358 = vsel %vm353, %v348, %v350
  %v359 = vsel %vm353, %v350, %v352
  %366 = vst [vmem:[#allocation5 + $0x30] sm:$0xff] %v354
  %367 = vst [vmem:[#allocation5 + $0x38] sm:$0xff] %v355
  %368 = vst [vmem:[#allocation5 + $0x40] sm:$0xff] %v356
  %369 = vst [vmem:[#allocation5 + $0x48] sm:$0xff] %v357
  %370 = vst [vmem:[#allocation5 + $0x50] sm:$0xff] %v358
  %371 = vst [vmem:[#allocation5 + $0x58] sm:$0xff] %v359
  %372 = vrot.lane.b32.xlu0 %v291, 17
  %v373 = vpop.permute.xlu0 %372
  %374 = vrot.lane.b32.xlu0 %v292, 17
  %v375 = vpop.permute.xlu0 %374
  %376 = vrot.lane.b32.xlu0 %v293, 17
  %v377 = vpop.permute.xlu0 %376
  %378 = vrot.lane.b32.xlu0 %v294, 17
  %v379 = vpop.permute.xlu0 %378
  %380 = vrot.lane.b32.xlu0 %v295, 17
  %v381 = vpop.permute.xlu0 %380
  %382 = vrot.lane.b32.xlu0 %v296, 17
  %v383 = vpop.permute.xlu0 %382
  %384 = vrot.lane.b32.xlu0 %v297, 17
  %v385 = vpop.permute.xlu0 %384
  %vm386 = vcmask 138240
  %v387 = vsel %vm386, %v373, %v375
  %v388 = vsel %vm386, %v375, %v377
  %v389 = vsel %vm386, %v377, %v379
  %v390 = vsel %vm386, %v379, %v381
  %v391 = vsel %vm386, %v381, %v383
  %v392 = vsel %vm386, %v383, %v385
  %399 = vst [vmem:[#allocation5 + $0x60] sm:$0xff] %v387
  %400 = vst [vmem:[#allocation5 + $0x68] sm:$0xff] %v388
  %401 = vst [vmem:[#allocation5 + $0x70] sm:$0xff] %v389
  %402 = vst [vmem:[#allocation5 + $0x78] sm:$0xff] %v390
  %403 = vst [vmem:[#allocation5 + $0x80] sm:$0xff] %v391
  %404 = vst [vmem:[#allocation5 + $0x88] sm:$0xff] %v392
  %405 = vrot.lane.b32.xlu0 %v291, 1
  %v406 = vpop.permute.xlu0 %405
  %407 = vrot.lane.b32.xlu0 %v292, 1
  %v408 = vpop.permute.xlu0 %407
  %409 = vrot.lane.b32.xlu0 %v293, 1
  %v410 = vpop.permute.xlu0 %409
  %411 = vrot.lane.b32.xlu0 %v294, 1
  %v412 = vpop.permute.xlu0 %411
  %413 = vrot.lane.b32.xlu0 %v295, 1
  %v414 = vpop.permute.xlu0 %413
  %415 = vrot.lane.b32.xlu0 %v296, 1
  %v416 = vpop.permute.xlu0 %415
  %417 = vrot.lane.b32.xlu0 %v297, 1
  %v418 = vpop.permute.xlu0 %417
  %vm419 = vcmask 7168
  %v420 = vsel %vm419, %v406, %v408
  %v421 = vsel %vm419, %v408, %v410
  %v422 = vsel %vm419, %v410, %v412
  %v423 = vsel %vm419, %v412, %v414
  %v424 = vsel %vm419, %v414, %v416
  %v425 = vsel %vm419, %v416, %v418
  %432 = vst [vmem:[#allocation5 + $0x90] sm:$0xff] %v420
  %433 = vst [vmem:[#allocation5 + $0x98] sm:$0xff] %v421
  %434 = vst [vmem:[#allocation5 + $0xa0] sm:$0xff] %v422
  %435 = vst [vmem:[#allocation5 + $0xa8] sm:$0xff] %v423
  %436 = vst [vmem:[#allocation5 + $0xb0] sm:$0xff] %v424
  %437 = vst [vmem:[#allocation5 + $0xb8] sm:$0xff] %v425
  %438 = vst [vmem:[#allocation5 + $0xc0] sm:$0xff] %v292
  %439 = vst [vmem:[#allocation5 + $0xc8] sm:$0xff] %v293
  %440 = vst [vmem:[#allocation5 + $0xd0] sm:$0xff] %v294
  %441 = vst [vmem:[#allocation5 + $0xd8] sm:$0xff] %v295
  %442 = vst [vmem:[#allocation5 + $0xe0] sm:$0xff] %v296
  %443 = vst [vmem:[#allocation5 + $0xe8] sm:$0xff] %v297
  %445 = vrot.lane.b32.xlu0 %v292, 127
  %v446 = vpop.permute.xlu0 %445
  %447 = vrot.lane.b32.xlu0 %v293, 127
  %v448 = vpop.permute.xlu0 %447
  %449 = vrot.lane.b32.xlu0 %v294, 127
  %v450 = vpop.permute.xlu0 %449
  %451 = vrot.lane.b32.xlu0 %v295, 127
  %v452 = vpop.permute.xlu0 %451
  %453 = vrot.lane.b32.xlu0 %v296, 127
  %v454 = vpop.permute.xlu0 %453
  %455 = vrot.lane.b32.xlu0 %v297, 127
  %v456 = vpop.permute.xlu0 %455
  %457 = vrot.lane.b32.xlu0 %v298, 127
  %v458 = vpop.permute.xlu0 %457
  %vm459 = vcmask 1039360
  %v460 = vsel %vm459, %v446, %v448
  %v461 = vsel %vm459, %v448, %v450
  %v462 = vsel %vm459, %v450, %v452
  %v463 = vsel %vm459, %v452, %v454
  %v464 = vsel %vm459, %v454, %v456
  %v465 = vsel %vm459, %v456, %v458
  %472 = vst [vmem:[#allocation5 + $0xf0] sm:$0xff] %v460
  %473 = vst [vmem:[#allocation5 + $0xf8] sm:$0xff] %v461
  %474 = vst [vmem:[#allocation5 + $0x100] sm:$0xff] %v462
  %475 = vst [vmem:[#allocation5 + $0x108] sm:$0xff] %v463
  %476 = vst [vmem:[#allocation5 + $0x110] sm:$0xff] %v464
  %477 = vst [vmem:[#allocation5 + $0x118] sm:$0xff] %v465
  %478 = vrot.lane.b32.xlu0 %v292, 111
  %v479 = vpop.permute.xlu0 %478
  %480 = vrot.lane.b32.xlu0 %v293, 111
  %v481 = vpop.permute.xlu0 %480
  %482 = vrot.lane.b32.xlu0 %v294, 111
  %v483 = vpop.permute.xlu0 %482
  %484 = vrot.lane.b32.xlu0 %v295, 111
  %v485 = vpop.permute.xlu0 %484
  %486 = vrot.lane.b32.xlu0 %v296, 111
  %v487 = vpop.permute.xlu0 %486
  %488 = vrot.lane.b32.xlu0 %v297, 111
  %v489 = vpop.permute.xlu0 %488
  %490 = vrot.lane.b32.xlu0 %v298, 111
  %v491 = vpop.permute.xlu0 %490
  %vm492 = vcmask 908288
  %v493 = vsel %vm492, %v479, %v481
  %v494 = vsel %vm492, %v481, %v483
  %v495 = vsel %vm492, %v483, %v485
  %v496 = vsel %vm492, %v485, %v487
  %v497 = vsel %vm492, %v487, %v489
  %v498 = vsel %vm492, %v489, %v491
  %505 = vst [vmem:[#allocation5 + $0x120] sm:$0xff] %v493
  %506 = vst [vmem:[#allocation5 + $0x128] sm:$0xff] %v494
  %507 = vst [vmem:[#allocation5 + $0x130] sm:$0xff] %v495
  %508 = vst [vmem:[#allocation5 + $0x138] sm:$0xff] %v496
  %509 = vst [vmem:[#allocation5 + $0x140] sm:$0xff] %v497
  %510 = vst [vmem:[#allocation5 + $0x148] sm:$0xff] %v498
  %511 = vrot.lane.b32.xlu0 %v292, 110
  %v512 = vpop.permute.xlu0 %511
  %513 = vrot.lane.b32.xlu0 %v293, 110
  %v514 = vpop.permute.xlu0 %513
  %515 = vrot.lane.b32.xlu0 %v294, 110
  %v516 = vpop.permute.xlu0 %515
  %517 = vrot.lane.b32.xlu0 %v295, 110
  %v518 = vpop.permute.xlu0 %517
  %519 = vrot.lane.b32.xlu0 %v296, 110
  %v520 = vpop.permute.xlu0 %519
  %521 = vrot.lane.b32.xlu0 %v297, 110
  %v522 = vpop.permute.xlu0 %521
  %523 = vrot.lane.b32.xlu0 %v298, 110
  %v524 = vpop.permute.xlu0 %523
  %vm525 = vcmask 900096
  %v526 = vsel %vm525, %v512, %v514
  %v527 = vsel %vm525, %v514, %v516
  %v528 = vsel %vm525, %v516, %v518
  %v529 = vsel %vm525, %v518, %v520
  %v530 = vsel %vm525, %v520, %v522
  %v531 = vsel %vm525, %v522, %v524
  %538 = vst [vmem:[#allocation5 + $0x150] sm:$0xff] %v526
  %539 = vst [vmem:[#allocation5 + $0x158] sm:$0xff] %v527
  %540 = vst [vmem:[#allocation5 + $0x160] sm:$0xff] %v528
  %541 = vst [vmem:[#allocation5 + $0x168] sm:$0xff] %v529
  %542 = vst [vmem:[#allocation5 + $0x170] sm:$0xff] %v530
  %543 = vst [vmem:[#allocation5 + $0x178] sm:$0xff] %v531
  %544 = vrot.lane.b32.xlu0 %v292, 109
  %v545 = vpop.permute.xlu0 %544
  %546 = vrot.lane.b32.xlu0 %v293, 109
  %v547 = vpop.permute.xlu0 %546
  %548 = vrot.lane.b32.xlu0 %v294, 109
  %v549 = vpop.permute.xlu0 %548
  %550 = vrot.lane.b32.xlu0 %v295, 109
  %v551 = vpop.permute.xlu0 %550
  %552 = vrot.lane.b32.xlu0 %v296, 109
  %v553 = vpop.permute.xlu0 %552
  %554 = vrot.lane.b32.xlu0 %v297, 109
  %v555 = vpop.permute.xlu0 %554
  %556 = vrot.lane.b32.xlu0 %v298, 109
  %v557 = vpop.permute.xlu0 %556
  %vm558 = vcmask 891904
  %v559 = vsel %vm558, %v545, %v547
  %v560 = vsel %vm558, %v547, %v549
  %v561 = vsel %vm558, %v549, %v551
  %v562 = vsel %vm558, %v551, %v553
  %v563 = vsel %vm558, %v553, %v555
  %v564 = vsel %vm558, %v555, %v557
  %571 = vst [vmem:[#allocation5 + $0x180] sm:$0xff] %v559
  %572 = vst [vmem:[#allocation5 + $0x188] sm:$0xff] %v560
  %573 = vst [vmem:[#allocation5 + $0x190] sm:$0xff] %v561
  %574 = vst [vmem:[#allocation5 + $0x198] sm:$0xff] %v562
  %575 = vst [vmem:[#allocation5 + $0x1a0] sm:$0xff] %v563
  %576 = vst [vmem:[#allocation5 + $0x1a8] sm:$0xff] %v564
  %v577 = vld [vmem:[%s1] sm:$0xff]
  %v578 = vld [vmem:[%s1 + $0x8] sm:$0xff]
  %v579 = vld [vmem:[#allocation5] sm:$0xff]
  %v580 = vld [vmem:[#allocation5 + $0x8] sm:$0xff]
  %v581 = vld [vmem:[#allocation5 + $0x10] sm:$0xff]
  %v582 = vld [vmem:[#allocation5 + $0x18] sm:$0xff]
  %v583 = vld [vmem:[#allocation5 + $0x20] sm:$0xff]
  %v584 = vld [vmem:[#allocation5 + $0x28] sm:$0xff]
  %v585 = vld [vmem:[#allocation5 + $0x30] sm:$0xff]
  %v586 = vld [vmem:[#allocation5 + $0x38] sm:$0xff]
  %v587 = vld [vmem:[#allocation5 + $0x40] sm:$0xff]
  %v588 = vld [vmem:[#allocation5 + $0x48] sm:$0xff]
  %v589 = vld [vmem:[#allocation5 + $0x50] sm:$0xff]
  %v590 = vld [vmem:[#allocation5 + $0x58] sm:$0xff]
  %v591 = vld [vmem:[#allocation5 + $0x60] sm:$0xff]
  %v592 = vld [vmem:[#allocation5 + $0x68] sm:$0xff]
  %v593 = vld [vmem:[#allocation5 + $0x70] sm:$0xff]
  %v594 = vld [vmem:[#allocation5 + $0x78] sm:$0xff]
  %v595 = vld [vmem:[#allocation5 + $0x80] sm:$0xff]
  %v596 = vld [vmem:[#allocation5 + $0x88] sm:$0xff]
  %v597 = vld [vmem:[#allocation5 + $0x90] sm:$0xff]
  %v598 = vld [vmem:[#allocation5 + $0x98] sm:$0xff]
  %v599 = vld [vmem:[#allocation5 + $0xa0] sm:$0xff]
  %v600 = vld [vmem:[#allocation5 + $0xa8] sm:$0xff]
  %v601 = vld [vmem:[#allocation5 + $0xb0] sm:$0xff]
  %v602 = vld [vmem:[#allocation5 + $0xb8] sm:$0xff]
  %v603 = vld [vmem:[#allocation5 + $0xc0] sm:$0xff]
  %v604 = vld [vmem:[#allocation5 + $0xc8] sm:$0xff]
  %v605 = vld [vmem:[#allocation5 + $0xd0] sm:$0xff]
  %v606 = vld [vmem:[#allocation5 + $0xd8] sm:$0xff]
  %v607 = vld [vmem:[#allocation5 + $0xe0] sm:$0xff]
  %v608 = vld [vmem:[#allocation5 + $0xe8] sm:$0xff]
  %v609 = vld [vmem:[#allocation5 + $0xf0] sm:$0xff]
  %v610 = vld [vmem:[#allocation5 + $0xf8] sm:$0xff]
  %v611 = vld [vmem:[#allocation5 + $0x100] sm:$0xff]
  %v612 = vld [vmem:[#allocation5 + $0x108] sm:$0xff]
  %v613 = vld [vmem:[#allocation5 + $0x110] sm:$0xff]
  %v614 = vld [vmem:[#allocation5 + $0x118] sm:$0xff]
  %v615 = vld [vmem:[#allocation5 + $0x120] sm:$0xff]
  %v616 = vld [vmem:[#allocation5 + $0x128] sm:$0xff]
  %v617 = vld [vmem:[#allocation5 + $0x130] sm:$0xff]
  %v618 = vld [vmem:[#allocation5 + $0x138] sm:$0xff]
  %v619 = vld [vmem:[#allocation5 + $0x140] sm:$0xff]
  %v620 = vld [vmem:[#allocation5 + $0x148] sm:$0xff]
  %v621 = vld [vmem:[#allocation5 + $0x150] sm:$0xff]
  %v622 = vld [vmem:[#allocation5 + $0x158] sm:$0xff]
  %v623 = vld [vmem:[#allocation5 + $0x160] sm:$0xff]
  %v624 = vld [vmem:[#allocation5 + $0x168] sm:$0xff]
  %v625 = vld [vmem:[#allocation5 + $0x170] sm:$0xff]
  %v626 = vld [vmem:[#allocation5 + $0x178] sm:$0xff]
  %v627 = vld [vmem:[#allocation5 + $0x180] sm:$0xff]
  %v628 = vld [vmem:[#allocation5 + $0x188] sm:$0xff]
  %v629 = vld [vmem:[#allocation5 + $0x190] sm:$0xff]
  %v630 = vld [vmem:[#allocation5 + $0x198] sm:$0xff]
  %v631 = vld [vmem:[#allocation5 + $0x1a0] sm:$0xff]
  %v632 = vld [vmem:[#allocation5 + $0x1a8] sm:$0xff]
  %v633 = vld [vmem:[%s2] sm:$0xff]
  %v634 = vld [vmem:[%s2 + $0x8] sm:$0xff]
  %636 = vset.pattern.permute.xlu0 0
  %637 = vperm.xlu0 %636, %v633
  %v638 = vpop.permute.xlu0 %637
  %641 = vset.pattern.permute.xlu0 0
  %642 = vperm.xlu0 %641, %v634
  %v643 = vpop.permute.xlu0 %642
  %v647 = vunpack.c.l.b16 %v577
  %v648 = vunpack.c.h.b16 %v577
  %v649 = vunpack.c.l.b16 %v578
  %v650 = vunpack.c.h.b16 %v578
  %v651 = vpack.c.b16 %v649, %v647
  %v652 = vpack.c.b16 %v650, %v648
  %vm654 = vcmask 130048
  %v656 = vsel %vm654, %v652, 0
  %658 = vmatprep.subr.bf16.mxu0 %v580
  %659 = vmatpush1.bf16.msra.mxu0 %v579
  %660 = vmatprep.subr.bf16.mxu0 %v586
  %661 = vmatpush1.bf16.msra.mxu0 %v585
  %662 = vmatprep.subr.bf16.mxu0 %v592
  %663 = vmatpush1.bf16.msra.mxu0 %v591
  %664 = vmatprep.subr.bf16.mxu0 %v598
  %665 = vmatpush1.bf16.msra.mxu0 %v597
  %666 = vmatprep.subr.bf16.mxu0 %v604
  %667 = vmatpush1.bf16.msra.mxu0 %v603
  %668 = vmatprep.subr.bf16.mxu0 %v610
  %669 = vmatpush1.bf16.msra.mxu0 %v609
  %670 = vmatprep.subr.bf16.mxu0 %v616
  %671 = vmatpush1.bf16.msra.mxu0 %v615
  %672 = vmatprep.subr.bf16.mxu0 %v622
  %673 = vmatpush1.bf16.msra.mxu0 %v621
  %674 = vmatprep.subr.bf16.mxu0 %v628
  %675 = vmatpush1.bf16.msra.mxu0 %v627
  %676 = vmatprep.subr.bf16.mxu0 0
  %677 = vmatpush1.bf16.msra.mxu0 0
  %678 = vmatprep.subr.bf16.mxu0 0
  %679 = vmatpush1.bf16.msra.mxu0 0
  %680 = vmatprep.subr.bf16.mxu0 0
  %681 = vmatpush1.bf16.msra.mxu0 0
  %682 = vmatprep.subr.bf16.mxu0 0
  %683 = vmatpush1.bf16.msra.mxu0 0
  %684 = vmatprep.subr.bf16.mxu0 0
  %685 = vmatpush1.bf16.msra.mxu0 0
  %686 = vmatprep.subr.bf16.mxu0 0
  %687 = vmatpush1.bf16.msra.mxu0 0
  %688 = vmatprep.subr.bf16.mxu0 0
  %689 = vmatpush1.bf16.msra.mxu0 0
  %690 = vmatprep.mubr.bf16.mxu0 %v656
  %691 = vmatmul.mubr.bf16.gmra.mrb[0].mxu0 %v651
  %v692 = vpop.f32.mrb[0].mxu0
  %v693 = vadd.f32 %v638, %v692
  %v694 = vpop.f32.mrb[0].mxu0
  %v695 = vadd.f32 %v638, %v694
  %v696 = vpop.f32.mrb[0].mxu0
  %v697 = vadd.f32 %v643, %v696
  %v698 = vpop.f32.mrb[0].mxu0
  %v699 = vadd.f32 %v643, %v698
  %700 = vdwg.mxu0
  %701 = vmatprep.subr.bf16.mxu0 %v582
  %702 = vmatpush1.bf16.msra.mxu0 %v581
  %703 = vmatprep.subr.bf16.mxu0 %v588
  %704 = vmatpush1.bf16.msra.mxu0 %v587
  %705 = vmatprep.subr.bf16.mxu0 %v594
  %706 = vmatpush1.bf16.msra.mxu0 %v593
  %707 = vmatprep.subr.bf16.mxu0 %v600
  %708 = vmatpush1.bf16.msra.mxu0 %v599
  %709 = vmatprep.subr.bf16.mxu0 %v606
  %710 = vmatpush1.bf16.msra.mxu0 %v605
  %711 = vmatprep.subr.bf16.mxu0 %v612
  %712 = vmatpush1.bf16.msra.mxu0 %v611
  %713 = vmatprep.subr.bf16.mxu0 %v618
  %714 = vmatpush1.bf16.msra.mxu0 %v617
  %715 = vmatprep.subr.bf16.mxu0 %v624
  %716 = vmatpush1.bf16.msra.mxu0 %v623
  %717 = vmatprep.subr.bf16.mxu0 %v630
  %718 = vmatpush1.bf16.msra.mxu0 %v629
  %719 = vmatprep.subr.bf16.mxu0 0
  %720 = vmatpush1.bf16.msra.mxu0 0
  %721 = vmatprep.subr.bf16.mxu0 0
  %722 = vmatpush1.bf16.msra.mxu0 0
  %723 = vmatprep.subr.bf16.mxu0 0
  %724 = vmatpush1.bf16.msra.mxu0 0
  %725 = vmatprep.subr.bf16.mxu0 0
  %726 = vmatpush1.bf16.msra.mxu0 0
  %727 = vmatprep.subr.bf16.mxu0 0
  %728 = vmatpush1.bf16.msra.mxu0 0
  %729 = vmatprep.subr.bf16.mxu0 0
  %730 = vmatpush1.bf16.msra.mxu0 0
  %731 = vmatprep.subr.bf16.mxu0 0
  %732 = vmatpush1.bf16.msra.mxu0 0
  %733 = vmatprep.mubr.bf16.mxu0 %v656
  %734 = vmatmul.mubr.bf16.gmra.mrb[0].mxu0 %v651
  %v735 = vpop.f32.mrb[0].mxu0
  %v736 = vadd.f32 %v638, %v735
  %v737 = vpop.f32.mrb[0].mxu0
  %v738 = vadd.f32 %v638, %v737
  %v739 = vpop.f32.mrb[0].mxu0
  %v740 = vadd.f32 %v643, %v739
  %v741 = vpop.f32.mrb[0].mxu0
  %v742 = vadd.f32 %v643, %v741
  %743 = vdwg.mxu0
  %744 = vmatprep.subr.bf16.mxu0 %v584
  %745 = vmatpush1.bf16.msra.mxu0 %v583
  %746 = vmatprep.subr.bf16.mxu0 %v590
  %747 = vmatpush1.bf16.msra.mxu0 %v589
  %748 = vmatprep.subr.bf16.mxu0 %v596
  %749 = vmatpush1.bf16.msra.mxu0 %v595
  %750 = vmatprep.subr.bf16.mxu0 %v602
  %751 = vmatpush1.bf16.msra.mxu0 %v601
  %752 = vmatprep.subr.bf16.mxu0 %v608
  %753 = vmatpush1.bf16.msra.mxu0 %v607
  %754 = vmatprep.subr.bf16.mxu0 %v614
  %755 = vmatpush1.bf16.msra.mxu0 %v613
  %756 = vmatprep.subr.bf16.mxu0 %v620
  %757 = vmatpush1.bf16.msra.mxu0 %v619
  %758 = vmatprep.subr.bf16.mxu0 %v626
  %759 = vmatpush1.bf16.msra.mxu0 %v625
  %760 = vmatprep.subr.bf16.mxu0 %v632
  %761 = vmatpush1.bf16.msra.mxu0 %v631
  %762 = vmatprep.subr.bf16.mxu0 0
  %763 = vmatpush1.bf16.msra.mxu0 0
  %764 = vmatprep.subr.bf16.mxu0 0
  %765 = vmatpush1.bf16.msra.mxu0 0
  %766 = vmatprep.subr.bf16.mxu0 0
  %767 = vmatpush1.bf16.msra.mxu0 0
  %768 = vmatprep.subr.bf16.mxu0 0
  %769 = vmatpush1.bf16.msra.mxu0 0
  %770 = vmatprep.subr.bf16.mxu0 0
  %771 = vmatpush1.bf16.msra.mxu0 0
  %772 = vmatprep.subr.bf16.mxu0 0
  %773 = vmatpush1.bf16.msra.mxu0 0
  %774 = vmatprep.subr.bf16.mxu0 0
  %775 = vmatpush1.bf16.msra.mxu0 0
  %776 = vmatprep.mubr.bf16.mxu0 %v656
  %777 = vmatmul.mubr.bf16.gmra.mrb[0].mxu0 %v651
  %v778 = vpop.f32.mrb[0].mxu0
  %v779 = vadd.f32 %v638, %v778
  %v780 = vpop.f32.mrb[0].mxu0
  %v781 = vadd.f32 %v638, %v780
  %v782 = vpop.f32.mrb[0].mxu0
  %v783 = vadd.f32 %v643, %v782
  %v784 = vpop.f32.mrb[0].mxu0
  %v785 = vadd.f32 %v643, %v784
  %786 = vdwg.mxu0
  %v787 = vmax.f32 %v693, 0.0
  %v788 = vmax.f32 %v695, 0.0
  %v789 = vmax.f32 %v736, 0.0
  %v790 = vmax.f32 %v738, 0.0
  %v791 = vmax.f32 %v779, 0.0
  %v792 = vmax.f32 %v781, 0.0
  %v793 = vmax.f32 %v697, 0.0
  %v794 = vmax.f32 %v699, 0.0
  %v795 = vmax.f32 %v740, 0.0
  %v796 = vmax.f32 %v742, 0.0
  %v797 = vmax.f32 %v783, 0.0
  %v798 = vmax.f32 %v785, 0.0
  %v799 = vld [vmem:[%s3] sm:$0x3f]
  %v801 = vlaneseq
  %v802 = vshrl.u32 %v801, 7
  %v803 = vsub.s32 0, %v802
  %v804 = vrot.slane %v799, %v803
  %v805 = vlaneseq
  %v806 = vshrl.u32 %v805, 7
  %v807 = vsub.s32 1, %v806
  %v808 = vrot.slane %v799, %v807
  %v809 = vlaneseq
  %v810 = vshrl.u32 %v809, 7
  %v811 = vsub.s32 2, %v810
  %v812 = vrot.slane %v799, %v811
  %v813 = vlaneseq
  %v814 = vshrl.u32 %v813, 7
  %v815 = vsub.s32 3, %v814
  %v816 = vrot.slane %v799, %v815
  %v817 = vlaneseq
  %v818 = vshrl.u32 %v817, 7
  %v819 = vsub.s32 4, %v818
  %v820 = vrot.slane %v799, %v819
  %v821 = vlaneseq
  %v822 = vshrl.u32 %v821, 7
  %v823 = vsub.s32 5, %v822
  %v824 = vrot.slane %v799, %v823
  %v831 = vmul.f32 %v787, %v804
  %v832 = vmul.f32 %v788, %v808
  %v833 = vmul.f32 %v789, %v812
  %v834 = vmul.f32 %v790, %v816
  %v835 = vmul.f32 %v791, %v820
  %v836 = vmul.f32 %v792, %v824
  %v837 = vmul.f32 %v793, %v804
  %v838 = vmul.f32 %v794, %v808
  %v839 = vmul.f32 %v795, %v812
  %v840 = vmul.f32 %v796, %v816
  %v841 = vmul.f32 %v797, %v820
  %v842 = vmul.f32 %v798, %v824
  %843 = vst [vmem:[#allocation3 + $0x8] sm:$0xff] %v831
  %844 = vst [vmem:[#allocation3 + $0x10] sm:$0xff] %v832
  %845 = vst [vmem:[#allocation3 + $0x18] sm:$0xff] %v833
  %846 = vst [vmem:[#allocation3 + $0x20] sm:$0xff] %v834
  %847 = vst [vmem:[#allocation3 + $0x28] sm:$0xff] %v835
  %848 = vst [vmem:[#allocation3 + $0x30] sm:$0xff] %v836
  %849 = vst [vmem:[#allocation3 + $0x48] sm:$0xff] %v837
  %850 = vst [vmem:[#allocation3 + $0x50] sm:$0xff] %v838
  %851 = vst [vmem:[#allocation3 + $0x58] sm:$0xff] %v839
  %852 = vst [vmem:[#allocation3 + $0x60] sm:$0xff] %v840
  %853 = vst [vmem:[#allocation3 + $0x68] sm:$0xff] %v841
  %854 = vst [vmem:[#allocation3 + $0x70] sm:$0xff] %v842
  %v855 = vld [vmem:[#allocation3] sm:$0xff]
  %v856 = vld [vmem:[#allocation3 + $0x8] sm:$0xff]
  %v857 = vld [vmem:[#allocation3 + $0x10] sm:$0xff]
  %v858 = vld [vmem:[#allocation3 + $0x18] sm:$0xff]
  %v859 = vld [vmem:[#allocation3 + $0x20] sm:$0xff]
  %v860 = vld [vmem:[#allocation3 + $0x28] sm:$0xff]
  %v861 = vld [vmem:[#allocation3 + $0x30] sm:$0xff]
  %v862 = vld [vmem:[#allocation3 + $0x38] sm:$0xff]
  %v863 = vld [vmem:[#allocation3 + $0x40] sm:$0xff]
  %v864 = vld [vmem:[#allocation3 + $0x48] sm:$0xff]
  %v865 = vld [vmem:[#allocation3 + $0x50] sm:$0xff]
  %v866 = vld [vmem:[#allocation3 + $0x58] sm:$0xff]
  %v867 = vld [vmem:[#allocation3 + $0x60] sm:$0xff]
  %v868 = vld [vmem:[#allocation3 + $0x68] sm:$0xff]
  %v869 = vld [vmem:[#allocation3 + $0x70] sm:$0xff]
  %v870 = vld [vmem:[#allocation3 + $0x78] sm:$0xff]
  %v871 = vpack.c.bf16 %v863, %v855
  %v872 = vpack.c.bf16 %v864, %v856
  %v873 = vpack.c.bf16 %v865, %v857
  %v874 = vpack.c.bf16 %v866, %v858
  %v875 = vpack.c.bf16 %v867, %v859
  %v876 = vpack.c.bf16 %v868, %v860
  %v877 = vpack.c.bf16 %v869, %v861
  %v878 = vpack.c.bf16 %v870, %v862
  %886 = vrot.lane.b32.xlu0 %v871, 19
  %v887 = vpop.permute.xlu0 %886
  %888 = vrot.lane.b32.xlu0 %v872, 19
  %v889 = vpop.permute.xlu0 %888
  %890 = vrot.lane.b32.xlu0 %v873, 19
  %v891 = vpop.permute.xlu0 %890
  %892 = vrot.lane.b32.xlu0 %v874, 19
  %v893 = vpop.permute.xlu0 %892
  %894 = vrot.lane.b32.xlu0 %v875, 19
  %v895 = vpop.permute.xlu0 %894
  %896 = vrot.lane.b32.xlu0 %v876, 19
  %v897 = vpop.permute.xlu0 %896
  %898 = vrot.lane.b32.xlu0 %v877, 19
  %v899 = vpop.permute.xlu0 %898
  %v900 = vsel %vm320, %v887, %v889
  %v901 = vsel %vm320, %v889, %v891
  %v902 = vsel %vm320, %v891, %v893
  %v903 = vsel %vm320, %v893, %v895
  %v904 = vsel %vm320, %v895, %v897
  %v905 = vsel %vm320, %v897, %v899
  %912 = vst [vmem:[#allocation5] sm:$0xff] %v900
  %913 = vst [vmem:[#allocation5 + $0x8] sm:$0xff] %v901
  %914 = vst [vmem:[#allocation5 + $0x10] sm:$0xff] %v902
  %915 = vst [vmem:[#allocation5 + $0x18] sm:$0xff] %v903
  %916 = vst [vmem:[#allocation5 + $0x20] sm:$0xff] %v904
  %917 = vst [vmem:[#allocation5 + $0x28] sm:$0xff] %v905
  %918 = vrot.lane.b32.xlu0 %v871, 18
  %v919 = vpop.permute.xlu0 %918
  %920 = vrot.lane.b32.xlu0 %v872, 18
  %v921 = vpop.permute.xlu0 %920
  %922 = vrot.lane.b32.xlu0 %v873, 18
  %v923 = vpop.permute.xlu0 %922
  %924 = vrot.lane.b32.xlu0 %v874, 18
  %v925 = vpop.permute.xlu0 %924
  %926 = vrot.lane.b32.xlu0 %v875, 18
  %v927 = vpop.permute.xlu0 %926
  %928 = vrot.lane.b32.xlu0 %v876, 18
  %v929 = vpop.permute.xlu0 %928
  %930 = vrot.lane.b32.xlu0 %v877, 18
  %v931 = vpop.permute.xlu0 %930
  %v932 = vsel %vm353, %v919, %v921
  %v933 = vsel %vm353, %v921, %v923
  %v934 = vsel %vm353, %v923, %v925
  %v935 = vsel %vm353, %v925, %v927
  %v936 = vsel %vm353, %v927, %v929
  %v937 = vsel %vm353, %v929, %v931
  %944 = vst [vmem:[#allocation5 + $0x30] sm:$0xff] %v932
  %945 = vst [vmem:[#allocation5 + $0x38] sm:$0xff] %v933
  %946 = vst [vmem:[#allocation5 + $0x40] sm:$0xff] %v934
  %947 = vst [vmem:[#allocation5 + $0x48] sm:$0xff] %v935
  %948 = vst [vmem:[#allocation5 + $0x50] sm:$0xff] %v936
  %949 = vst [vmem:[#allocation5 + $0x58] sm:$0xff] %v937
  %950 = vrot.lane.b32.xlu0 %v871, 17
  %v951 = vpop.permute.xlu0 %950
  %952 = vrot.lane.b32.xlu0 %v872, 17
  %v953 = vpop.permute.xlu0 %952
  %954 = vrot.lane.b32.xlu0 %v873, 17
  %v955 = vpop.permute.xlu0 %954
  %956 = vrot.lane.b32.xlu0 %v874, 17
  %v957 = vpop.permute.xlu0 %956
  %958 = vrot.lane.b32.xlu0 %v875, 17
  %v959 = vpop.permute.xlu0 %958
  %960 = vrot.lane.b32.xlu0 %v876, 17
  %v961 = vpop.permute.xlu0 %960
  %962 = vrot.lane.b32.xlu0 %v877, 17
  %v963 = vpop.permute.xlu0 %962
  %v964 = vsel %vm386, %v951, %v953
  %v965 = vsel %vm386, %v953, %v955
  %v966 = vsel %vm386, %v955, %v957
  %v967 = vsel %vm386, %v957, %v959
  %v968 = vsel %vm386, %v959, %v961
  %v969 = vsel %vm386, %v961, %v963
  %976 = vst [vmem:[#allocation5 + $0x60] sm:$0xff] %v964
  %977 = vst [vmem:[#allocation5 + $0x68] sm:$0xff] %v965
  %978 = vst [vmem:[#allocation5 + $0x70] sm:$0xff] %v966
  %979 = vst [vmem:[#allocation5 + $0x78] sm:$0xff] %v967
  %980 = vst [vmem:[#allocation5 + $0x80] sm:$0xff] %v968
  %981 = vst [vmem:[#allocation5 + $0x88] sm:$0xff] %v969
  %982 = vrot.lane.b32.xlu0 %v871, 1
  %v983 = vpop.permute.xlu0 %982
  %984 = vrot.lane.b32.xlu0 %v872, 1
  %v985 = vpop.permute.xlu0 %984
  %986 = vrot.lane.b32.xlu0 %v873, 1
  %v987 = vpop.permute.xlu0 %986
  %988 = vrot.lane.b32.xlu0 %v874, 1
  %v989 = vpop.permute.xlu0 %988
  %990 = vrot.lane.b32.xlu0 %v875, 1
  %v991 = vpop.permute.xlu0 %990
  %992 = vrot.lane.b32.xlu0 %v876, 1
  %v993 = vpop.permute.xlu0 %992
  %994 = vrot.lane.b32.xlu0 %v877, 1
  %v995 = vpop.permute.xlu0 %994
  %v996 = vsel %vm419, %v983, %v985
  %v997 = vsel %vm419, %v985, %v987
  %v998 = vsel %vm419, %v987, %v989
  %v999 = vsel %vm419, %v989, %v991
  %v1000 = vsel %vm419, %v991, %v993
  %v1001 = vsel %vm419, %v993, %v995
  %1008 = vst [vmem:[#allocation5 + $0x90] sm:$0xff] %v996
  %1009 = vst [vmem:[#allocation5 + $0x98] sm:$0xff] %v997
  %1010 = vst [vmem:[#allocation5 + $0xa0] sm:$0xff] %v998
  %1011 = vst [vmem:[#allocation5 + $0xa8] sm:$0xff] %v999
  %1012 = vst [vmem:[#allocation5 + $0xb0] sm:$0xff] %v1000
  %1013 = vst [vmem:[#allocation5 + $0xb8] sm:$0xff] %v1001
  %1014 = vst [vmem:[#allocation5 + $0xc0] sm:$0xff] %v872
  %1015 = vst [vmem:[#allocation5 + $0xc8] sm:$0xff] %v873
  %1016 = vst [vmem:[#allocation5 + $0xd0] sm:$0xff] %v874
  %1017 = vst [vmem:[#allocation5 + $0xd8] sm:$0xff] %v875
  %1018 = vst [vmem:[#allocation5 + $0xe0] sm:$0xff] %v876
  %1019 = vst [vmem:[#allocation5 + $0xe8] sm:$0xff] %v877
  %1021 = vrot.lane.b32.xlu0 %v872, 127
  %v1022 = vpop.permute.xlu0 %1021
  %1023 = vrot.lane.b32.xlu0 %v873, 127
  %v1024 = vpop.permute.xlu0 %1023
  %1025 = vrot.lane.b32.xlu0 %v874, 127
  %v1026 = vpop.permute.xlu0 %1025
  %1027 = vrot.lane.b32.xlu0 %v875, 127
  %v1028 = vpop.permute.xlu0 %1027
  %1029 = vrot.lane.b32.xlu0 %v876, 127
  %v1030 = vpop.permute.xlu0 %1029
  %1031 = vrot.lane.b32.xlu0 %v877, 127
  %v1032 = vpop.permute.xlu0 %1031
  %1033 = vrot.lane.b32.xlu0 %v878, 127
  %v1034 = vpop.permute.xlu0 %1033
  %v1035 = vsel %vm459, %v1022, %v1024
  %v1036 = vsel %vm459, %v1024, %v1026
  %v1037 = vsel %vm459, %v1026, %v1028
  %v1038 = vsel %vm459, %v1028, %v1030
  %v1039 = vsel %vm459, %v1030, %v1032
  %v1040 = vsel %vm459, %v1032, %v1034
  %1047 = vst [vmem:[#allocation5 + $0xf0] sm:$0xff] %v1035
  %1048 = vst [vmem:[#allocation5 + $0xf8] sm:$0xff] %v1036
  %1049 = vst [vmem:[#allocation5 + $0x100] sm:$0xff] %v1037
  %1050 = vst [vmem:[#allocation5 + $0x108] sm:$0xff] %v1038
  %1051 = vst [vmem:[#allocation5 + $0x110] sm:$0xff] %v1039
  %1052 = vst [vmem:[#allocation5 + $0x118] sm:$0xff] %v1040
  %1053 = vrot.lane.b32.xlu0 %v872, 111
  %v1054 = vpop.permute.xlu0 %1053
  %1055 = vrot.lane.b32.xlu0 %v873, 111
  %v1056 = vpop.permute.xlu0 %1055
  %1057 = vrot.lane.b32.xlu0 %v874, 111
  %v1058 = vpop.permute.xlu0 %1057
  %1059 = vrot.lane.b32.xlu0 %v875, 111
  %v1060 = vpop.permute.xlu0 %1059
  %1061 = vrot.lane.b32.xlu0 %v876, 111
  %v1062 = vpop.permute.xlu0 %1061
  %1063 = vrot.lane.b32.xlu0 %v877, 111
  %v1064 = vpop.permute.xlu0 %1063
  %1065 = vrot.lane.b32.xlu0 %v878, 111
  %v1066 = vpop.permute.xlu0 %1065
  %v1067 = vsel %vm492, %v1054, %v1056
  %v1068 = vsel %vm492, %v1056, %v1058
  %v1069 = vsel %vm492, %v1058, %v1060
  %v1070 = vsel %vm492, %v1060, %v1062
  %v1071 = vsel %vm492, %v1062, %v1064
  %v1072 = vsel %vm492, %v1064, %v1066
  %1079 = vst [vmem:[#allocation5 + $0x120] sm:$0xff] %v1067
  %1080 = vst [vmem:[#allocation5 + $0x128] sm:$0xff] %v1068
  %1081 = vst [vmem:[#allocation5 + $0x130] sm:$0xff] %v1069
  %1082 = vst [vmem:[#allocation5 + $0x138] sm:$0xff] %v1070
  %1083 = vst [vmem:[#allocation5 + $0x140] sm:$0xff] %v1071
  %1084 = vst [vmem:[#allocation5 + $0x148] sm:$0xff] %v1072
  %1085 = vrot.lane.b32.xlu0 %v872, 110
  %v1086 = vpop.permute.xlu0 %1085
  %1087 = vrot.lane.b32.xlu0 %v873, 110
  %v1088 = vpop.permute.xlu0 %1087
  %1089 = vrot.lane.b32.xlu0 %v874, 110
  %v1090 = vpop.permute.xlu0 %1089
  %1091 = vrot.lane.b32.xlu0 %v875, 110
  %v1092 = vpop.permute.xlu0 %1091
  %1093 = vrot.lane.b32.xlu0 %v876, 110
  %v1094 = vpop.permute.xlu0 %1093
  %1095 = vrot.lane.b32.xlu0 %v877, 110
  %v1096 = vpop.permute.xlu0 %1095
  %1097 = vrot.lane.b32.xlu0 %v878, 110
  %v1098 = vpop.permute.xlu0 %1097
  %v1099 = vsel %vm525, %v1086, %v1088
  %v1100 = vsel %vm525, %v1088, %v1090
  %v1101 = vsel %vm525, %v1090, %v1092
  %v1102 = vsel %vm525, %v1092, %v1094
  %v1103 = vsel %vm525, %v1094, %v1096
  %v1104 = vsel %vm525, %v1096, %v1098
  %1111 = vst [vmem:[#allocation5 + $0x150] sm:$0xff] %v1099
  %1112 = vst [vmem:[#allocation5 + $0x158] sm:$0xff] %v1100
  %1113 = vst [vmem:[#allocation5 + $0x160] sm:$0xff] %v1101
  %1114 = vst [vmem:[#allocation5 + $0x168] sm:$0xff] %v1102
  %1115 = vst [vmem:[#allocation5 + $0x170] sm:$0xff] %v1103
  %1116 = vst [vmem:[#allocation5 + $0x178] sm:$0xff] %v1104
  %1117 = vrot.lane.b32.xlu0 %v872, 109
  %v1118 = vpop.permute.xlu0 %1117
  %1119 = vrot.lane.b32.xlu0 %v873, 109
  %v1120 = vpop.permute.xlu0 %1119
  %1121 = vrot.lane.b32.xlu0 %v874, 109
  %v1122 = vpop.permute.xlu0 %1121
  %1123 = vrot.lane.b32.xlu0 %v875, 109
  %v1124 = vpop.permute.xlu0 %1123
  %1125 = vrot.lane.b32.xlu0 %v876, 109
  %v1126 = vpop.permute.xlu0 %1125
  %1127 = vrot.lane.b32.xlu0 %v877, 109
  %v1128 = vpop.permute.xlu0 %1127
  %1129 = vrot.lane.b32.xlu0 %v878, 109
  %v1130 = vpop.permute.xlu0 %1129
  %v1131 = vsel %vm558, %v1118, %v1120
  %v1132 = vsel %vm558, %v1120, %v1122
  %v1133 = vsel %vm558, %v1122, %v1124
  %v1134 = vsel %vm558, %v1124, %v1126
  %v1135 = vsel %vm558, %v1126, %v1128
  %v1136 = vsel %vm558, %v1128, %v1130
  %1143 = vst [vmem:[#allocation5 + $0x180] sm:$0xff] %v1131
  %1144 = vst [vmem:[#allocation5 + $0x188] sm:$0xff] %v1132
  %1145 = vst [vmem:[#allocation5 + $0x190] sm:$0xff] %v1133
  %1146 = vst [vmem:[#allocation5 + $0x198] sm:$0xff] %v1134
  %1147 = vst [vmem:[#allocation5 + $0x1a0] sm:$0xff] %v1135
  %1148 = vst [vmem:[#allocation5 + $0x1a8] sm:$0xff] %v1136
  %s1149 = scalar_lea.vmem %s1, 16
  %v1150 = vld [vmem:[%s1149] sm:$0xff]
  %v1151 = vld [vmem:[%s1149 + $0x8] sm:$0xff]
  %v1152 = vld [vmem:[#allocation5] sm:$0xff]
  %v1153 = vld [vmem:[#allocation5 + $0x8] sm:$0xff]
  %v1154 = vld [vmem:[#allocation5 + $0x10] sm:$0xff]
  %v1155 = vld [vmem:[#allocation5 + $0x18] sm:$0xff]
  %v1156 = vld [vmem:[#allocation5 + $0x20] sm:$0xff]
  %v1157 = vld [vmem:[#allocation5 + $0x28] sm:$0xff]
  %v1158 = vld [vmem:[#allocation5 + $0x30] sm:$0xff]
  %v1159 = vld [vmem:[#allocation5 + $0x38] sm:$0xff]
  %v1160 = vld [vmem:[#allocation5 + $0x40] sm:$0xff]
  %v1161 = vld [vmem:[#allocation5 + $0x48] sm:$0xff]
  %v1162 = vld [vmem:[#allocation5 + $0x50] sm:$0xff]
  %v1163 = vld [vmem:[#allocation5 + $0x58] sm:$0xff]
  %v1164 = vld [vmem:[#allocation5 + $0x60] sm:$0xff]
  %v1165 = vld [vmem:[#allocation5 + $0x68] sm:$0xff]
  %v1166 = vld [vmem:[#allocation5 + $0x70] sm:$0xff]
  %v1167 = vld [vmem:[#allocation5 + $0x78] sm:$0xff]
  %v1168 = vld [vmem:[#allocation5 + $0x80] sm:$0xff]
  %v1169 = vld [vmem:[#allocation5 + $0x88] sm:$0xff]
  %v1170 = vld [vmem:[#allocation5 + $0x90] sm:$0xff]
  %v1171 = vld [vmem:[#allocation5 + $0x98] sm:$0xff]
  %v1172 = vld [vmem:[#allocation5 + $0xa0] sm:$0xff]
  %v1173 = vld [vmem:[#allocation5 + $0xa8] sm:$0xff]
  %v1174 = vld [vmem:[#allocation5 + $0xb0] sm:$0xff]
  %v1175 = vld [vmem:[#allocation5 + $0xb8] sm:$0xff]
  %v1176 = vld [vmem:[#allocation5 + $0xc0] sm:$0xff]
  %v1177 = vld [vmem:[#allocation5 + $0xc8] sm:$0xff]
  %v1178 = vld [vmem:[#allocation5 + $0xd0] sm:$0xff]
  %v1179 = vld [vmem:[#allocation5 + $0xd8] sm:$0xff]
  %v1180 = vld [vmem:[#allocation5 + $0xe0] sm:$0xff]
  %v1181 = vld [vmem:[#allocation5 + $0xe8] sm:$0xff]
  %v1182 = vld [vmem:[#allocation5 + $0xf0] sm:$0xff]
  %v1183 = vld [vmem:[#allocation5 + $0xf8] sm:$0xff]
  %v1184 = vld [vmem:[#allocation5 + $0x100] sm:$0xff]
  %v1185 = vld [vmem:[#allocation5 + $0x108] sm:$0xff]
  %v1186 = vld [vmem:[#allocation5 + $0x110] sm:$0xff]
  %v1187 = vld [vmem:[#allocation5 + $0x118] sm:$0xff]
  %v1188 = vld [vmem:[#allocation5 + $0x120] sm:$0xff]
  %v1189 = vld [vmem:[#allocation5 + $0x128] sm:$0xff]
  %v1190 = vld [vmem:[#allocation5 + $0x130] sm:$0xff]
  %v1191 = vld [vmem:[#allocation5 + $0x138] sm:$0xff]
  %v1192 = vld [vmem:[#allocation5 + $0x140] sm:$0xff]
  %v1193 = vld [vmem:[#allocation5 + $0x148] sm:$0xff]
  %v1194 = vld [vmem:[#allocation5 + $0x150] sm:$0xff]
  %v1195 = vld [vmem:[#allocation5 + $0x158] sm:$0xff]
  %v1196 = vld [vmem:[#allocation5 + $0x160] sm:$0xff]
  %v1197 = vld [vmem:[#allocation5 + $0x168] sm:$0xff]
  %v1198 = vld [vmem:[#allocation5 + $0x170] sm:$0xff]
  %v1199 = vld [vmem:[#allocation5 + $0x178] sm:$0xff]
  %v1200 = vld [vmem:[#allocation5 + $0x180] sm:$0xff]
  %v1201 = vld [vmem:[#allocation5 + $0x188] sm:$0xff]
  %v1202 = vld [vmem:[#allocation5 + $0x190] sm:$0xff]
  %v1203 = vld [vmem:[#allocation5 + $0x198] sm:$0xff]
  %v1204 = vld [vmem:[#allocation5 + $0x1a0] sm:$0xff]
  %v1205 = vld [vmem:[#allocation5 + $0x1a8] sm:$0xff]
  %s1206 = scalar_lea.vmem %s2, 16
  %v1207 = vld [vmem:[%s1206] sm:$0xff]
  %v1208 = vld [vmem:[%s1206 + $0x8] sm:$0xff]
  %1210 = vset.pattern.permute.xlu0 0
  %1211 = vperm.xlu0 %1210, %v1207
  %v1212 = vpop.permute.xlu0 %1211
  %1215 = vset.pattern.permute.xlu0 0
  %1216 = vperm.xlu0 %1215, %v1208
  %v1217 = vpop.permute.xlu0 %1216
  %v1221 = vunpack.c.l.b16 %v1150
  %v1222 = vunpack.c.h.b16 %v1150
  %v1223 = vunpack.c.l.b16 %v1151
  %v1224 = vunpack.c.h.b16 %v1151
  %v1225 = vpack.c.b16 %v1223, %v1221
  %v1226 = vpack.c.b16 %v1224, %v1222
  %v1229 = vsel %vm654, %v1226, 0
  %1231 = vmatprep.subr.bf16.mxu0 %v1153
  %1232 = vmatpush1.bf16.msra.mxu0 %v1152
  %1233 = vmatprep.subr.bf16.mxu0 %v1159
  %1234 = vmatpush1.bf16.msra.mxu0 %v1158
  %1235 = vmatprep.subr.bf16.mxu0 %v1165
  %1236 = vmatpush1.bf16.msra.mxu0 %v1164
  %1237 = vmatprep.subr.bf16.mxu0 %v1171
  %1238 = vmatpush1.bf16.msra.mxu0 %v1170
  %1239 = vmatprep.subr.bf16.mxu0 %v1177
  %1240 = vmatpush1.bf16.msra.mxu0 %v1176
  %1241 = vmatprep.subr.bf16.mxu0 %v1183
  %1242 = vmatpush1.bf16.msra.mxu0 %v1182
  %1243 = vmatprep.subr.bf16.mxu0 %v1189
  %1244 = vmatpush1.bf16.msra.mxu0 %v1188
  %1245 = vmatprep.subr.bf16.mxu0 %v1195
  %1246 = vmatpush1.bf16.msra.mxu0 %v1194
  %1247 = vmatprep.subr.bf16.mxu0 %v1201
  %1248 = vmatpush1.bf16.msra.mxu0 %v1200
  %1249 = vmatprep.subr.bf16.mxu0 0
  %1250 = vmatpush1.bf16.msra.mxu0 0
  %1251 = vmatprep.subr.bf16.mxu0 0
  %1252 = vmatpush1.bf16.msra.mxu0 0
  %1253 = vmatprep.subr.bf16.mxu0 0
  %1254 = vmatpush1.bf16.msra.mxu0 0
  %1255 = vmatprep.subr.bf16.mxu0 0
  %1256 = vmatpush1.bf16.msra.mxu0 0
  %1257 = vmatprep.subr.bf16.mxu0 0
  %1258 = vmatpush1.bf16.msra.mxu0 0
  %1259 = vmatprep.subr.bf16.mxu0 0
  %1260 = vmatpush1.bf16.msra.mxu0 0
  %1261 = vmatprep.subr.bf16.mxu0 0
  %1262 = vmatpush1.bf16.msra.mxu0 0
  %1263 = vmatprep.mubr.bf16.mxu0 %v1229
  %1264 = vmatmul.mubr.bf16.gmra.mrb[0].mxu0 %v1225
  %v1265 = vpop.f32.mrb[0].mxu0
  %v1266 = vadd.f32 %v1212, %v1265
  %v1267 = vpop.f32.mrb[0].mxu0
  %v1268 = vadd.f32 %v1212, %v1267
  %v1269 = vpop.f32.mrb[0].mxu0
  %v1270 = vadd.f32 %v1217, %v1269
  %v1271 = vpop.f32.mrb[0].mxu0
  %v1272 = vadd.f32 %v1217, %v1271
  %1273 = vdwg.mxu0
  %1274 = vmatprep.subr.bf16.mxu0 %v1155
  %1275 = vmatpush1.bf16.msra.mxu0 %v1154
  %1276 = vmatprep.subr.bf16.mxu0 %v1161
  %1277 = vmatpush1.bf16.msra.mxu0 %v1160
  %1278 = vmatprep.subr.bf16.mxu0 %v1167
  %1279 = vmatpush1.bf16.msra.mxu0 %v1166
  %1280 = vmatprep.subr.bf16.mxu0 %v1173
  %1281 = vmatpush1.bf16.msra.mxu0 %v1172
  %1282 = vmatprep.subr.bf16.mxu0 %v1179
  %1283 = vmatpush1.bf16.msra.mxu0 %v1178
  %1284 = vmatprep.subr.bf16.mxu0 %v1185
  %1285 = vmatpush1.bf16.msra.mxu0 %v1184
  %1286 = vmatprep.subr.bf16.mxu0 %v1191
  %1287 = vmatpush1.bf16.msra.mxu0 %v1190
  %1288 = vmatprep.subr.bf16.mxu0 %v1197
  %1289 = vmatpush1.bf16.msra.mxu0 %v1196
  %1290 = vmatprep.subr.bf16.mxu0 %v1203
  %1291 = vmatpush1.bf16.msra.mxu0 %v1202
  %1292 = vmatprep.subr.bf16.mxu0 0
  %1293 = vmatpush1.bf16.msra.mxu0 0
  %1294 = vmatprep.subr.bf16.mxu0 0
  %1295 = vmatpush1.bf16.msra.mxu0 0
  %1296 = vmatprep.subr.bf16.mxu0 0
  %1297 = vmatpush1.bf16.msra.mxu0 0
  %1298 = vmatprep.subr.bf16.mxu0 0
  %1299 = vmatpush1.bf16.msra.mxu0 0
  %1300 = vmatprep.subr.bf16.mxu0 0
  %1301 = vmatpush1.bf16.msra.mxu0 0
  %1302 = vmatprep.subr.bf16.mxu0 0
  %1303 = vmatpush1.bf16.msra.mxu0 0
  %1304 = vmatprep.subr.bf16.mxu0 0
  %1305 = vmatpush1.bf16.msra.mxu0 0
  %1306 = vmatprep.mubr.bf16.mxu0 %v1229
  %1307 = vmatmul.mubr.bf16.gmra.mrb[0].mxu0 %v1225
  %v1308 = vpop.f32.mrb[0].mxu0
  %v1309 = vadd.f32 %v1212, %v1308
  %v1310 = vpop.f32.mrb[0].mxu0
  %v1311 = vadd.f32 %v1212, %v1310
  %v1312 = vpop.f32.mrb[0].mxu0
  %v1313 = vadd.f32 %v1217, %v1312
  %v1314 = vpop.f32.mrb[0].mxu0
  %v1315 = vadd.f32 %v1217, %v1314
  %1316 = vdwg.mxu0
  %1317 = vmatprep.subr.bf16.mxu0 %v1157
  %1318 = vmatpush1.bf16.msra.mxu0 %v1156
  %1319 = vmatprep.subr.bf16.mxu0 %v1163
  %1320 = vmatpush1.bf16.msra.mxu0 %v1162
  %1321 = vmatprep.subr.bf16.mxu0 %v1169
  %1322 = vmatpush1.bf16.msra.mxu0 %v1168
  %1323 = vmatprep.subr.bf16.mxu0 %v1175
  %1324 = vmatpush1.bf16.msra.mxu0 %v1174
  %1325 = vmatprep.subr.bf16.mxu0 %v1181
  %1326 = vmatpush1.bf16.msra.mxu0 %v1180
  %1327 = vmatprep.subr.bf16.mxu0 %v1187
  %1328 = vmatpush1.bf16.msra.mxu0 %v1186
  %1329 = vmatprep.subr.bf16.mxu0 %v1193
  %1330 = vmatpush1.bf16.msra.mxu0 %v1192
  %1331 = vmatprep.subr.bf16.mxu0 %v1199
  %1332 = vmatpush1.bf16.msra.mxu0 %v1198
  %1333 = vmatprep.subr.bf16.mxu0 %v1205
  %1334 = vmatpush1.bf16.msra.mxu0 %v1204
  %1335 = vmatprep.subr.bf16.mxu0 0
  %1336 = vmatpush1.bf16.msra.mxu0 0
  %1337 = vmatprep.subr.bf16.mxu0 0
  %1338 = vmatpush1.bf16.msra.mxu0 0
  %1339 = vmatprep.subr.bf16.mxu0 0
  %1340 = vmatpush1.bf16.msra.mxu0 0
  %1341 = vmatprep.subr.bf16.mxu0 0
  %1342 = vmatpush1.bf16.msra.mxu0 0
  %1343 = vmatprep.subr.bf16.mxu0 0
  %1344 = vmatpush1.bf16.msra.mxu0 0
  %1345 = vmatprep.subr.bf16.mxu0 0
  %1346 = vmatpush1.bf16.msra.mxu0 0
  %1347 = vmatprep.subr.bf16.mxu0 0
  %1348 = vmatpush1.bf16.msra.mxu0 0
  %1349 = vmatprep.mubr.bf16.mxu0 %v1229
  %1350 = vmatmul.mubr.bf16.gmra.mrb[0].mxu0 %v1225
  %v1351 = vpop.f32.mrb[0].mxu0
  %v1352 = vadd.f32 %v1212, %v1351
  %v1353 = vpop.f32.mrb[0].mxu0
  %v1354 = vadd.f32 %v1212, %v1353
  %v1355 = vpop.f32.mrb[0].mxu0
  %v1356 = vadd.f32 %v1217, %v1355
  %v1357 = vpop.f32.mrb[0].mxu0
  %v1358 = vadd.f32 %v1217, %v1357
  %1359 = vdwg.mxu0
  %v1360 = vmax.f32 %v1266, 0.0
  %v1361 = vmax.f32 %v1268, 0.0
  %v1362 = vmax.f32 %v1309, 0.0
  %v1363 = vmax.f32 %v1311, 0.0
  %v1364 = vmax.f32 %v1352, 0.0
  %v1365 = vmax.f32 %v1354, 0.0
  %v1366 = vmax.f32 %v1270, 0.0
  %v1367 = vmax.f32 %v1272, 0.0
  %v1368 = vmax.f32 %v1313, 0.0
  %v1369 = vmax.f32 %v1315, 0.0
  %v1370 = vmax.f32 %v1356, 0.0
  %v1371 = vmax.f32 %v1358, 0.0
  %v1372 = vld [vmem:[%s3] sm:$0x3f]
  %v1374 = vlaneseq
  %v1375 = vshrl.u32 %v1374, 7
  %v1376 = vsub.s32 0, %v1375
  %v1377 = vrot.slane %v1372, %v1376
  %v1378 = vlaneseq
  %v1379 = vshrl.u32 %v1378, 7
  %v1380 = vsub.s32 1, %v1379
  %v1381 = vrot.slane %v1372, %v1380
  %v1382 = vlaneseq
  %v1383 = vshrl.u32 %v1382, 7
  %v1384 = vsub.s32 2, %v1383
  %v1385 = vrot.slane %v1372, %v1384
  %v1386 = vlaneseq
  %v1387 = vshrl.u32 %v1386, 7
  %v1388 = vsub.s32 3, %v1387
  %v1389 = vrot.slane %v1372, %v1388
  %v1390 = vlaneseq
  %v1391 = vshrl.u32 %v1390, 7
  %v1392 = vsub.s32 4, %v1391
  %v1393 = vrot.slane %v1372, %v1392
  %v1394 = vlaneseq
  %v1395 = vshrl.u32 %v1394, 7
  %v1396 = vsub.s32 5, %v1395
  %v1397 = vrot.slane %v1372, %v1396
  %v1404 = vmul.f32 %v1360, %v1377
  %v1405 = vmul.f32 %v1361, %v1381
  %v1406 = vmul.f32 %v1362, %v1385
  %v1407 = vmul.f32 %v1363, %v1389
  %v1408 = vmul.f32 %v1364, %v1393
  %v1409 = vmul.f32 %v1365, %v1397
  %v1410 = vmul.f32 %v1366, %v1377
  %v1411 = vmul.f32 %v1367, %v1381
  %v1412 = vmul.f32 %v1368, %v1385
  %v1413 = vmul.f32 %v1369, %v1389
  %v1414 = vmul.f32 %v1370, %v1393
  %v1415 = vmul.f32 %v1371, %v1397
  %1416 = vst [vmem:[#allocation4 + $0x8] sm:$0xff] %v1404
  %1417 = vst [vmem:[#allocation4 + $0x10] sm:$0xff] %v1405
  %1418 = vst [vmem:[#allocation4 + $0x18] sm:$0xff] %v1406
  %1419 = vst [vmem:[#allocation4 + $0x20] sm:$0xff] %v1407
  %1420 = vst [vmem:[#allocation4 + $0x28] sm:$0xff] %v1408
  %1421 = vst [vmem:[#allocation4 + $0x30] sm:$0xff] %v1409
  %1422 = vst [vmem:[#allocation4 + $0x48] sm:$0xff] %v1410
  %1423 = vst [vmem:[#allocation4 + $0x50] sm:$0xff] %v1411
  %1424 = vst [vmem:[#allocation4 + $0x58] sm:$0xff] %v1412
  %1425 = vst [vmem:[#allocation4 + $0x60] sm:$0xff] %v1413
  %1426 = vst [vmem:[#allocation4 + $0x68] sm:$0xff] %v1414
  %1427 = vst [vmem:[#allocation4 + $0x70] sm:$0xff] %v1415
  %v1428 = vld [vmem:[#allocation4] sm:$0xff]
  %v1429 = vld [vmem:[#allocation4 + $0x8] sm:$0xff]
  %v1430 = vld [vmem:[#allocation4 + $0x10] sm:$0xff]
  %v1431 = vld [vmem:[#allocation4 + $0x18] sm:$0xff]
  %v1432 = vld [vmem:[#allocation4 + $0x20] sm:$0xff]
  %v1433 = vld [vmem:[#allocation4 + $0x28] sm:$0xff]
  %v1434 = vld [vmem:[#allocation4 + $0x30] sm:$0xff]
  %v1435 = vld [vmem:[#allocation4 + $0x38] sm:$0xff]
  %v1436 = vld [vmem:[#allocation4 + $0x40] sm:$0xff]
  %v1437 = vld [vmem:[#allocation4 + $0x48] sm:$0xff]
  %v1438 = vld [vmem:[#allocation4 + $0x50] sm:$0xff]
  %v1439 = vld [vmem:[#allocation4 + $0x58] sm:$0xff]
  %v1440 = vld [vmem:[#allocation4 + $0x60] sm:$0xff]
  %v1441 = vld [vmem:[#allocation4 + $0x68] sm:$0xff]
  %v1442 = vld [vmem:[#allocation4 + $0x70] sm:$0xff]
  %v1443 = vld [vmem:[#allocation4 + $0x78] sm:$0xff]
  %v1444 = vpack.c.bf16 %v1436, %v1428
  %v1445 = vpack.c.bf16 %v1437, %v1429
  %v1446 = vpack.c.bf16 %v1438, %v1430
  %v1447 = vpack.c.bf16 %v1439, %v1431
  %v1448 = vpack.c.bf16 %v1440, %v1432
  %v1449 = vpack.c.bf16 %v1441, %v1433
  %v1450 = vpack.c.bf16 %v1442, %v1434
  %v1451 = vpack.c.bf16 %v1443, %v1435
  %1459 = vrot.lane.b32.xlu0 %v1444, 19
  %v1460 = vpop.permute.xlu0 %1459
  %1461 = vrot.lane.b32.xlu0 %v1445, 19
  %v1462 = vpop.permute.xlu0 %1461
  %1463 = vrot.lane.b32.xlu0 %v1446, 19
  %v1464 = vpop.permute.xlu0 %1463
  %1465 = vrot.lane.b32.xlu0 %v1447, 19
  %v1466 = vpop.permute.xlu0 %1465
  %1467 = vrot.lane.b32.xlu0 %v1448, 19
  %v1468 = vpop.permute.xlu0 %1467
  %1469 = vrot.lane.b32.xlu0 %v1449, 19
  %v1470 = vpop.permute.xlu0 %1469
  %1471 = vrot.lane.b32.xlu0 %v1450, 19
  %v1472 = vpop.permute.xlu0 %1471
  %v1473 = vsel %vm320, %v1460, %v1462
  %v1474 = vsel %vm320, %v1462, %v1464
  %v1475 = vsel %vm320, %v1464, %v1466
  %v1476 = vsel %vm320, %v1466, %v1468
  %v1477 = vsel %vm320, %v1468, %v1470
  %v1478 = vsel %vm320, %v1470, %v1472
  %1485 = vst [vmem:[#allocation5] sm:$0xff] %v1473
  %1486 = vst [vmem:[#allocation5 + $0x8] sm:$0xff] %v1474
  %1487 = vst [vmem:[#allocation5 + $0x10] sm:$0xff] %v1475
  %1488 = vst [vmem:[#allocation5 + $0x18] sm:$0xff] %v1476
  %1489 = vst [vmem:[#allocation5 + $0x20] sm:$0xff] %v1477
  %1490 = vst [vmem:[#allocation5 + $0x28] sm:$0xff] %v1478
  %1491 = vrot.lane.b32.xlu0 %v1444, 18
  %v1492 = vpop.permute.xlu0 %1491
  %1493 = vrot.lane.b32.xlu0 %v1445, 18
  %v1494 = vpop.permute.xlu0 %1493
  %1495 = vrot.lane.b32.xlu0 %v1446, 18
  %v1496 = vpop.permute.xlu0 %1495
  %1497 = vrot.lane.b32.xlu0 %v1447, 18
  %v1498 = vpop.permute.xlu0 %1497
  %1499 = vrot.lane.b32.xlu0 %v1448, 18
  %v1500 = vpop.permute.xlu0 %1499
  %1501 = vrot.lane.b32.xlu0 %v1449, 18
  %v1502 = vpop.permute.xlu0 %1501
  %1503 = vrot.lane.b32.xlu0 %v1450, 18
  %v1504 = vpop.permute.xlu0 %1503
  %v1505 = vsel %vm353, %v1492, %v1494
  %v1506 = vsel %vm353, %v1494, %v1496
  %v1507 = vsel %vm353, %v1496, %v1498
  %v1508 = vsel %vm353, %v1498, %v1500
  %v1509 = vsel %vm353, %v1500, %v1502
  %v1510 = vsel %vm353, %v1502, %v1504
  %1517 = vst [vmem:[#allocation5 + $0x30] sm:$0xff] %v1505
  %1518 = vst [vmem:[#allocation5 + $0x38] sm:$0xff] %v1506
  %1519 = vst [vmem:[#allocation5 + $0x40] sm:$0xff] %v1507
  %1520 = vst [vmem:[#allocation5 + $0x48] sm:$0xff] %v1508
  %1521 = vst [vmem:[#allocation5 + $0x50] sm:$0xff] %v1509
  %1522 = vst [vmem:[#allocation5 + $0x58] sm:$0xff] %v1510
  %1523 = vrot.lane.b32.xlu0 %v1444, 17
  %v1524 = vpop.permute.xlu0 %1523
  %1525 = vrot.lane.b32.xlu0 %v1445, 17
  %v1526 = vpop.permute.xlu0 %1525
  %1527 = vrot.lane.b32.xlu0 %v1446, 17
  %v1528 = vpop.permute.xlu0 %1527
  %1529 = vrot.lane.b32.xlu0 %v1447, 17
  %v1530 = vpop.permute.xlu0 %1529
  %1531 = vrot.lane.b32.xlu0 %v1448, 17
  %v1532 = vpop.permute.xlu0 %1531
  %1533 = vrot.lane.b32.xlu0 %v1449, 17
  %v1534 = vpop.permute.xlu0 %1533
  %1535 = vrot.lane.b32.xlu0 %v1450, 17
  %v1536 = vpop.permute.xlu0 %1535
  %v1537 = vsel %vm386, %v1524, %v1526
  %v1538 = vsel %vm386, %v1526, %v1528
  %v1539 = vsel %vm386, %v1528, %v1530
  %v1540 = vsel %vm386, %v1530, %v1532
  %v1541 = vsel %vm386, %v1532, %v1534
  %v1542 = vsel %vm386, %v1534, %v1536
  %1549 = vst [vmem:[#allocation5 + $0x60] sm:$0xff] %v1537
  %1550 = vst [vmem:[#allocation5 + $0x68] sm:$0xff] %v1538
  %1551 = vst [vmem:[#allocation5 + $0x70] sm:$0xff] %v1539
  %1552 = vst [vmem:[#allocation5 + $0x78] sm:$0xff] %v1540
  %1553 = vst [vmem:[#allocation5 + $0x80] sm:$0xff] %v1541
  %1554 = vst [vmem:[#allocation5 + $0x88] sm:$0xff] %v1542
  %1555 = vrot.lane.b32.xlu0 %v1444, 1
  %v1556 = vpop.permute.xlu0 %1555
  %1557 = vrot.lane.b32.xlu0 %v1445, 1
  %v1558 = vpop.permute.xlu0 %1557
  %1559 = vrot.lane.b32.xlu0 %v1446, 1
  %v1560 = vpop.permute.xlu0 %1559
  %1561 = vrot.lane.b32.xlu0 %v1447, 1
  %v1562 = vpop.permute.xlu0 %1561
  %1563 = vrot.lane.b32.xlu0 %v1448, 1
  %v1564 = vpop.permute.xlu0 %1563
  %1565 = vrot.lane.b32.xlu0 %v1449, 1
  %v1566 = vpop.permute.xlu0 %1565
  %1567 = vrot.lane.b32.xlu0 %v1450, 1
  %v1568 = vpop.permute.xlu0 %1567
  %v1569 = vsel %vm419, %v1556, %v1558
  %v1570 = vsel %vm419, %v1558, %v1560
  %v1571 = vsel %vm419, %v1560, %v1562
  %v1572 = vsel %vm419, %v1562, %v1564
  %v1573 = vsel %vm419, %v1564, %v1566
  %v1574 = vsel %vm419, %v1566, %v1568
  %1581 = vst [vmem:[#allocation5 + $0x90] sm:$0xff] %v1569
  %1582 = vst [vmem:[#allocation5 + $0x98] sm:$0xff] %v1570
  %1583 = vst [vmem:[#allocation5 + $0xa0] sm:$0xff] %v1571
  %1584 = vst [vmem:[#allocation5 + $0xa8] sm:$0xff] %v1572
  %1585 = vst [vmem:[#allocation5 + $0xb0] sm:$0xff] %v1573
  %1586 = vst [vmem:[#allocation5 + $0xb8] sm:$0xff] %v1574
  %1587 = vst [vmem:[#allocation5 + $0xc0] sm:$0xff] %v1445
  %1588 = vst [vmem:[#allocation5 + $0xc8] sm:$0xff] %v1446
  %1589 = vst [vmem:[#allocation5 + $0xd0] sm:$0xff] %v1447
  %1590 = vst [vmem:[#allocation5 + $0xd8] sm:$0xff] %v1448
  %1591 = vst [vmem:[#allocation5 + $0xe0] sm:$0xff] %v1449
  %1592 = vst [vmem:[#allocation5 + $0xe8] sm:$0xff] %v1450
  %1594 = vrot.lane.b32.xlu0 %v1445, 127
  %v1595 = vpop.permute.xlu0 %1594
  %1596 = vrot.lane.b32.xlu0 %v1446, 127
  %v1597 = vpop.permute.xlu0 %1596
  %1598 = vrot.lane.b32.xlu0 %v1447, 127
  %v1599 = vpop.permute.xlu0 %1598
  %1600 = vrot.lane.b32.xlu0 %v1448, 127
  %v1601 = vpop.permute.xlu0 %1600
  %1602 = vrot.lane.b32.xlu0 %v1449, 127
  %v1603 = vpop.permute.xlu0 %1602
  %1604 = vrot.lane.b32.xlu0 %v1450, 127
  %v1605 = vpop.permute.xlu0 %1604
  %1606 = vrot.lane.b32.xlu0 %v1451, 127
  %v1607 = vpop.permute.xlu0 %1606
  %v1608 = vsel %vm459, %v1595, %v1597
  %v1609 = vsel %vm459, %v1597, %v1599
  %v1610 = vsel %vm459, %v1599, %v1601
  %v1611 = vsel %vm459, %v1601, %v1603
  %v1612 = vsel %vm459, %v1603, %v1605
  %v1613 = vsel %vm459, %v1605, %v1607
  %1620 = vst [vmem:[#allocation5 + $0xf0] sm:$0xff] %v1608
  %1621 = vst [vmem:[#allocation5 + $0xf8] sm:$0xff] %v1609
  %1622 = vst [vmem:[#allocation5 + $0x100] sm:$0xff] %v1610
  %1623 = vst [vmem:[#allocation5 + $0x108] sm:$0xff] %v1611
  %1624 = vst [vmem:[#allocation5 + $0x110] sm:$0xff] %v1612
  %1625 = vst [vmem:[#allocation5 + $0x118] sm:$0xff] %v1613
  %1626 = vrot.lane.b32.xlu0 %v1445, 111
  %v1627 = vpop.permute.xlu0 %1626
  %1628 = vrot.lane.b32.xlu0 %v1446, 111
  %v1629 = vpop.permute.xlu0 %1628
  %1630 = vrot.lane.b32.xlu0 %v1447, 111
  %v1631 = vpop.permute.xlu0 %1630
  %1632 = vrot.lane.b32.xlu0 %v1448, 111
  %v1633 = vpop.permute.xlu0 %1632
  %1634 = vrot.lane.b32.xlu0 %v1449, 111
  %v1635 = vpop.permute.xlu0 %1634
  %1636 = vrot.lane.b32.xlu0 %v1450, 111
  %v1637 = vpop.permute.xlu0 %1636
  %1638 = vrot.lane.b32.xlu0 %v1451, 111
  %v1639 = vpop.permute.xlu0 %1638
  %v1640 = vsel %vm492, %v1627, %v1629
  %v1641 = vsel %vm492, %v1629, %v1631
  %v1642 = vsel %vm492, %v1631, %v1633
  %v1643 = vsel %vm492, %v1633, %v1635
  %v1644 = vsel %vm492, %v1635, %v1637
  %v1645 = vsel %vm492, %v1637, %v1639
  %1652 = vst [vmem:[#allocation5 + $0x120] sm:$0xff] %v1640
  %1653 = vst [vmem:[#allocation5 + $0x128] sm:$0xff] %v1641
  %1654 = vst [vmem:[#allocation5 + $0x130] sm:$0xff] %v1642
  %1655 = vst [vmem:[#allocation5 + $0x138] sm:$0xff] %v1643
  %1656 = vst [vmem:[#allocation5 + $0x140] sm:$0xff] %v1644
  %1657 = vst [vmem:[#allocation5 + $0x148] sm:$0xff] %v1645
  %1658 = vrot.lane.b32.xlu0 %v1445, 110
  %v1659 = vpop.permute.xlu0 %1658
  %1660 = vrot.lane.b32.xlu0 %v1446, 110
  %v1661 = vpop.permute.xlu0 %1660
  %1662 = vrot.lane.b32.xlu0 %v1447, 110
  %v1663 = vpop.permute.xlu0 %1662
  %1664 = vrot.lane.b32.xlu0 %v1448, 110
  %v1665 = vpop.permute.xlu0 %1664
  %1666 = vrot.lane.b32.xlu0 %v1449, 110
  %v1667 = vpop.permute.xlu0 %1666
  %1668 = vrot.lane.b32.xlu0 %v1450, 110
  %v1669 = vpop.permute.xlu0 %1668
  %1670 = vrot.lane.b32.xlu0 %v1451, 110
  %v1671 = vpop.permute.xlu0 %1670
  %v1672 = vsel %vm525, %v1659, %v1661
  %v1673 = vsel %vm525, %v1661, %v1663
  %v1674 = vsel %vm525, %v1663, %v1665
  %v1675 = vsel %vm525, %v1665, %v1667
  %v1676 = vsel %vm525, %v1667, %v1669
  %v1677 = vsel %vm525, %v1669, %v1671
  %1684 = vst [vmem:[#allocation5 + $0x150] sm:$0xff] %v1672
  %1685 = vst [vmem:[#allocation5 + $0x158] sm:$0xff] %v1673
  %1686 = vst [vmem:[#allocation5 + $0x160] sm:$0xff] %v1674
  %1687 = vst [vmem:[#allocation5 + $0x168] sm:$0xff] %v1675
  %1688 = vst [vmem:[#allocation5 + $0x170] sm:$0xff] %v1676
  %1689 = vst [vmem:[#allocation5 + $0x178] sm:$0xff] %v1677
  %1690 = vrot.lane.b32.xlu0 %v1445, 109
  %v1691 = vpop.permute.xlu0 %1690
  %1692 = vrot.lane.b32.xlu0 %v1446, 109
  %v1693 = vpop.permute.xlu0 %1692
  %1694 = vrot.lane.b32.xlu0 %v1447, 109
  %v1695 = vpop.permute.xlu0 %1694
  %1696 = vrot.lane.b32.xlu0 %v1448, 109
  %v1697 = vpop.permute.xlu0 %1696
  %1698 = vrot.lane.b32.xlu0 %v1449, 109
  %v1699 = vpop.permute.xlu0 %1698
  %1700 = vrot.lane.b32.xlu0 %v1450, 109
  %v1701 = vpop.permute.xlu0 %1700
  %1702 = vrot.lane.b32.xlu0 %v1451, 109
  %v1703 = vpop.permute.xlu0 %1702
  %v1704 = vsel %vm558, %v1691, %v1693
  %v1705 = vsel %vm558, %v1693, %v1695
  %v1706 = vsel %vm558, %v1695, %v1697
  %v1707 = vsel %vm558, %v1697, %v1699
  %v1708 = vsel %vm558, %v1699, %v1701
  %v1709 = vsel %vm558, %v1701, %v1703
  %1716 = vst [vmem:[#allocation5 + $0x180] sm:$0xff] %v1704
  %1717 = vst [vmem:[#allocation5 + $0x188] sm:$0xff] %v1705
  %1718 = vst [vmem:[#allocation5 + $0x190] sm:$0xff] %v1706
  %1719 = vst [vmem:[#allocation5 + $0x198] sm:$0xff] %v1707
  %1720 = vst [vmem:[#allocation5 + $0x1a0] sm:$0xff] %v1708
  %1721 = vst [vmem:[#allocation5 + $0x1a8] sm:$0xff] %v1709
  %s1722 = scalar_lea.vmem %s1, 32
  %v1723 = vld [vmem:[%s1722] sm:$0xff]
  %v1724 = vld [vmem:[%s1722 + $0x8] sm:$0xff]
  %v1725 = vld [vmem:[#allocation5] sm:$0xff]
  %v1726 = vld [vmem:[#allocation5 + $0x8] sm:$0xff]
  %v1727 = vld [vmem:[#allocation5 + $0x10] sm:$0xff]
  %v1728 = vld [vmem:[#allocation5 + $0x18] sm:$0xff]
  %v1729 = vld [vmem:[#allocation5 + $0x20] sm:$0xff]
  %v1730 = vld [vmem:[#allocation5 + $0x28] sm:$0xff]
  %v1731 = vld [vmem:[#allocation5 + $0x30] sm:$0xff]
  %v1732 = vld [vmem:[#allocation5 + $0x38] sm:$0xff]
  %v1733 = vld [vmem:[#allocation5 + $0x40] sm:$0xff]
  %v1734 = vld [vmem:[#allocation5 + $0x48] sm:$0xff]
  %v1735 = vld [vmem:[#allocation5 + $0x50] sm:$0xff]
  %v1736 = vld [vmem:[#allocation5 + $0x58] sm:$0xff]
  %v1737 = vld [vmem:[#allocation5 + $0x60] sm:$0xff]
  %v1738 = vld [vmem:[#allocation5 + $0x68] sm:$0xff]
  %v1739 = vld [vmem:[#allocation5 + $0x70] sm:$0xff]
  %v1740 = vld [vmem:[#allocation5 + $0x78] sm:$0xff]
  %v1741 = vld [vmem:[#allocation5 + $0x80] sm:$0xff]
  %v1742 = vld [vmem:[#allocation5 + $0x88] sm:$0xff]
  %v1743 = vld [vmem:[#allocation5 + $0x90] sm:$0xff]
  %v1744 = vld [vmem:[#allocation5 + $0x98] sm:$0xff]
  %v1745 = vld [vmem:[#allocation5 + $0xa0] sm:$0xff]
  %v1746 = vld [vmem:[#allocation5 + $0xa8] sm:$0xff]
  %v1747 = vld [vmem:[#allocation5 + $0xb0] sm:$0xff]
  %v1748 = vld [vmem:[#allocation5 + $0xb8] sm:$0xff]
  %v1749 = vld [vmem:[#allocation5 + $0xc0] sm:$0xff]
  %v1750 = vld [vmem:[#allocation5 + $0xc8] sm:$0xff]
  %v1751 = vld [vmem:[#allocation5 + $0xd0] sm:$0xff]
  %v1752 = vld [vmem:[#allocation5 + $0xd8] sm:$0xff]
  %v1753 = vld [vmem:[#allocation5 + $0xe0] sm:$0xff]
  %v1754 = vld [vmem:[#allocation5 + $0xe8] sm:$0xff]
  %v1755 = vld [vmem:[#allocation5 + $0xf0] sm:$0xff]
  %v1756 = vld [vmem:[#allocation5 + $0xf8] sm:$0xff]
  %v1757 = vld [vmem:[#allocation5 + $0x100] sm:$0xff]
  %v1758 = vld [vmem:[#allocation5 + $0x108] sm:$0xff]
  %v1759 = vld [vmem:[#allocation5 + $0x110] sm:$0xff]
  %v1760 = vld [vmem:[#allocation5 + $0x118] sm:$0xff]
  %v1761 = vld [vmem:[#allocation5 + $0x120] sm:$0xff]
  %v1762 = vld [vmem:[#allocation5 + $0x128] sm:$0xff]
  %v1763 = vld [vmem:[#allocation5 + $0x130] sm:$0xff]
  %v1764 = vld [vmem:[#allocation5 + $0x138] sm:$0xff]
  %v1765 = vld [vmem:[#allocation5 + $0x140] sm:$0xff]
  %v1766 = vld [vmem:[#allocation5 + $0x148] sm:$0xff]
  %v1767 = vld [vmem:[#allocation5 + $0x150] sm:$0xff]
  %v1768 = vld [vmem:[#allocation5 + $0x158] sm:$0xff]
  %v1769 = vld [vmem:[#allocation5 + $0x160] sm:$0xff]
  %v1770 = vld [vmem:[#allocation5 + $0x168] sm:$0xff]
  %v1771 = vld [vmem:[#allocation5 + $0x170] sm:$0xff]
  %v1772 = vld [vmem:[#allocation5 + $0x178] sm:$0xff]
  %v1773 = vld [vmem:[#allocation5 + $0x180] sm:$0xff]
  %v1774 = vld [vmem:[#allocation5 + $0x188] sm:$0xff]
  %v1775 = vld [vmem:[#allocation5 + $0x190] sm:$0xff]
  %v1776 = vld [vmem:[#allocation5 + $0x198] sm:$0xff]
  %v1777 = vld [vmem:[#allocation5 + $0x1a0] sm:$0xff]
  %v1778 = vld [vmem:[#allocation5 + $0x1a8] sm:$0xff]
  %s1779 = scalar_lea.vmem %s2, 32
  %v1780 = vld [vmem:[%s1779] sm:$0xff]
  %v1781 = vld [vmem:[%s1779 + $0x8] sm:$0xff]
  %1783 = vset.pattern.permute.xlu0 0
  %1784 = vperm.xlu0 %1783, %v1780
  %v1785 = vpop.permute.xlu0 %1784
  %1788 = vset.pattern.permute.xlu0 0
  %1789 = vperm.xlu0 %1788, %v1781
  %v1790 = vpop.permute.xlu0 %1789
  %v1794 = vunpack.c.l.b16 %v1723
  %v1795 = vunpack.c.h.b16 %v1723
  %v1796 = vunpack.c.l.b16 %v1724
  %v1797 = vunpack.c.h.b16 %v1724
  %v1798 = vpack.c.b16 %v1796, %v1794
  %v1799 = vpack.c.b16 %v1797, %v1795
  %v1802 = vsel %vm654, %v1799, 0
  %1804 = vmatprep.subr.bf16.mxu0 %v1726
  %1805 = vmatpush1.bf16.msra.mxu0 %v1725
  %1806 = vmatprep.subr.bf16.mxu0 %v1732
  %1807 = vmatpush1.bf16.msra.mxu0 %v1731
  %1808 = vmatprep.subr.bf16.mxu0 %v1738
  %1809 = vmatpush1.bf16.msra.mxu0 %v1737
  %1810 = vmatprep.subr.bf16.mxu0 %v1744
  %1811 = vmatpush1.bf16.msra.mxu0 %v1743
  %1812 = vmatprep.subr.bf16.mxu0 %v1750
  %1813 = vmatpush1.bf16.msra.mxu0 %v1749
  %1814 = vmatprep.subr.bf16.mxu0 %v1756
  %1815 = vmatpush1.bf16.msra.mxu0 %v1755
  %1816 = vmatprep.subr.bf16.mxu0 %v1762
  %1817 = vmatpush1.bf16.msra.mxu0 %v1761
  %1818 = vmatprep.subr.bf16.mxu0 %v1768
  %1819 = vmatpush1.bf16.msra.mxu0 %v1767
  %1820 = vmatprep.subr.bf16.mxu0 %v1774
  %1821 = vmatpush1.bf16.msra.mxu0 %v1773
  %1822 = vmatprep.subr.bf16.mxu0 0
  %1823 = vmatpush1.bf16.msra.mxu0 0
  %1824 = vmatprep.subr.bf16.mxu0 0
  %1825 = vmatpush1.bf16.msra.mxu0 0
  %1826 = vmatprep.subr.bf16.mxu0 0
  %1827 = vmatpush1.bf16.msra.mxu0 0
  %1828 = vmatprep.subr.bf16.mxu0 0
  %1829 = vmatpush1.bf16.msra.mxu0 0
  %1830 = vmatprep.subr.bf16.mxu0 0
  %1831 = vmatpush1.bf16.msra.mxu0 0
  %1832 = vmatprep.subr.bf16.mxu0 0
  %1833 = vmatpush1.bf16.msra.mxu0 0
  %1834 = vmatprep.subr.bf16.mxu0 0
  %1835 = vmatpush1.bf16.msra.mxu0 0
  %1836 = vmatprep.mubr.bf16.mxu0 %v1802
  %1837 = vmatmul.mubr.bf16.gmra.mrb[0].mxu0 %v1798
  %v1838 = vpop.f32.mrb[0].mxu0
  %v1839 = vadd.f32 %v1785, %v1838
  %v1840 = vpop.f32.mrb[0].mxu0
  %v1841 = vadd.f32 %v1785, %v1840
  %v1842 = vpop.f32.mrb[0].mxu0
  %v1843 = vadd.f32 %v1790, %v1842
  %v1844 = vpop.f32.mrb[0].mxu0
  %v1845 = vadd.f32 %v1790, %v1844
  %1846 = vdwg.mxu0
  %1847 = vmatprep.subr.bf16.mxu0 %v1728
  %1848 = vmatpush1.bf16.msra.mxu0 %v1727
  %1849 = vmatprep.subr.bf16.mxu0 %v1734
  %1850 = vmatpush1.bf16.msra.mxu0 %v1733
  %1851 = vmatprep.subr.bf16.mxu0 %v1740
  %1852 = vmatpush1.bf16.msra.mxu0 %v1739
  %1853 = vmatprep.subr.bf16.mxu0 %v1746
  %1854 = vmatpush1.bf16.msra.mxu0 %v1745
  %1855 = vmatprep.subr.bf16.mxu0 %v1752
  %1856 = vmatpush1.bf16.msra.mxu0 %v1751
  %1857 = vmatprep.subr.bf16.mxu0 %v1758
  %1858 = vmatpush1.bf16.msra.mxu0 %v1757
  %1859 = vmatprep.subr.bf16.mxu0 %v1764
  %1860 = vmatpush1.bf16.msra.mxu0 %v1763
  %1861 = vmatprep.subr.bf16.mxu0 %v1770
  %1862 = vmatpush1.bf16.msra.mxu0 %v1769
  %1863 = vmatprep.subr.bf16.mxu0 %v1776
  %1864 = vmatpush1.bf16.msra.mxu0 %v1775
  %1865 = vmatprep.subr.bf16.mxu0 0
  %1866 = vmatpush1.bf16.msra.mxu0 0
  %1867 = vmatprep.subr.bf16.mxu0 0
  %1868 = vmatpush1.bf16.msra.mxu0 0
  %1869 = vmatprep.subr.bf16.mxu0 0
  %1870 = vmatpush1.bf16.msra.mxu0 0
  %1871 = vmatprep.subr.bf16.mxu0 0
  %1872 = vmatpush1.bf16.msra.mxu0 0
  %1873 = vmatprep.subr.bf16.mxu0 0
  %1874 = vmatpush1.bf16.msra.mxu0 0
  %1875 = vmatprep.subr.bf16.mxu0 0
  %1876 = vmatpush1.bf16.msra.mxu0 0
  %1877 = vmatprep.subr.bf16.mxu0 0
  %1878 = vmatpush1.bf16.msra.mxu0 0
  %1879 = vmatprep.mubr.bf16.mxu0 %v1802
  %1880 = vmatmul.mubr.bf16.gmra.mrb[0].mxu0 %v1798
  %v1881 = vpop.f32.mrb[0].mxu0
  %v1882 = vadd.f32 %v1785, %v1881
  %v1883 = vpop.f32.mrb[0].mxu0
  %v1884 = vadd.f32 %v1785, %v1883
  %v1885 = vpop.f32.mrb[0].mxu0
  %v1886 = vadd.f32 %v1790, %v1885
  %v1887 = vpop.f32.mrb[0].mxu0
  %v1888 = vadd.f32 %v1790, %v1887
  %1889 = vdwg.mxu0
  %1890 = vmatprep.subr.bf16.mxu0 %v1730
  %1891 = vmatpush1.bf16.msra.mxu0 %v1729
  %1892 = vmatprep.subr.bf16.mxu0 %v1736
  %1893 = vmatpush1.bf16.msra.mxu0 %v1735
  %1894 = vmatprep.subr.bf16.mxu0 %v1742
  %1895 = vmatpush1.bf16.msra.mxu0 %v1741
  %1896 = vmatprep.subr.bf16.mxu0 %v1748
  %1897 = vmatpush1.bf16.msra.mxu0 %v1747
  %1898 = vmatprep.subr.bf16.mxu0 %v1754
  %1899 = vmatpush1.bf16.msra.mxu0 %v1753
  %1900 = vmatprep.subr.bf16.mxu0 %v1760
  %1901 = vmatpush1.bf16.msra.mxu0 %v1759
  %1902 = vmatprep.subr.bf16.mxu0 %v1766
  %1903 = vmatpush1.bf16.msra.mxu0 %v1765
  %1904 = vmatprep.subr.bf16.mxu0 %v1772
  %1905 = vmatpush1.bf16.msra.mxu0 %v1771
  %1906 = vmatprep.subr.bf16.mxu0 %v1778
  %1907 = vmatpush1.bf16.msra.mxu0 %v1777
  %1908 = vmatprep.subr.bf16.mxu0 0
  %1909 = vmatpush1.bf16.msra.mxu0 0
  %1910 = vmatprep.subr.bf16.mxu0 0
  %1911 = vmatpush1.bf16.msra.mxu0 0
  %1912 = vmatprep.subr.bf16.mxu0 0
  %1913 = vmatpush1.bf16.msra.mxu0 0
  %1914 = vmatprep.subr.bf16.mxu0 0
  %1915 = vmatpush1.bf16.msra.mxu0 0
  %1916 = vmatprep.subr.bf16.mxu0 0
  %1917 = vmatpush1.bf16.msra.mxu0 0
  %1918 = vmatprep.subr.bf16.mxu0 0
  %1919 = vmatpush1.bf16.msra.mxu0 0
  %1920 = vmatprep.subr.bf16.mxu0 0
  %1921 = vmatpush1.bf16.msra.mxu0 0
  %1922 = vmatprep.mubr.bf16.mxu0 %v1802
  %1923 = vmatmul.mubr.bf16.gmra.mrb[0].mxu0 %v1798
  %v1924 = vpop.f32.mrb[0].mxu0
  %v1925 = vadd.f32 %v1785, %v1924
  %v1926 = vpop.f32.mrb[0].mxu0
  %v1927 = vadd.f32 %v1785, %v1926
  %v1928 = vpop.f32.mrb[0].mxu0
  %v1929 = vadd.f32 %v1790, %v1928
  %v1930 = vpop.f32.mrb[0].mxu0
  %v1931 = vadd.f32 %v1790, %v1930
  %1932 = vdwg.mxu0
  %v1933 = vld [vmem:[#allocation3 + $0x8] sm:$0xff]
  %v1934 = vld [vmem:[#allocation3 + $0x10] sm:$0xff]
  %v1935 = vld [vmem:[#allocation3 + $0x18] sm:$0xff]
  %v1936 = vld [vmem:[#allocation3 + $0x20] sm:$0xff]
  %v1937 = vld [vmem:[#allocation3 + $0x28] sm:$0xff]
  %v1938 = vld [vmem:[#allocation3 + $0x30] sm:$0xff]
  %v1939 = vld [vmem:[#allocation3 + $0x48] sm:$0xff]
  %v1940 = vld [vmem:[#allocation3 + $0x50] sm:$0xff]
  %v1941 = vld [vmem:[#allocation3 + $0x58] sm:$0xff]
  %v1942 = vld [vmem:[#allocation3 + $0x60] sm:$0xff]
  %v1943 = vld [vmem:[#allocation3 + $0x68] sm:$0xff]
  %v1944 = vld [vmem:[#allocation3 + $0x70] sm:$0xff]
  %v1945 = vadd.f32 %v1839, %v1933
  %v1946 = vadd.f32 %v1841, %v1934
  %v1947 = vadd.f32 %v1882, %v1935
  %v1948 = vadd.f32 %v1884, %v1936
  %v1949 = vadd.f32 %v1925, %v1937
  %v1950 = vadd.f32 %v1927, %v1938
  %v1951 = vadd.f32 %v1843, %v1939
  %v1952 = vadd.f32 %v1845, %v1940
  %v1953 = vadd.f32 %v1886, %v1941
  %v1954 = vadd.f32 %v1888, %v1942
  %v1955 = vadd.f32 %v1929, %v1943
  %v1956 = vadd.f32 %v1931, %v1944
  %v1957 = vmax.f32 %v1945, 0.0
  %v1958 = vmax.f32 %v1946, 0.0
  %v1959 = vmax.f32 %v1947, 0.0
  %v1960 = vmax.f32 %v1948, 0.0
  %v1961 = vmax.f32 %v1949, 0.0
  %v1962 = vmax.f32 %v1950, 0.0
  %v1963 = vmax.f32 %v1951, 0.0
  %v1964 = vmax.f32 %v1952, 0.0
  %v1965 = vmax.f32 %v1953, 0.0
  %v1966 = vmax.f32 %v1954, 0.0
  %v1967 = vmax.f32 %v1955, 0.0
  %v1968 = vmax.f32 %v1956, 0.0
  %v1969 = vld [vmem:[%s3] sm:$0x3f]
  %v1971 = vlaneseq
  %v1972 = vshrl.u32 %v1971, 7
  %v1973 = vsub.s32 0, %v1972
  %v1974 = vrot.slane %v1969, %v1973
  %v1975 = vlaneseq
  %v1976 = vshrl.u32 %v1975, 7
  %v1977 = vsub.s32 1, %v1976
  %v1978 = vrot.slane %v1969, %v1977
  %v1979 = vlaneseq
  %v1980 = vshrl.u32 %v1979, 7
  %v1981 = vsub.s32 2, %v1980
  %v1982 = vrot.slane %v1969, %v1981
  %v1983 = vlaneseq
  %v1984 = vshrl.u32 %v1983, 7
  %v1985 = vsub.s32 3, %v1984
  %v1986 = vrot.slane %v1969, %v1985
  %v1987 = vlaneseq
  %v1988 = vshrl.u32 %v1987, 7
  %v1989 = vsub.s32 4, %v1988
  %v1990 = vrot.slane %v1969, %v1989
  %v1991 = vlaneseq
  %v1992 = vshrl.u32 %v1991, 7
  %v1993 = vsub.s32 5, %v1992
  %v1994 = vrot.slane %v1969, %v1993
  %v2001 = vmul.f32 %v1957, %v1974
  %v2002 = vmul.f32 %v1958, %v1978
  %v2003 = vmul.f32 %v1959, %v1982
  %v2004 = vmul.f32 %v1960, %v1986
  %v2005 = vmul.f32 %v1961, %v1990
  %v2006 = vmul.f32 %v1962, %v1994
  %v2007 = vmul.f32 %v1963, %v1974
  %v2008 = vmul.f32 %v1964, %v1978
  %v2009 = vmul.f32 %v1965, %v1982
  %v2010 = vmul.f32 %v1966, %v1986
  %v2011 = vmul.f32 %v1967, %v1990
  %v2012 = vmul.f32 %v1968, %v1994
  %2013 = vst [vmem:[#allocation3 + $0x8] sm:$0xff] %v2001
  %2014 = vst [vmem:[#allocation3 + $0x10] sm:$0xff] %v2002
  %2015 = vst [vmem:[#allocation3 + $0x18] sm:$0xff] %v2003
  %2016 = vst [vmem:[#allocation3 + $0x20] sm:$0xff] %v2004
  %2017 = vst [vmem:[#allocation3 + $0x28] sm:$0xff] %v2005
  %2018 = vst [vmem:[#allocation3 + $0x30] sm:$0xff] %v2006
  %2019 = vst [vmem:[#allocation3 + $0x48] sm:$0xff] %v2007
  %2020 = vst [vmem:[#allocation3 + $0x50] sm:$0xff] %v2008
  %2021 = vst [vmem:[#allocation3 + $0x58] sm:$0xff] %v2009
  %2022 = vst [vmem:[#allocation3 + $0x60] sm:$0xff] %v2010
  %2023 = vst [vmem:[#allocation3 + $0x68] sm:$0xff] %v2011
  %2024 = vst [vmem:[#allocation3 + $0x70] sm:$0xff] %v2012
  %v2025 = vld [vmem:[#allocation3] sm:$0xff]
  %v2026 = vld [vmem:[#allocation3 + $0x8] sm:$0xff]
  %v2027 = vld [vmem:[#allocation3 + $0x10] sm:$0xff]
  %v2028 = vld [vmem:[#allocation3 + $0x18] sm:$0xff]
  %v2029 = vld [vmem:[#allocation3 + $0x20] sm:$0xff]
  %v2030 = vld [vmem:[#allocation3 + $0x28] sm:$0xff]
  %v2031 = vld [vmem:[#allocation3 + $0x30] sm:$0xff]
  %v2032 = vld [vmem:[#allocation3 + $0x38] sm:$0xff]
  %v2033 = vld [vmem:[#allocation3 + $0x40] sm:$0xff]
  %v2034 = vld [vmem:[#allocation3 + $0x48] sm:$0xff]
  %v2035 = vld [vmem:[#allocation3 + $0x50] sm:$0xff]
  %v2036 = vld [vmem:[#allocation3 + $0x58] sm:$0xff]
  %v2037 = vld [vmem:[#allocation3 + $0x60] sm:$0xff]
  %v2038 = vld [vmem:[#allocation3 + $0x68] sm:$0xff]
  %v2039 = vld [vmem:[#allocation3 + $0x70] sm:$0xff]
  %v2040 = vld [vmem:[#allocation3 + $0x78] sm:$0xff]
  %v2041 = vpack.c.bf16 %v2033, %v2025
  %v2042 = vpack.c.bf16 %v2034, %v2026
  %v2043 = vpack.c.bf16 %v2035, %v2027
  %v2044 = vpack.c.bf16 %v2036, %v2028
  %v2045 = vpack.c.bf16 %v2037, %v2029
  %v2046 = vpack.c.bf16 %v2038, %v2030
  %v2047 = vpack.c.bf16 %v2039, %v2031
  %v2048 = vpack.c.bf16 %v2040, %v2032
  %2056 = vrot.lane.b32.xlu0 %v2041, 19
  %v2057 = vpop.permute.xlu0 %2056
  %2058 = vrot.lane.b32.xlu0 %v2042, 19
  %v2059 = vpop.permute.xlu0 %2058
  %2060 = vrot.lane.b32.xlu0 %v2043, 19
  %v2061 = vpop.permute.xlu0 %2060
  %2062 = vrot.lane.b32.xlu0 %v2044, 19
  %v2063 = vpop.permute.xlu0 %2062
  %2064 = vrot.lane.b32.xlu0 %v2045, 19
  %v2065 = vpop.permute.xlu0 %2064
  %2066 = vrot.lane.b32.xlu0 %v2046, 19
  %v2067 = vpop.permute.xlu0 %2066
  %2068 = vrot.lane.b32.xlu0 %v2047, 19
  %v2069 = vpop.permute.xlu0 %2068
  %v2070 = vsel %vm320, %v2057, %v2059
  %v2071 = vsel %vm320, %v2059, %v2061
  %v2072 = vsel %vm320, %v2061, %v2063
  %v2073 = vsel %vm320, %v2063, %v2065
  %v2074 = vsel %vm320, %v2065, %v2067
  %v2075 = vsel %vm320, %v2067, %v2069
  %2082 = vst [vmem:[#allocation5] sm:$0xff] %v2070
  %2083 = vst [vmem:[#allocation5 + $0x8] sm:$0xff] %v2071
  %2084 = vst [vmem:[#allocation5 + $0x10] sm:$0xff] %v2072
  %2085 = vst [vmem:[#allocation5 + $0x18] sm:$0xff] %v2073
  %2086 = vst [vmem:[#allocation5 + $0x20] sm:$0xff] %v2074
  %2087 = vst [vmem:[#allocation5 + $0x28] sm:$0xff] %v2075
  %2088 = vrot.lane.b32.xlu0 %v2041, 18
  %v2089 = vpop.permute.xlu0 %2088
  %2090 = vrot.lane.b32.xlu0 %v2042, 18
  %v2091 = vpop.permute.xlu0 %2090
  %2092 = vrot.lane.b32.xlu0 %v2043, 18
  %v2093 = vpop.permute.xlu0 %2092
  %2094 = vrot.lane.b32.xlu0 %v2044, 18
  %v2095 = vpop.permute.xlu0 %2094
  %2096 = vrot.lane.b32.xlu0 %v2045, 18
  %v2097 = vpop.permute.xlu0 %2096
  %2098 = vrot.lane.b32.xlu0 %v2046, 18
  %v2099 = vpop.permute.xlu0 %2098
  %2100 = vrot.lane.b32.xlu0 %v2047, 18
  %v2101 = vpop.permute.xlu0 %2100
  %v2102 = vsel %vm353, %v2089, %v2091
  %v2103 = vsel %vm353, %v2091, %v2093
  %v2104 = vsel %vm353, %v2093, %v2095
  %v2105 = vsel %vm353, %v2095, %v2097
  %v2106 = vsel %vm353, %v2097, %v2099
  %v2107 = vsel %vm353, %v2099, %v2101
  %2114 = vst [vmem:[#allocation5 + $0x30] sm:$0xff] %v2102
  %2115 = vst [vmem:[#allocation5 + $0x38] sm:$0xff] %v2103
  %2116 = vst [vmem:[#allocation5 + $0x40] sm:$0xff] %v2104
  %2117 = vst [vmem:[#allocation5 + $0x48] sm:$0xff] %v2105
  %2118 = vst [vmem:[#allocation5 + $0x50] sm:$0xff] %v2106
  %2119 = vst [vmem:[#allocation5 + $0x58] sm:$0xff] %v2107
  %2120 = vrot.lane.b32.xlu0 %v2041, 17
  %v2121 = vpop.permute.xlu0 %2120
  %2122 = vrot.lane.b32.xlu0 %v2042, 17
  %v2123 = vpop.permute.xlu0 %2122
  %2124 = vrot.lane.b32.xlu0 %v2043, 17
  %v2125 = vpop.permute.xlu0 %2124
  %2126 = vrot.lane.b32.xlu0 %v2044, 17
  %v2127 = vpop.permute.xlu0 %2126
  %2128 = vrot.lane.b32.xlu0 %v2045, 17
  %v2129 = vpop.permute.xlu0 %2128
  %2130 = vrot.lane.b32.xlu0 %v2046, 17
  %v2131 = vpop.permute.xlu0 %2130
  %2132 = vrot.lane.b32.xlu0 %v2047, 17
  %v2133 = vpop.permute.xlu0 %2132
  %v2134 = vsel %vm386, %v2121, %v2123
  %v2135 = vsel %vm386, %v2123, %v2125
  %v2136 = vsel %vm386, %v2125, %v2127
  %v2137 = vsel %vm386, %v2127, %v2129
  %v2138 = vsel %vm386, %v2129, %v2131
  %v2139 = vsel %vm386, %v2131, %v2133
  %2146 = vst [vmem:[#allocation5 + $0x60] sm:$0xff] %v2134
  %2147 = vst [vmem:[#allocation5 + $0x68] sm:$0xff] %v2135
  %2148 = vst [vmem:[#allocation5 + $0x70] sm:$0xff] %v2136
  %2149 = vst [vmem:[#allocation5 + $0x78] sm:$0xff] %v2137
  %2150 = vst [vmem:[#allocation5 + $0x80] sm:$0xff] %v2138
  %2151 = vst [vmem:[#allocation5 + $0x88] sm:$0xff] %v2139
  %2152 = vrot.lane.b32.xlu0 %v2041, 1
  %v2153 = vpop.permute.xlu0 %2152
  %2154 = vrot.lane.b32.xlu0 %v2042, 1
  %v2155 = vpop.permute.xlu0 %2154
  %2156 = vrot.lane.b32.xlu0 %v2043, 1
  %v2157 = vpop.permute.xlu0 %2156
  %2158 = vrot.lane.b32.xlu0 %v2044, 1
  %v2159 = vpop.permute.xlu0 %2158
  %2160 = vrot.lane.b32.xlu0 %v2045, 1
  %v2161 = vpop.permute.xlu0 %2160
  %2162 = vrot.lane.b32.xlu0 %v2046, 1
  %v2163 = vpop.permute.xlu0 %2162
  %2164 = vrot.lane.b32.xlu0 %v2047, 1
  %v2165 = vpop.permute.xlu0 %2164
  %v2166 = vsel %vm419, %v2153, %v2155
  %v2167 = vsel %vm419, %v2155, %v2157
  %v2168 = vsel %vm419, %v2157, %v2159
  %v2169 = vsel %vm419, %v2159, %v2161
  %v2170 = vsel %vm419, %v2161, %v2163
  %v2171 = vsel %vm419, %v2163, %v2165
  %2178 = vst [vmem:[#allocation5 + $0x90] sm:$0xff] %v2166
  %2179 = vst [vmem:[#allocation5 + $0x98] sm:$0xff] %v2167
  %2180 = vst [vmem:[#allocation5 + $0xa0] sm:$0xff] %v2168
  %2181 = vst [vmem:[#allocation5 + $0xa8] sm:$0xff] %v2169
  %2182 = vst [vmem:[#allocation5 + $0xb0] sm:$0xff] %v2170
  %2183 = vst [vmem:[#allocation5 + $0xb8] sm:$0xff] %v2171
  %2184 = vst [vmem:[#allocation5 + $0xc0] sm:$0xff] %v2042
  %2185 = vst [vmem:[#allocation5 + $0xc8] sm:$0xff] %v2043
  %2186 = vst [vmem:[#allocation5 + $0xd0] sm:$0xff] %v2044
  %2187 = vst [vmem:[#allocation5 + $0xd8] sm:$0xff] %v2045
  %2188 = vst [vmem:[#allocation5 + $0xe0] sm:$0xff] %v2046
  %2189 = vst [vmem:[#allocation5 + $0xe8] sm:$0xff] %v2047
  %2191 = vrot.lane.b32.xlu0 %v2042, 127
  %v2192 = vpop.permute.xlu0 %2191
  %2193 = vrot.lane.b32.xlu0 %v2043, 127
  %v2194 = vpop.permute.xlu0 %2193
  %2195 = vrot.lane.b32.xlu0 %v2044, 127
  %v2196 = vpop.permute.xlu0 %2195
  %2197 = vrot.lane.b32.xlu0 %v2045, 127
  %v2198 = vpop.permute.xlu0 %2197
  %2199 = vrot.lane.b32.xlu0 %v2046, 127
  %v2200 = vpop.permute.xlu0 %2199
  %2201 = vrot.lane.b32.xlu0 %v2047, 127
  %v2202 = vpop.permute.xlu0 %2201
  %2203 = vrot.lane.b32.xlu0 %v2048, 127
  %v2204 = vpop.permute.xlu0 %2203
  %v2205 = vsel %vm459, %v2192, %v2194
  %v2206 = vsel %vm459, %v2194, %v2196
  %v2207 = vsel %vm459, %v2196, %v2198
  %v2208 = vsel %vm459, %v2198, %v2200
  %v2209 = vsel %vm459, %v2200, %v2202
  %v2210 = vsel %vm459, %v2202, %v2204
  %2217 = vst [vmem:[#allocation5 + $0xf0] sm:$0xff] %v2205
  %2218 = vst [vmem:[#allocation5 + $0xf8] sm:$0xff] %v2206
  %2219 = vst [vmem:[#allocation5 + $0x100] sm:$0xff] %v2207
  %2220 = vst [vmem:[#allocation5 + $0x108] sm:$0xff] %v2208
  %2221 = vst [vmem:[#allocation5 + $0x110] sm:$0xff] %v2209
  %2222 = vst [vmem:[#allocation5 + $0x118] sm:$0xff] %v2210
  %2223 = vrot.lane.b32.xlu0 %v2042, 111
  %v2224 = vpop.permute.xlu0 %2223
  %2225 = vrot.lane.b32.xlu0 %v2043, 111
  %v2226 = vpop.permute.xlu0 %2225
  %2227 = vrot.lane.b32.xlu0 %v2044, 111
  %v2228 = vpop.permute.xlu0 %2227
  %2229 = vrot.lane.b32.xlu0 %v2045, 111
  %v2230 = vpop.permute.xlu0 %2229
  %2231 = vrot.lane.b32.xlu0 %v2046, 111
  %v2232 = vpop.permute.xlu0 %2231
  %2233 = vrot.lane.b32.xlu0 %v2047, 111
  %v2234 = vpop.permute.xlu0 %2233
  %2235 = vrot.lane.b32.xlu0 %v2048, 111
  %v2236 = vpop.permute.xlu0 %2235
  %v2237 = vsel %vm492, %v2224, %v2226
  %v2238 = vsel %vm492, %v2226, %v2228
  %v2239 = vsel %vm492, %v2228, %v2230
  %v2240 = vsel %vm492, %v2230, %v2232
  %v2241 = vsel %vm492, %v2232, %v2234
  %v2242 = vsel %vm492, %v2234, %v2236
  %2249 = vst [vmem:[#allocation5 + $0x120] sm:$0xff] %v2237
  %2250 = vst [vmem:[#allocation5 + $0x128] sm:$0xff] %v2238
  %2251 = vst [vmem:[#allocation5 + $0x130] sm:$0xff] %v2239
  %2252 = vst [vmem:[#allocation5 + $0x138] sm:$0xff] %v2240
  %2253 = vst [vmem:[#allocation5 + $0x140] sm:$0xff] %v2241
  %2254 = vst [vmem:[#allocation5 + $0x148] sm:$0xff] %v2242
  %2255 = vrot.lane.b32.xlu0 %v2042, 110
  %v2256 = vpop.permute.xlu0 %2255
  %2257 = vrot.lane.b32.xlu0 %v2043, 110
  %v2258 = vpop.permute.xlu0 %2257
  %2259 = vrot.lane.b32.xlu0 %v2044, 110
  %v2260 = vpop.permute.xlu0 %2259
  %2261 = vrot.lane.b32.xlu0 %v2045, 110
  %v2262 = vpop.permute.xlu0 %2261
  %2263 = vrot.lane.b32.xlu0 %v2046, 110
  %v2264 = vpop.permute.xlu0 %2263
  %2265 = vrot.lane.b32.xlu0 %v2047, 110
  %v2266 = vpop.permute.xlu0 %2265
  %2267 = vrot.lane.b32.xlu0 %v2048, 110
  %v2268 = vpop.permute.xlu0 %2267
  %v2269 = vsel %vm525, %v2256, %v2258
  %v2270 = vsel %vm525, %v2258, %v2260
  %v2271 = vsel %vm525, %v2260, %v2262
  %v2272 = vsel %vm525, %v2262, %v2264
  %v2273 = vsel %vm525, %v2264, %v2266
  %v2274 = vsel %vm525, %v2266, %v2268
  %2281 = vst [vmem:[#allocation5 + $0x150] sm:$0xff] %v2269
  %2282 = vst [vmem:[#allocation5 + $0x158] sm:$0xff] %v2270
  %2283 = vst [vmem:[#allocation5 + $0x160] sm:$0xff] %v2271
  %2284 = vst [vmem:[#allocation5 + $0x168] sm:$0xff] %v2272
  %2285 = vst [vmem:[#allocation5 + $0x170] sm:$0xff] %v2273
  %2286 = vst [vmem:[#allocation5 + $0x178] sm:$0xff] %v2274
  %2287 = vrot.lane.b32.xlu0 %v2042, 109
  %v2288 = vpop.permute.xlu0 %2287
  %2289 = vrot.lane.b32.xlu0 %v2043, 109
  %v2290 = vpop.permute.xlu0 %2289
  %2291 = vrot.lane.b32.xlu0 %v2044, 109
  %v2292 = vpop.permute.xlu0 %2291
  %2293 = vrot.lane.b32.xlu0 %v2045, 109
  %v2294 = vpop.permute.xlu0 %2293
  %2295 = vrot.lane.b32.xlu0 %v2046, 109
  %v2296 = vpop.permute.xlu0 %2295
  %2297 = vrot.lane.b32.xlu0 %v2047, 109
  %v2298 = vpop.permute.xlu0 %2297
  %2299 = vrot.lane.b32.xlu0 %v2048, 109
  %v2300 = vpop.permute.xlu0 %2299
  %v2301 = vsel %vm558, %v2288, %v2290
  %v2302 = vsel %vm558, %v2290, %v2292
  %v2303 = vsel %vm558, %v2292, %v2294
  %v2304 = vsel %vm558, %v2294, %v2296
  %v2305 = vsel %vm558, %v2296, %v2298
  %v2306 = vsel %vm558, %v2298, %v2300
  %2313 = vst [vmem:[#allocation5 + $0x180] sm:$0xff] %v2301
  %2314 = vst [vmem:[#allocation5 + $0x188] sm:$0xff] %v2302
  %2315 = vst [vmem:[#allocation5 + $0x190] sm:$0xff] %v2303
  %2316 = vst [vmem:[#allocation5 + $0x198] sm:$0xff] %v2304
  %2317 = vst [vmem:[#allocation5 + $0x1a0] sm:$0xff] %v2305
  %2318 = vst [vmem:[#allocation5 + $0x1a8] sm:$0xff] %v2306
  %s2319 = scalar_lea.vmem %s1, 48
  %v2320 = vld [vmem:[%s2319] sm:$0xff]
  %v2321 = vld [vmem:[%s2319 + $0x8] sm:$0xff]
  %v2322 = vld [vmem:[#allocation5] sm:$0xff]
  %v2323 = vld [vmem:[#allocation5 + $0x8] sm:$0xff]
  %v2324 = vld [vmem:[#allocation5 + $0x10] sm:$0xff]
  %v2325 = vld [vmem:[#allocation5 + $0x18] sm:$0xff]
  %v2326 = vld [vmem:[#allocation5 + $0x20] sm:$0xff]
  %v2327 = vld [vmem:[#allocation5 + $0x28] sm:$0xff]
  %v2328 = vld [vmem:[#allocation5 + $0x30] sm:$0xff]
  %v2329 = vld [vmem:[#allocation5 + $0x38] sm:$0xff]
  %v2330 = vld [vmem:[#allocation5 + $0x40] sm:$0xff]
  %v2331 = vld [vmem:[#allocation5 + $0x48] sm:$0xff]
  %v2332 = vld [vmem:[#allocation5 + $0x50] sm:$0xff]
  %v2333 = vld [vmem:[#allocation5 + $0x58] sm:$0xff]
  %v2334 = vld [vmem:[#allocation5 + $0x60] sm:$0xff]
  %v2335 = vld [vmem:[#allocation5 + $0x68] sm:$0xff]
  %v2336 = vld [vmem:[#allocation5 + $0x70] sm:$0xff]
  %v2337 = vld [vmem:[#allocation5 + $0x78] sm:$0xff]
  %v2338 = vld [vmem:[#allocation5 + $0x80] sm:$0xff]
  %v2339 = vld [vmem:[#allocation5 + $0x88] sm:$0xff]
  %v2340 = vld [vmem:[#allocation5 + $0x90] sm:$0xff]
  %v2341 = vld [vmem:[#allocation5 + $0x98] sm:$0xff]
  %v2342 = vld [vmem:[#allocation5 + $0xa0] sm:$0xff]
  %v2343 = vld [vmem:[#allocation5 + $0xa8] sm:$0xff]
  %v2344 = vld [vmem:[#allocation5 + $0xb0] sm:$0xff]
  %v2345 = vld [vmem:[#allocation5 + $0xb8] sm:$0xff]
  %v2346 = vld [vmem:[#allocation5 + $0xc0] sm:$0xff]
  %v2347 = vld [vmem:[#allocation5 + $0xc8] sm:$0xff]
  %v2348 = vld [vmem:[#allocation5 + $0xd0] sm:$0xff]
  %v2349 = vld [vmem:[#allocation5 + $0xd8] sm:$0xff]
  %v2350 = vld [vmem:[#allocation5 + $0xe0] sm:$0xff]
  %v2351 = vld [vmem:[#allocation5 + $0xe8] sm:$0xff]
  %v2352 = vld [vmem:[#allocation5 + $0xf0] sm:$0xff]
  %v2353 = vld [vmem:[#allocation5 + $0xf8] sm:$0xff]
  %v2354 = vld [vmem:[#allocation5 + $0x100] sm:$0xff]
  %v2355 = vld [vmem:[#allocation5 + $0x108] sm:$0xff]
  %v2356 = vld [vmem:[#allocation5 + $0x110] sm:$0xff]
  %v2357 = vld [vmem:[#allocation5 + $0x118] sm:$0xff]
  %v2358 = vld [vmem:[#allocation5 + $0x120] sm:$0xff]
  %v2359 = vld [vmem:[#allocation5 + $0x128] sm:$0xff]
  %v2360 = vld [vmem:[#allocation5 + $0x130] sm:$0xff]
  %v2361 = vld [vmem:[#allocation5 + $0x138] sm:$0xff]
  %v2362 = vld [vmem:[#allocation5 + $0x140] sm:$0xff]
  %v2363 = vld [vmem:[#allocation5 + $0x148] sm:$0xff]
  %v2364 = vld [vmem:[#allocation5 + $0x150] sm:$0xff]
  %v2365 = vld [vmem:[#allocation5 + $0x158] sm:$0xff]
  %v2366 = vld [vmem:[#allocation5 + $0x160] sm:$0xff]
  %v2367 = vld [vmem:[#allocation5 + $0x168] sm:$0xff]
  %v2368 = vld [vmem:[#allocation5 + $0x170] sm:$0xff]
  %v2369 = vld [vmem:[#allocation5 + $0x178] sm:$0xff]
  %v2370 = vld [vmem:[#allocation5 + $0x180] sm:$0xff]
  %v2371 = vld [vmem:[#allocation5 + $0x188] sm:$0xff]
  %v2372 = vld [vmem:[#allocation5 + $0x190] sm:$0xff]
  %v2373 = vld [vmem:[#allocation5 + $0x198] sm:$0xff]
  %v2374 = vld [vmem:[#allocation5 + $0x1a0] sm:$0xff]
  %v2375 = vld [vmem:[#allocation5 + $0x1a8] sm:$0xff]
  %s2376 = scalar_lea.vmem %s2, 48
  %v2377 = vld [vmem:[%s2376] sm:$0xff]
  %v2378 = vld [vmem:[%s2376 + $0x8] sm:$0xff]
  %2380 = vset.pattern.permute.xlu0 0
  %2381 = vperm.xlu0 %2380, %v2377
  %v2382 = vpop.permute.xlu0 %2381
  %2385 = vset.pattern.permute.xlu0 0
  %2386 = vperm.xlu0 %2385, %v2378
  %v2387 = vpop.permute.xlu0 %2386
  %v2391 = vunpack.c.l.b16 %v2320
  %v2392 = vunpack.c.h.b16 %v2320
  %v2393 = vunpack.c.l.b16 %v2321
  %v2394 = vunpack.c.h.b16 %v2321
  %v2395 = vpack.c.b16 %v2393, %v2391
  %v2396 = vpack.c.b16 %v2394, %v2392
  %v2399 = vsel %vm654, %v2396, 0
  %2401 = vmatprep.subr.bf16.mxu0 %v2323
  %2402 = vmatpush1.bf16.msra.mxu0 %v2322
  %2403 = vmatprep.subr.bf16.mxu0 %v2329
  %2404 = vmatpush1.bf16.msra.mxu0 %v2328
  %2405 = vmatprep.subr.bf16.mxu0 %v2335
  %2406 = vmatpush1.bf16.msra.mxu0 %v2334
  %2407 = vmatprep.subr.bf16.mxu0 %v2341
  %2408 = vmatpush1.bf16.msra.mxu0 %v2340
  %2409 = vmatprep.subr.bf16.mxu0 %v2347
  %2410 = vmatpush1.bf16.msra.mxu0 %v2346
  %2411 = vmatprep.subr.bf16.mxu0 %v2353
  %2412 = vmatpush1.bf16.msra.mxu0 %v2352
  %2413 = vmatprep.subr.bf16.mxu0 %v2359
  %2414 = vmatpush1.bf16.msra.mxu0 %v2358
  %2415 = vmatprep.subr.bf16.mxu0 %v2365
  %2416 = vmatpush1.bf16.msra.mxu0 %v2364
  %2417 = vmatprep.subr.bf16.mxu0 %v2371
  %2418 = vmatpush1.bf16.msra.mxu0 %v2370
  %2419 = vmatprep.subr.bf16.mxu0 0
  %2420 = vmatpush1.bf16.msra.mxu0 0
  %2421 = vmatprep.subr.bf16.mxu0 0
  %2422 = vmatpush1.bf16.msra.mxu0 0
  %2423 = vmatprep.subr.bf16.mxu0 0
  %2424 = vmatpush1.bf16.msra.mxu0 0
  %2425 = vmatprep.subr.bf16.mxu0 0
  %2426 = vmatpush1.bf16.msra.mxu0 0
  %2427 = vmatprep.subr.bf16.mxu0 0
  %2428 = vmatpush1.bf16.msra.mxu0 0
  %2429 = vmatprep.subr.bf16.mxu0 0
  %2430 = vmatpush1.bf16.msra.mxu0 0
  %2431 = vmatprep.subr.bf16.mxu0 0
  %2432 = vmatpush1.bf16.msra.mxu0 0
  %2433 = vmatprep.mubr.bf16.mxu0 %v2399
  %2434 = vmatmul.mubr.bf16.gmra.mrb[0].mxu0 %v2395
  %v2435 = vpop.f32.mrb[0].mxu0
  %v2436 = vadd.f32 %v2382, %v2435
  %v2437 = vpop.f32.mrb[0].mxu0
  %v2438 = vadd.f32 %v2382, %v2437
  %v2439 = vpop.f32.mrb[0].mxu0
  %v2440 = vadd.f32 %v2387, %v2439
  %v2441 = vpop.f32.mrb[0].mxu0
  %v2442 = vadd.f32 %v2387, %v2441
  %2443 = vdwg.mxu0
  %2444 = vmatprep.subr.bf16.mxu0 %v2325
  %2445 = vmatpush1.bf16.msra.mxu0 %v2324
  %2446 = vmatprep.subr.bf16.mxu0 %v2331
  %2447 = vmatpush1.bf16.msra.mxu0 %v2330
  %2448 = vmatprep.subr.bf16.mxu0 %v2337
  %2449 = vmatpush1.bf16.msra.mxu0 %v2336
  %2450 = vmatprep.subr.bf16.mxu0 %v2343
  %2451 = vmatpush1.bf16.msra.mxu0 %v2342
  %2452 = vmatprep.subr.bf16.mxu0 %v2349
  %2453 = vmatpush1.bf16.msra.mxu0 %v2348
  %2454 = vmatprep.subr.bf16.mxu0 %v2355
  %2455 = vmatpush1.bf16.msra.mxu0 %v2354
  %2456 = vmatprep.subr.bf16.mxu0 %v2361
  %2457 = vmatpush1.bf16.msra.mxu0 %v2360
  %2458 = vmatprep.subr.bf16.mxu0 %v2367
  %2459 = vmatpush1.bf16.msra.mxu0 %v2366
  %2460 = vmatprep.subr.bf16.mxu0 %v2373
  %2461 = vmatpush1.bf16.msra.mxu0 %v2372
  %2462 = vmatprep.subr.bf16.mxu0 0
  %2463 = vmatpush1.bf16.msra.mxu0 0
  %2464 = vmatprep.subr.bf16.mxu0 0
  %2465 = vmatpush1.bf16.msra.mxu0 0
  %2466 = vmatprep.subr.bf16.mxu0 0
  %2467 = vmatpush1.bf16.msra.mxu0 0
  %2468 = vmatprep.subr.bf16.mxu0 0
  %2469 = vmatpush1.bf16.msra.mxu0 0
  %2470 = vmatprep.subr.bf16.mxu0 0
  %2471 = vmatpush1.bf16.msra.mxu0 0
  %2472 = vmatprep.subr.bf16.mxu0 0
  %2473 = vmatpush1.bf16.msra.mxu0 0
  %2474 = vmatprep.subr.bf16.mxu0 0
  %2475 = vmatpush1.bf16.msra.mxu0 0
  %2476 = vmatprep.mubr.bf16.mxu0 %v2399
  %2477 = vmatmul.mubr.bf16.gmra.mrb[0].mxu0 %v2395
  %v2478 = vpop.f32.mrb[0].mxu0
  %v2479 = vadd.f32 %v2382, %v2478
  %v2480 = vpop.f32.mrb[0].mxu0
  %v2481 = vadd.f32 %v2382, %v2480
  %v2482 = vpop.f32.mrb[0].mxu0
  %v2483 = vadd.f32 %v2387, %v2482
  %v2484 = vpop.f32.mrb[0].mxu0
  %v2485 = vadd.f32 %v2387, %v2484
  %2486 = vdwg.mxu0
  %2487 = vmatprep.subr.bf16.mxu0 %v2327
  %2488 = vmatpush1.bf16.msra.mxu0 %v2326
  %2489 = vmatprep.subr.bf16.mxu0 %v2333
  %2490 = vmatpush1.bf16.msra.mxu0 %v2332
  %2491 = vmatprep.subr.bf16.mxu0 %v2339
  %2492 = vmatpush1.bf16.msra.mxu0 %v2338
  %2493 = vmatprep.subr.bf16.mxu0 %v2345
  %2494 = vmatpush1.bf16.msra.mxu0 %v2344
  %2495 = vmatprep.subr.bf16.mxu0 %v2351
  %2496 = vmatpush1.bf16.msra.mxu0 %v2350
  %2497 = vmatprep.subr.bf16.mxu0 %v2357
  %2498 = vmatpush1.bf16.msra.mxu0 %v2356
  %2499 = vmatprep.subr.bf16.mxu0 %v2363
  %2500 = vmatpush1.bf16.msra.mxu0 %v2362
  %2501 = vmatprep.subr.bf16.mxu0 %v2369
  %2502 = vmatpush1.bf16.msra.mxu0 %v2368
  %2503 = vmatprep.subr.bf16.mxu0 %v2375
  %2504 = vmatpush1.bf16.msra.mxu0 %v2374
  %2505 = vmatprep.subr.bf16.mxu0 0
  %2506 = vmatpush1.bf16.msra.mxu0 0
  %2507 = vmatprep.subr.bf16.mxu0 0
  %2508 = vmatpush1.bf16.msra.mxu0 0
  %2509 = vmatprep.subr.bf16.mxu0 0
  %2510 = vmatpush1.bf16.msra.mxu0 0
  %2511 = vmatprep.subr.bf16.mxu0 0
  %2512 = vmatpush1.bf16.msra.mxu0 0
  %2513 = vmatprep.subr.bf16.mxu0 0
  %2514 = vmatpush1.bf16.msra.mxu0 0
  %2515 = vmatprep.subr.bf16.mxu0 0
  %2516 = vmatpush1.bf16.msra.mxu0 0
  %2517 = vmatprep.subr.bf16.mxu0 0
  %2518 = vmatpush1.bf16.msra.mxu0 0
  %2519 = vmatprep.mubr.bf16.mxu0 %v2399
  %2520 = vmatmul.mubr.bf16.gmra.mrb[0].mxu0 %v2395
  %v2521 = vpop.f32.mrb[0].mxu0
  %v2522 = vadd.f32 %v2382, %v2521
  %v2523 = vpop.f32.mrb[0].mxu0
  %v2524 = vadd.f32 %v2382, %v2523
  %v2525 = vpop.f32.mrb[0].mxu0
  %v2526 = vadd.f32 %v2387, %v2525
  %v2527 = vpop.f32.mrb[0].mxu0
  %v2528 = vadd.f32 %v2387, %v2527
  %2529 = vdwg.mxu0
  %v2530 = vmax.f32 %v2436, 0.0
  %v2531 = vmax.f32 %v2438, 0.0
  %v2532 = vmax.f32 %v2479, 0.0
  %v2533 = vmax.f32 %v2481, 0.0
  %v2534 = vmax.f32 %v2522, 0.0
  %v2535 = vmax.f32 %v2524, 0.0
  %v2536 = vmax.f32 %v2440, 0.0
  %v2537 = vmax.f32 %v2442, 0.0
  %v2538 = vmax.f32 %v2483, 0.0
  %v2539 = vmax.f32 %v2485, 0.0
  %v2540 = vmax.f32 %v2526, 0.0
  %v2541 = vmax.f32 %v2528, 0.0
  %v2542 = vld [vmem:[%s3] sm:$0x3f]
  %v2544 = vlaneseq
  %v2545 = vshrl.u32 %v2544, 7
  %v2546 = vsub.s32 0, %v2545
  %v2547 = vrot.slane %v2542, %v2546
  %v2548 = vlaneseq
  %v2549 = vshrl.u32 %v2548, 7
  %v2550 = vsub.s32 1, %v2549
  %v2551 = vrot.slane %v2542, %v2550
  %v2552 = vlaneseq
  %v2553 = vshrl.u32 %v2552, 7
  %v2554 = vsub.s32 2, %v2553
  %v2555 = vrot.slane %v2542, %v2554
  %v2556 = vlaneseq
  %v2557 = vshrl.u32 %v2556, 7
  %v2558 = vsub.s32 3, %v2557
  %v2559 = vrot.slane %v2542, %v2558
  %v2560 = vlaneseq
  %v2561 = vshrl.u32 %v2560, 7
  %v2562 = vsub.s32 4, %v2561
  %v2563 = vrot.slane %v2542, %v2562
  %v2564 = vlaneseq
  %v2565 = vshrl.u32 %v2564, 7
  %v2566 = vsub.s32 5, %v2565
  %v2567 = vrot.slane %v2542, %v2566
  %v2574 = vmul.f32 %v2530, %v2547
  %v2575 = vmul.f32 %v2531, %v2551
  %v2576 = vmul.f32 %v2532, %v2555
  %v2577 = vmul.f32 %v2533, %v2559
  %v2578 = vmul.f32 %v2534, %v2563
  %v2579 = vmul.f32 %v2535, %v2567
  %v2580 = vmul.f32 %v2536, %v2547
  %v2581 = vmul.f32 %v2537, %v2551
  %v2582 = vmul.f32 %v2538, %v2555
  %v2583 = vmul.f32 %v2539, %v2559
  %v2584 = vmul.f32 %v2540, %v2563
  %v2585 = vmul.f32 %v2541, %v2567
  %2586 = vst [vmem:[#allocation4 + $0x8] sm:$0xff] %v2574
  %2587 = vst [vmem:[#allocation4 + $0x10] sm:$0xff] %v2575
  %2588 = vst [vmem:[#allocation4 + $0x18] sm:$0xff] %v2576
  %2589 = vst [vmem:[#allocation4 + $0x20] sm:$0xff] %v2577
  %2590 = vst [vmem:[#allocation4 + $0x28] sm:$0xff] %v2578
  %2591 = vst [vmem:[#allocation4 + $0x30] sm:$0xff] %v2579
  %2592 = vst [vmem:[#allocation4 + $0x48] sm:$0xff] %v2580
  %2593 = vst [vmem:[#allocation4 + $0x50] sm:$0xff] %v2581
  %2594 = vst [vmem:[#allocation4 + $0x58] sm:$0xff] %v2582
  %2595 = vst [vmem:[#allocation4 + $0x60] sm:$0xff] %v2583
  %2596 = vst [vmem:[#allocation4 + $0x68] sm:$0xff] %v2584
  %2597 = vst [vmem:[#allocation4 + $0x70] sm:$0xff] %v2585
  %v2598 = vld [vmem:[#allocation4] sm:$0xff]
  %v2599 = vld [vmem:[#allocation4 + $0x8] sm:$0xff]
  %v2600 = vld [vmem:[#allocation4 + $0x10] sm:$0xff]
  %v2601 = vld [vmem:[#allocation4 + $0x18] sm:$0xff]
  %v2602 = vld [vmem:[#allocation4 + $0x20] sm:$0xff]
  %v2603 = vld [vmem:[#allocation4 + $0x28] sm:$0xff]
  %v2604 = vld [vmem:[#allocation4 + $0x30] sm:$0xff]
  %v2605 = vld [vmem:[#allocation4 + $0x38] sm:$0xff]
  %v2606 = vld [vmem:[#allocation4 + $0x40] sm:$0xff]
  %v2607 = vld [vmem:[#allocation4 + $0x48] sm:$0xff]
  %v2608 = vld [vmem:[#allocation4 + $0x50] sm:$0xff]
  %v2609 = vld [vmem:[#allocation4 + $0x58] sm:$0xff]
  %v2610 = vld [vmem:[#allocation4 + $0x60] sm:$0xff]
  %v2611 = vld [vmem:[#allocation4 + $0x68] sm:$0xff]
  %v2612 = vld [vmem:[#allocation4 + $0x70] sm:$0xff]
  %v2613 = vld [vmem:[#allocation4 + $0x78] sm:$0xff]
  %v2614 = vpack.c.bf16 %v2606, %v2598
  %v2615 = vpack.c.bf16 %v2607, %v2599
  %v2616 = vpack.c.bf16 %v2608, %v2600
  %v2617 = vpack.c.bf16 %v2609, %v2601
  %v2618 = vpack.c.bf16 %v2610, %v2602
  %v2619 = vpack.c.bf16 %v2611, %v2603
  %v2620 = vpack.c.bf16 %v2612, %v2604
  %v2621 = vpack.c.bf16 %v2613, %v2605
  %2629 = vrot.lane.b32.xlu0 %v2614, 19
  %v2630 = vpop.permute.xlu0 %2629
  %2631 = vrot.lane.b32.xlu0 %v2615, 19
  %v2632 = vpop.permute.xlu0 %2631
  %2633 = vrot.lane.b32.xlu0 %v2616, 19
  %v2634 = vpop.permute.xlu0 %2633
  %2635 = vrot.lane.b32.xlu0 %v2617, 19
  %v2636 = vpop.permute.xlu0 %2635
  %2637 = vrot.lane.b32.xlu0 %v2618, 19
  %v2638 = vpop.permute.xlu0 %2637
  %2639 = vrot.lane.b32.xlu0 %v2619, 19
  %v2640 = vpop.permute.xlu0 %2639
  %2641 = vrot.lane.b32.xlu0 %v2620, 19
  %v2642 = vpop.permute.xlu0 %2641
  %v2643 = vsel %vm320, %v2630, %v2632
  %v2644 = vsel %vm320, %v2632, %v2634
  %v2645 = vsel %vm320, %v2634, %v2636
  %v2646 = vsel %vm320, %v2636, %v2638
  %v2647 = vsel %vm320, %v2638, %v2640
  %v2648 = vsel %vm320, %v2640, %v2642
  %2655 = vst [vmem:[#allocation5] sm:$0xff] %v2643
  %2656 = vst [vmem:[#allocation5 + $0x8] sm:$0xff] %v2644
  %2657 = vst [vmem:[#allocation5 + $0x10] sm:$0xff] %v2645
  %2658 = vst [vmem:[#allocation5 + $0x18] sm:$0xff] %v2646
  %2659 = vst [vmem:[#allocation5 + $0x20] sm:$0xff] %v2647
  %2660 = vst [vmem:[#allocation5 + $0x28] sm:$0xff] %v2648
  %2661 = vrot.lane.b32.xlu0 %v2614, 18
  %v2662 = vpop.permute.xlu0 %2661
  %2663 = vrot.lane.b32.xlu0 %v2615, 18
  %v2664 = vpop.permute.xlu0 %2663
  %2665 = vrot.lane.b32.xlu0 %v2616, 18
  %v2666 = vpop.permute.xlu0 %2665
  %2667 = vrot.lane.b32.xlu0 %v2617, 18
  %v2668 = vpop.permute.xlu0 %2667
  %2669 = vrot.lane.b32.xlu0 %v2618, 18
  %v2670 = vpop.permute.xlu0 %2669
  %2671 = vrot.lane.b32.xlu0 %v2619, 18
  %v2672 = vpop.permute.xlu0 %2671
  %2673 = vrot.lane.b32.xlu0 %v2620, 18
  %v2674 = vpop.permute.xlu0 %2673
  %v2675 = vsel %vm353, %v2662, %v2664
  %v2676 = vsel %vm353, %v2664, %v2666
  %v2677 = vsel %vm353, %v2666, %v2668
  %v2678 = vsel %vm353, %v2668, %v2670
  %v2679 = vsel %vm353, %v2670, %v2672
  %v2680 = vsel %vm353, %v2672, %v2674
  %2687 = vst [vmem:[#allocation5 + $0x30] sm:$0xff] %v2675
  %2688 = vst [vmem:[#allocation5 + $0x38] sm:$0xff] %v2676
  %2689 = vst [vmem:[#allocation5 + $0x40] sm:$0xff] %v2677
  %2690 = vst [vmem:[#allocation5 + $0x48] sm:$0xff] %v2678
  %2691 = vst [vmem:[#allocation5 + $0x50] sm:$0xff] %v2679
  %2692 = vst [vmem:[#allocation5 + $0x58] sm:$0xff] %v2680
  %2693 = vrot.lane.b32.xlu0 %v2614, 17
  %v2694 = vpop.permute.xlu0 %2693
  %2695 = vrot.lane.b32.xlu0 %v2615, 17
  %v2696 = vpop.permute.xlu0 %2695
  %2697 = vrot.lane.b32.xlu0 %v2616, 17
  %v2698 = vpop.permute.xlu0 %2697
  %2699 = vrot.lane.b32.xlu0 %v2617, 17
  %v2700 = vpop.permute.xlu0 %2699
  %2701 = vrot.lane.b32.xlu0 %v2618, 17
  %v2702 = vpop.permute.xlu0 %2701
  %2703 = vrot.lane.b32.xlu0 %v2619, 17
  %v2704 = vpop.permute.xlu0 %2703
  %2705 = vrot.lane.b32.xlu0 %v2620, 17
  %v2706 = vpop.permute.xlu0 %2705
  %v2707 = vsel %vm386, %v2694, %v2696
  %v2708 = vsel %vm386, %v2696, %v2698
  %v2709 = vsel %vm386, %v2698, %v2700
  %v2710 = vsel %vm386, %v2700, %v2702
  %v2711 = vsel %vm386, %v2702, %v2704
  %v2712 = vsel %vm386, %v2704, %v2706
  %2719 = vst [vmem:[#allocation5 + $0x60] sm:$0xff] %v2707
  %2720 = vst [vmem:[#allocation5 + $0x68] sm:$0xff] %v2708
  %2721 = vst [vmem:[#allocation5 + $0x70] sm:$0xff] %v2709
  %2722 = vst [vmem:[#allocation5 + $0x78] sm:$0xff] %v2710
  %2723 = vst [vmem:[#allocation5 + $0x80] sm:$0xff] %v2711
  %2724 = vst [vmem:[#allocation5 + $0x88] sm:$0xff] %v2712
  %2725 = vrot.lane.b32.xlu0 %v2614, 1
  %v2726 = vpop.permute.xlu0 %2725
  %2727 = vrot.lane.b32.xlu0 %v2615, 1
  %v2728 = vpop.permute.xlu0 %2727
  %2729 = vrot.lane.b32.xlu0 %v2616, 1
  %v2730 = vpop.permute.xlu0 %2729
  %2731 = vrot.lane.b32.xlu0 %v2617, 1
  %v2732 = vpop.permute.xlu0 %2731
  %2733 = vrot.lane.b32.xlu0 %v2618, 1
  %v2734 = vpop.permute.xlu0 %2733
  %2735 = vrot.lane.b32.xlu0 %v2619, 1
  %v2736 = vpop.permute.xlu0 %2735
  %2737 = vrot.lane.b32.xlu0 %v2620, 1
  %v2738 = vpop.permute.xlu0 %2737
  %v2739 = vsel %vm419, %v2726, %v2728
  %v2740 = vsel %vm419, %v2728, %v2730
  %v2741 = vsel %vm419, %v2730, %v2732
  %v2742 = vsel %vm419, %v2732, %v2734
  %v2743 = vsel %vm419, %v2734, %v2736
  %v2744 = vsel %vm419, %v2736, %v2738
  %2751 = vst [vmem:[#allocation5 + $0x90] sm:$0xff] %v2739
  %2752 = vst [vmem:[#allocation5 + $0x98] sm:$0xff] %v2740
  %2753 = vst [vmem:[#allocation5 + $0xa0] sm:$0xff] %v2741
  %2754 = vst [vmem:[#allocation5 + $0xa8] sm:$0xff] %v2742
  %2755 = vst [vmem:[#allocation5 + $0xb0] sm:$0xff] %v2743
  %2756 = vst [vmem:[#allocation5 + $0xb8] sm:$0xff] %v2744
  %2757 = vst [vmem:[#allocation5 + $0xc0] sm:$0xff] %v2615
  %2758 = vst [vmem:[#allocation5 + $0xc8] sm:$0xff] %v2616
  %2759 = vst [vmem:[#allocation5 + $0xd0] sm:$0xff] %v2617
  %2760 = vst [vmem:[#allocation5 + $0xd8] sm:$0xff] %v2618
  %2761 = vst [vmem:[#allocation5 + $0xe0] sm:$0xff] %v2619
  %2762 = vst [vmem:[#allocation5 + $0xe8] sm:$0xff] %v2620
  %2764 = vrot.lane.b32.xlu0 %v2615, 127
  %v2765 = vpop.permute.xlu0 %2764
  %2766 = vrot.lane.b32.xlu0 %v2616, 127
  %v2767 = vpop.permute.xlu0 %2766
  %2768 = vrot.lane.b32.xlu0 %v2617, 127
  %v2769 = vpop.permute.xlu0 %2768
  %2770 = vrot.lane.b32.xlu0 %v2618, 127
  %v2771 = vpop.permute.xlu0 %2770
  %2772 = vrot.lane.b32.xlu0 %v2619, 127
  %v2773 = vpop.permute.xlu0 %2772
  %2774 = vrot.lane.b32.xlu0 %v2620, 127
  %v2775 = vpop.permute.xlu0 %2774
  %2776 = vrot.lane.b32.xlu0 %v2621, 127
  %v2777 = vpop.permute.xlu0 %2776
  %v2778 = vsel %vm459, %v2765, %v2767
  %v2779 = vsel %vm459, %v2767, %v2769
  %v2780 = vsel %vm459, %v2769, %v2771
  %v2781 = vsel %vm459, %v2771, %v2773
  %v2782 = vsel %vm459, %v2773, %v2775
  %v2783 = vsel %vm459, %v2775, %v2777
  %2790 = vst [vmem:[#allocation5 + $0xf0] sm:$0xff] %v2778
  %2791 = vst [vmem:[#allocation5 + $0xf8] sm:$0xff] %v2779
  %2792 = vst [vmem:[#allocation5 + $0x100] sm:$0xff] %v2780
  %2793 = vst [vmem:[#allocation5 + $0x108] sm:$0xff] %v2781
  %2794 = vst [vmem:[#allocation5 + $0x110] sm:$0xff] %v2782
  %2795 = vst [vmem:[#allocation5 + $0x118] sm:$0xff] %v2783
  %2796 = vrot.lane.b32.xlu0 %v2615, 111
  %v2797 = vpop.permute.xlu0 %2796
  %2798 = vrot.lane.b32.xlu0 %v2616, 111
  %v2799 = vpop.permute.xlu0 %2798
  %2800 = vrot.lane.b32.xlu0 %v2617, 111
  %v2801 = vpop.permute.xlu0 %2800
  %2802 = vrot.lane.b32.xlu0 %v2618, 111
  %v2803 = vpop.permute.xlu0 %2802
  %2804 = vrot.lane.b32.xlu0 %v2619, 111
  %v2805 = vpop.permute.xlu0 %2804
  %2806 = vrot.lane.b32.xlu0 %v2620, 111
  %v2807 = vpop.permute.xlu0 %2806
  %2808 = vrot.lane.b32.xlu0 %v2621, 111
  %v2809 = vpop.permute.xlu0 %2808
  %v2810 = vsel %vm492, %v2797, %v2799
  %v2811 = vsel %vm492, %v2799, %v2801
  %v2812 = vsel %vm492, %v2801, %v2803
  %v2813 = vsel %vm492, %v2803, %v2805
  %v2814 = vsel %vm492, %v2805, %v2807
  %v2815 = vsel %vm492, %v2807, %v2809
  %2822 = vst [vmem:[#allocation5 + $0x120] sm:$0xff] %v2810
  %2823 = vst [vmem:[#allocation5 + $0x128] sm:$0xff] %v2811
  %2824 = vst [vmem:[#allocation5 + $0x130] sm:$0xff] %v2812
  %2825 = vst [vmem:[#allocation5 + $0x138] sm:$0xff] %v2813
  %2826 = vst [vmem:[#allocation5 + $0x140] sm:$0xff] %v2814
  %2827 = vst [vmem:[#allocation5 + $0x148] sm:$0xff] %v2815
  %2828 = vrot.lane.b32.xlu0 %v2615, 110
  %v2829 = vpop.permute.xlu0 %2828
  %2830 = vrot.lane.b32.xlu0 %v2616, 110
  %v2831 = vpop.permute.xlu0 %2830
  %2832 = vrot.lane.b32.xlu0 %v2617, 110
  %v2833 = vpop.permute.xlu0 %2832
  %2834 = vrot.lane.b32.xlu0 %v2618, 110
  %v2835 = vpop.permute.xlu0 %2834
  %2836 = vrot.lane.b32.xlu0 %v2619, 110
  %v2837 = vpop.permute.xlu0 %2836
  %2838 = vrot.lane.b32.xlu0 %v2620, 110
  %v2839 = vpop.permute.xlu0 %2838
  %2840 = vrot.lane.b32.xlu0 %v2621, 110
  %v2841 = vpop.permute.xlu0 %2840
  %v2842 = vsel %vm525, %v2829, %v2831
  %v2843 = vsel %vm525, %v2831, %v2833
  %v2844 = vsel %vm525, %v2833, %v2835
  %v2845 = vsel %vm525, %v2835, %v2837
  %v2846 = vsel %vm525, %v2837, %v2839
  %v2847 = vsel %vm525, %v2839, %v2841
  %2854 = vst [vmem:[#allocation5 + $0x150] sm:$0xff] %v2842
  %2855 = vst [vmem:[#allocation5 + $0x158] sm:$0xff] %v2843
  %2856 = vst [vmem:[#allocation5 + $0x160] sm:$0xff] %v2844
  %2857 = vst [vmem:[#allocation5 + $0x168] sm:$0xff] %v2845
  %2858 = vst [vmem:[#allocation5 + $0x170] sm:$0xff] %v2846
  %2859 = vst [vmem:[#allocation5 + $0x178] sm:$0xff] %v2847
  %2860 = vrot.lane.b32.xlu0 %v2615, 109
  %v2861 = vpop.permute.xlu0 %2860
  %2862 = vrot.lane.b32.xlu0 %v2616, 109
  %v2863 = vpop.permute.xlu0 %2862
  %2864 = vrot.lane.b32.xlu0 %v2617, 109
  %v2865 = vpop.permute.xlu0 %2864
  %2866 = vrot.lane.b32.xlu0 %v2618, 109
  %v2867 = vpop.permute.xlu0 %2866
  %2868 = vrot.lane.b32.xlu0 %v2619, 109
  %v2869 = vpop.permute.xlu0 %2868
  %2870 = vrot.lane.b32.xlu0 %v2620, 109
  %v2871 = vpop.permute.xlu0 %2870
  %2872 = vrot.lane.b32.xlu0 %v2621, 109
  %v2873 = vpop.permute.xlu0 %2872
  %v2874 = vsel %vm558, %v2861, %v2863
  %v2875 = vsel %vm558, %v2863, %v2865
  %v2876 = vsel %vm558, %v2865, %v2867
  %v2877 = vsel %vm558, %v2867, %v2869
  %v2878 = vsel %vm558, %v2869, %v2871
  %v2879 = vsel %vm558, %v2871, %v2873
  %2886 = vst [vmem:[#allocation5 + $0x180] sm:$0xff] %v2874
  %2887 = vst [vmem:[#allocation5 + $0x188] sm:$0xff] %v2875
  %2888 = vst [vmem:[#allocation5 + $0x190] sm:$0xff] %v2876
  %2889 = vst [vmem:[#allocation5 + $0x198] sm:$0xff] %v2877
  %2890 = vst [vmem:[#allocation5 + $0x1a0] sm:$0xff] %v2878
  %2891 = vst [vmem:[#allocation5 + $0x1a8] sm:$0xff] %v2879
  %s2892 = scalar_lea.vmem %s1, 64
  %v2893 = vld [vmem:[%s2892] sm:$0xff]
  %v2894 = vld [vmem:[%s2892 + $0x8] sm:$0xff]
  %v2895 = vld [vmem:[#allocation5] sm:$0xff]
  %v2896 = vld [vmem:[#allocation5 + $0x8] sm:$0xff]
  %v2897 = vld [vmem:[#allocation5 + $0x10] sm:$0xff]
  %v2898 = vld [vmem:[#allocation5 + $0x18] sm:$0xff]
  %v2899 = vld [vmem:[#allocation5 + $0x20] sm:$0xff]
  %v2900 = vld [vmem:[#allocation5 + $0x28] sm:$0xff]
  %v2901 = vld [vmem:[#allocation5 + $0x30] sm:$0xff]
  %v2902 = vld [vmem:[#allocation5 + $0x38] sm:$0xff]
  %v2903 = vld [vmem:[#allocation5 + $0x40] sm:$0xff]
  %v2904 = vld [vmem:[#allocation5 + $0x48] sm:$0xff]
  %v2905 = vld [vmem:[#allocation5 + $0x50] sm:$0xff]
  %v2906 = vld [vmem:[#allocation5 + $0x58] sm:$0xff]
  %v2907 = vld [vmem:[#allocation5 + $0x60] sm:$0xff]
  %v2908 = vld [vmem:[#allocation5 + $0x68] sm:$0xff]
  %v2909 = vld [vmem:[#allocation5 + $0x70] sm:$0xff]
  %v2910 = vld [vmem:[#allocation5 + $0x78] sm:$0xff]
  %v2911 = vld [vmem:[#allocation5 + $0x80] sm:$0xff]
  %v2912 = vld [vmem:[#allocation5 + $0x88] sm:$0xff]
  %v2913 = vld [vmem:[#allocation5 + $0x90] sm:$0xff]
  %v2914 = vld [vmem:[#allocation5 + $0x98] sm:$0xff]
  %v2915 = vld [vmem:[#allocation5 + $0xa0] sm:$0xff]
  %v2916 = vld [vmem:[#allocation5 + $0xa8] sm:$0xff]
  %v2917 = vld [vmem:[#allocation5 + $0xb0] sm:$0xff]
  %v2918 = vld [vmem:[#allocation5 + $0xb8] sm:$0xff]
  %v2919 = vld [vmem:[#allocation5 + $0xc0] sm:$0xff]
  %v2920 = vld [vmem:[#allocation5 + $0xc8] sm:$0xff]
  %v2921 = vld [vmem:[#allocation5 + $0xd0] sm:$0xff]
  %v2922 = vld [vmem:[#allocation5 + $0xd8] sm:$0xff]
  %v2923 = vld [vmem:[#allocation5 + $0xe0] sm:$0xff]
  %v2924 = vld [vmem:[#allocation5 + $0xe8] sm:$0xff]
  %v2925 = vld [vmem:[#allocation5 + $0xf0] sm:$0xff]
  %v2926 = vld [vmem:[#allocation5 + $0xf8] sm:$0xff]
  %v2927 = vld [vmem:[#allocation5 + $0x100] sm:$0xff]
  %v2928 = vld [vmem:[#allocation5 + $0x108] sm:$0xff]
  %v2929 = vld [vmem:[#allocation5 + $0x110] sm:$0xff]
  %v2930 = vld [vmem:[#allocation5 + $0x118] sm:$0xff]
  %v2931 = vld [vmem:[#allocation5 + $0x120] sm:$0xff]
  %v2932 = vld [vmem:[#allocation5 + $0x128] sm:$0xff]
  %v2933 = vld [vmem:[#allocation5 + $0x130] sm:$0xff]
  %v2934 = vld [vmem:[#allocation5 + $0x138] sm:$0xff]
  %v2935 = vld [vmem:[#allocation5 + $0x140] sm:$0xff]
  %v2936 = vld [vmem:[#allocation5 + $0x148] sm:$0xff]
  %v2937 = vld [vmem:[#allocation5 + $0x150] sm:$0xff]
  %v2938 = vld [vmem:[#allocation5 + $0x158] sm:$0xff]
  %v2939 = vld [vmem:[#allocation5 + $0x160] sm:$0xff]
  %v2940 = vld [vmem:[#allocation5 + $0x168] sm:$0xff]
  %v2941 = vld [vmem:[#allocation5 + $0x170] sm:$0xff]
  %v2942 = vld [vmem:[#allocation5 + $0x178] sm:$0xff]
  %v2943 = vld [vmem:[#allocation5 + $0x180] sm:$0xff]
  %v2944 = vld [vmem:[#allocation5 + $0x188] sm:$0xff]
  %v2945 = vld [vmem:[#allocation5 + $0x190] sm:$0xff]
  %v2946 = vld [vmem:[#allocation5 + $0x198] sm:$0xff]
  %v2947 = vld [vmem:[#allocation5 + $0x1a0] sm:$0xff]
  %v2948 = vld [vmem:[#allocation5 + $0x1a8] sm:$0xff]
  %s2949 = scalar_lea.vmem %s2, 64
  %v2950 = vld [vmem:[%s2949] sm:$0xff]
  %v2951 = vld [vmem:[%s2949 + $0x8] sm:$0xff]
  %2953 = vset.pattern.permute.xlu0 0
  %2954 = vperm.xlu0 %2953, %v2950
  %v2955 = vpop.permute.xlu0 %2954
  %2958 = vset.pattern.permute.xlu0 0
  %2959 = vperm.xlu0 %2958, %v2951
  %v2960 = vpop.permute.xlu0 %2959
  %v2964 = vunpack.c.l.b16 %v2893
  %v2965 = vunpack.c.h.b16 %v2893
  %v2966 = vunpack.c.l.b16 %v2894
  %v2967 = vunpack.c.h.b16 %v2894
  %v2968 = vpack.c.b16 %v2966, %v2964
  %v2969 = vpack.c.b16 %v2967, %v2965
  %v2972 = vsel %vm654, %v2969, 0
  %2974 = vmatprep.subr.bf16.mxu0 %v2896
  %2975 = vmatpush1.bf16.msra.mxu0 %v2895
  %2976 = vmatprep.subr.bf16.mxu0 %v2902
  %2977 = vmatpush1.bf16.msra.mxu0 %v2901
  %2978 = vmatprep.subr.bf16.mxu0 %v2908
  %2979 = vmatpush1.bf16.msra.mxu0 %v2907
  %2980 = vmatprep.subr.bf16.mxu0 %v2914
  %2981 = vmatpush1.bf16.msra.mxu0 %v2913
  %2982 = vmatprep.subr.bf16.mxu0 %v2920
  %2983 = vmatpush1.bf16.msra.mxu0 %v2919
  %2984 = vmatprep.subr.bf16.mxu0 %v2926
  %2985 = vmatpush1.bf16.msra.mxu0 %v2925
  %2986 = vmatprep.subr.bf16.mxu0 %v2932
  %2987 = vmatpush1.bf16.msra.mxu0 %v2931
  %2988 = vmatprep.subr.bf16.mxu0 %v2938
  %2989 = vmatpush1.bf16.msra.mxu0 %v2937
  %2990 = vmatprep.subr.bf16.mxu0 %v2944
  %2991 = vmatpush1.bf16.msra.mxu0 %v2943
  %2992 = vmatprep.subr.bf16.mxu0 0
  %2993 = vmatpush1.bf16.msra.mxu0 0
  %2994 = vmatprep.subr.bf16.mxu0 0
  %2995 = vmatpush1.bf16.msra.mxu0 0
  %2996 = vmatprep.subr.bf16.mxu0 0
  %2997 = vmatpush1.bf16.msra.mxu0 0
  %2998 = vmatprep.subr.bf16.mxu0 0
  %2999 = vmatpush1.bf16.msra.mxu0 0
  %3000 = vmatprep.subr.bf16.mxu0 0
  %3001 = vmatpush1.bf16.msra.mxu0 0
  %3002 = vmatprep.subr.bf16.mxu0 0
  %3003 = vmatpush1.bf16.msra.mxu0 0
  %3004 = vmatprep.subr.bf16.mxu0 0
  %3005 = vmatpush1.bf16.msra.mxu0 0
  %3006 = vmatprep.mubr.bf16.mxu0 %v2972
  %3007 = vmatmul.mubr.bf16.gmra.mrb[0].mxu0 %v2968
  %v3008 = vpop.f32.mrb[0].mxu0
  %v3009 = vadd.f32 %v2955, %v3008
  %v3010 = vpop.f32.mrb[0].mxu0
  %v3011 = vadd.f32 %v2955, %v3010
  %v3012 = vpop.f32.mrb[0].mxu0
  %v3013 = vadd.f32 %v2960, %v3012
  %v3014 = vpop.f32.mrb[0].mxu0
  %v3015 = vadd.f32 %v2960, %v3014
  %3016 = vdwg.mxu0
  %3017 = vmatprep.subr.bf16.mxu0 %v2898
  %3018 = vmatpush1.bf16.msra.mxu0 %v2897
  %3019 = vmatprep.subr.bf16.mxu0 %v2904
  %3020 = vmatpush1.bf16.msra.mxu0 %v2903
  %3021 = vmatprep.subr.bf16.mxu0 %v2910
  %3022 = vmatpush1.bf16.msra.mxu0 %v2909
  %3023 = vmatprep.subr.bf16.mxu0 %v2916
  %3024 = vmatpush1.bf16.msra.mxu0 %v2915
  %3025 = vmatprep.subr.bf16.mxu0 %v2922
  %3026 = vmatpush1.bf16.msra.mxu0 %v2921
  %3027 = vmatprep.subr.bf16.mxu0 %v2928
  %3028 = vmatpush1.bf16.msra.mxu0 %v2927
  %3029 = vmatprep.subr.bf16.mxu0 %v2934
  %3030 = vmatpush1.bf16.msra.mxu0 %v2933
  %3031 = vmatprep.subr.bf16.mxu0 %v2940
  %3032 = vmatpush1.bf16.msra.mxu0 %v2939
  %3033 = vmatprep.subr.bf16.mxu0 %v2946
  %3034 = vmatpush1.bf16.msra.mxu0 %v2945
  %3035 = vmatprep.subr.bf16.mxu0 0
  %3036 = vmatpush1.bf16.msra.mxu0 0
  %3037 = vmatprep.subr.bf16.mxu0 0
  %3038 = vmatpush1.bf16.msra.mxu0 0
  %3039 = vmatprep.subr.bf16.mxu0 0
  %3040 = vmatpush1.bf16.msra.mxu0 0
  %3041 = vmatprep.subr.bf16.mxu0 0
  %3042 = vmatpush1.bf16.msra.mxu0 0
  %3043 = vmatprep.subr.bf16.mxu0 0
  %3044 = vmatpush1.bf16.msra.mxu0 0
  %3045 = vmatprep.subr.bf16.mxu0 0
  %3046 = vmatpush1.bf16.msra.mxu0 0
  %3047 = vmatprep.subr.bf16.mxu0 0
  %3048 = vmatpush1.bf16.msra.mxu0 0
  %3049 = vmatprep.mubr.bf16.mxu0 %v2972
  %3050 = vmatmul.mubr.bf16.gmra.mrb[0].mxu0 %v2968
  %v3051 = vpop.f32.mrb[0].mxu0
  %v3052 = vadd.f32 %v2955, %v3051
  %v3053 = vpop.f32.mrb[0].mxu0
  %v3054 = vadd.f32 %v2955, %v3053
  %v3055 = vpop.f32.mrb[0].mxu0
  %v3056 = vadd.f32 %v2960, %v3055
  %v3057 = vpop.f32.mrb[0].mxu0
  %v3058 = vadd.f32 %v2960, %v3057
  %3059 = vdwg.mxu0
  %3060 = vmatprep.subr.bf16.mxu0 %v2900
  %3061 = vmatpush1.bf16.msra.mxu0 %v2899
  %3062 = vmatprep.subr.bf16.mxu0 %v2906
  %3063 = vmatpush1.bf16.msra.mxu0 %v2905
  %3064 = vmatprep.subr.bf16.mxu0 %v2912
  %3065 = vmatpush1.bf16.msra.mxu0 %v2911
  %3066 = vmatprep.subr.bf16.mxu0 %v2918
  %3067 = vmatpush1.bf16.msra.mxu0 %v2917
  %3068 = vmatprep.subr.bf16.mxu0 %v2924
  %3069 = vmatpush1.bf16.msra.mxu0 %v2923
  %3070 = vmatprep.subr.bf16.mxu0 %v2930
  %3071 = vmatpush1.bf16.msra.mxu0 %v2929
  %3072 = vmatprep.subr.bf16.mxu0 %v2936
  %3073 = vmatpush1.bf16.msra.mxu0 %v2935
  %3074 = vmatprep.subr.bf16.mxu0 %v2942
  %3075 = vmatpush1.bf16.msra.mxu0 %v2941
  %3076 = vmatprep.subr.bf16.mxu0 %v2948
  %3077 = vmatpush1.bf16.msra.mxu0 %v2947
  %3078 = vmatprep.subr.bf16.mxu0 0
  %3079 = vmatpush1.bf16.msra.mxu0 0
  %3080 = vmatprep.subr.bf16.mxu0 0
  %3081 = vmatpush1.bf16.msra.mxu0 0
  %3082 = vmatprep.subr.bf16.mxu0 0
  %3083 = vmatpush1.bf16.msra.mxu0 0
  %3084 = vmatprep.subr.bf16.mxu0 0
  %3085 = vmatpush1.bf16.msra.mxu0 0
  %3086 = vmatprep.subr.bf16.mxu0 0
  %3087 = vmatpush1.bf16.msra.mxu0 0
  %3088 = vmatprep.subr.bf16.mxu0 0
  %3089 = vmatpush1.bf16.msra.mxu0 0
  %3090 = vmatprep.subr.bf16.mxu0 0
  %3091 = vmatpush1.bf16.msra.mxu0 0
  %3092 = vmatprep.mubr.bf16.mxu0 %v2972
  %3093 = vmatmul.mubr.bf16.gmra.mrb[0].mxu0 %v2968
  %v3094 = vpop.f32.mrb[0].mxu0
  %v3095 = vadd.f32 %v2955, %v3094
  %v3096 = vpop.f32.mrb[0].mxu0
  %v3097 = vadd.f32 %v2955, %v3096
  %v3098 = vpop.f32.mrb[0].mxu0
  %v3099 = vadd.f32 %v2960, %v3098
  %v3100 = vpop.f32.mrb[0].mxu0
  %v3101 = vadd.f32 %v2960, %v3100
  %3102 = vdwg.mxu0
  %v3103 = vld [vmem:[#allocation3 + $0x8] sm:$0xff]
  %v3104 = vld [vmem:[#allocation3 + $0x10] sm:$0xff]
  %v3105 = vld [vmem:[#allocation3 + $0x18] sm:$0xff]
  %v3106 = vld [vmem:[#allocation3 + $0x20] sm:$0xff]
  %v3107 = vld [vmem:[#allocation3 + $0x28] sm:$0xff]
  %v3108 = vld [vmem:[#allocation3 + $0x30] sm:$0xff]
  %v3109 = vld [vmem:[#allocation3 + $0x48] sm:$0xff]
  %v3110 = vld [vmem:[#allocation3 + $0x50] sm:$0xff]
  %v3111 = vld [vmem:[#allocation3 + $0x58] sm:$0xff]
  %v3112 = vld [vmem:[#allocation3 + $0x60] sm:$0xff]
  %v3113 = vld [vmem:[#allocation3 + $0x68] sm:$0xff]
  %v3114 = vld [vmem:[#allocation3 + $0x70] sm:$0xff]
  %v3115 = vadd.f32 %v3009, %v3103
  %v3116 = vadd.f32 %v3011, %v3104
  %v3117 = vadd.f32 %v3052, %v3105
  %v3118 = vadd.f32 %v3054, %v3106
  %v3119 = vadd.f32 %v3095, %v3107
  %v3120 = vadd.f32 %v3097, %v3108
  %v3121 = vadd.f32 %v3013, %v3109
  %v3122 = vadd.f32 %v3015, %v3110
  %v3123 = vadd.f32 %v3056, %v3111
  %v3124 = vadd.f32 %v3058, %v3112
  %v3125 = vadd.f32 %v3099, %v3113
  %v3126 = vadd.f32 %v3101, %v3114
  %v3127 = vmax.f32 %v3115, 0.0
  %v3128 = vmax.f32 %v3116, 0.0
  %v3129 = vmax.f32 %v3117, 0.0
  %v3130 = vmax.f32 %v3118, 0.0
  %v3131 = vmax.f32 %v3119, 0.0
  %v3132 = vmax.f32 %v3120, 0.0
  %v3133 = vmax.f32 %v3121, 0.0
  %v3134 = vmax.f32 %v3122, 0.0
  %v3135 = vmax.f32 %v3123, 0.0
  %v3136 = vmax.f32 %v3124, 0.0
  %v3137 = vmax.f32 %v3125, 0.0
  %v3138 = vmax.f32 %v3126, 0.0
  %v3139 = vld [vmem:[%s3] sm:$0x3f]
  %v3141 = vlaneseq
  %v3142 = vshrl.u32 %v3141, 7
  %v3143 = vsub.s32 0, %v3142
  %v3144 = vrot.slane %v3139, %v3143
  %v3145 = vlaneseq
  %v3146 = vshrl.u32 %v3145, 7
  %v3147 = vsub.s32 1, %v3146
  %v3148 = vrot.slane %v3139, %v3147
  %v3149 = vlaneseq
  %v3150 = vshrl.u32 %v3149, 7
  %v3151 = vsub.s32 2, %v3150
  %v3152 = vrot.slane %v3139, %v3151
  %v3153 = vlaneseq
  %v3154 = vshrl.u32 %v3153, 7
  %v3155 = vsub.s32 3, %v3154
  %v3156 = vrot.slane %v3139, %v3155
  %v3157 = vlaneseq
  %v3158 = vshrl.u32 %v3157, 7
  %v3159 = vsub.s32 4, %v3158
  %v3160 = vrot.slane %v3139, %v3159
  %v3161 = vlaneseq
  %v3162 = vshrl.u32 %v3161, 7
  %v3163 = vsub.s32 5, %v3162
  %v3164 = vrot.slane %v3139, %v3163
  %v3171 = vmul.f32 %v3127, %v3144
  %v3172 = vmul.f32 %v3128, %v3148
  %v3173 = vmul.f32 %v3129, %v3152
  %v3174 = vmul.f32 %v3130, %v3156
  %v3175 = vmul.f32 %v3131, %v3160
  %v3176 = vmul.f32 %v3132, %v3164
  %v3177 = vmul.f32 %v3133, %v3144
  %v3178 = vmul.f32 %v3134, %v3148
  %v3179 = vmul.f32 %v3135, %v3152
  %v3180 = vmul.f32 %v3136, %v3156
  %v3181 = vmul.f32 %v3137, %v3160
  %v3182 = vmul.f32 %v3138, %v3164
  %3183 = vst [vmem:[#allocation3 + $0x8] sm:$0xff] %v3171
  %3184 = vst [vmem:[#allocation3 + $0x10] sm:$0xff] %v3172
  %3185 = vst [vmem:[#allocation3 + $0x18] sm:$0xff] %v3173
  %3186 = vst [vmem:[#allocation3 + $0x20] sm:$0xff] %v3174
  %3187 = vst [vmem:[#allocation3 + $0x28] sm:$0xff] %v3175
  %3188 = vst [vmem:[#allocation3 + $0x30] sm:$0xff] %v3176
  %3189 = vst [vmem:[#allocation3 + $0x48] sm:$0xff] %v3177
  %3190 = vst [vmem:[#allocation3 + $0x50] sm:$0xff] %v3178
  %3191 = vst [vmem:[#allocation3 + $0x58] sm:$0xff] %v3179
  %3192 = vst [vmem:[#allocation3 + $0x60] sm:$0xff] %v3180
  %3193 = vst [vmem:[#allocation3 + $0x68] sm:$0xff] %v3181
  %3194 = vst [vmem:[#allocation3 + $0x70] sm:$0xff] %v3182
  %v3195 = vld [vmem:[#allocation3 + $0x8] sm:$0xff]
  %v3196 = vld [vmem:[#allocation3 + $0x48] sm:$0xff]
  %3199 = vrot.lane.b32.xlu0 %v3195, 109
  %v3200 = vpop.permute.xlu0 %3199
  %3201 = vrot.lane.b32.xlu0 %v3196, 109
  %v3202 = vpop.permute.xlu0 %3201
  %3205 = vst.msk [vmem:[%s4] sm:$0xff] %vm654, %v3200
  %3206 = vst.msk [vmem:[%s4 + $0x10] sm:$0xff] %vm654, %v3202
  %v3207 = vld [vmem:[#allocation3 + $0x8] sm:$0xff]
  %v3208 = vld [vmem:[#allocation3 + $0x48] sm:$0xff]
  %3211 = vrot.lane.b32.xlu0 %v3207, 107
  %v3212 = vpop.permute.xlu0 %3211
  %3213 = vrot.lane.b32.xlu0 %v3208, 107
  %v3214 = vpop.permute.xlu0 %3213
  %vm3217 = vcmask 261248
  %3218 = vst.msk [vmem:[%s4] sm:$0xff] %vm3217, %v3212
  %3219 = vst.msk [vmem:[%s4 + $0x10] sm:$0xff] %vm3217, %v3214
  %v3220 = vld [vmem:[#allocation3 + $0x8] sm:$0xff]
  %v3221 = vld [vmem:[#allocation3 + $0x48] sm:$0xff]
  %3224 = vrot.lane.b32.xlu0 %v3220, 105
  %v3225 = vpop.permute.xlu0 %3224
  %3226 = vrot.lane.b32.xlu0 %v3221, 105
  %v3227 = vpop.permute.xlu0 %3226
  %vm3230 = vcmask 392448
  %3231 = vst.msk [vmem:[%s4] sm:$0xff] %vm3230, %v3225
  %3232 = vst.msk [vmem:[%s4 + $0x10] sm:$0xff] %vm3230, %v3227
  %v3233 = vld [vmem:[#allocation3 + $0x8] sm:$0xff]
  %v3234 = vld [vmem:[#allocation3 + $0x48] sm:$0xff]
  %3237 = vrot.lane.b32.xlu0 %v3233, 103
  %v3238 = vpop.permute.xlu0 %3237
  %3239 = vrot.lane.b32.xlu0 %v3234, 103
  %v3240 = vpop.permute.xlu0 %3239
  %vm3243 = vcmask 523648
  %3244 = vst.msk [vmem:[%s4] sm:$0xff] %vm3243, %v3238
  %3245 = vst.msk [vmem:[%s4 + $0x10] sm:$0xff] %vm3243, %v3240
  %v3246 = vld [vmem:[#allocation3 + $0x8] sm:$0xff]
  %v3247 = vld [vmem:[#allocation3 + $0x48] sm:$0xff]
  %3250 = vrot.lane.b32.xlu0 %v3246, 101
  %v3251 = vpop.permute.xlu0 %3250
  %3252 = vrot.lane.b32.xlu0 %v3247, 101
  %v3253 = vpop.permute.xlu0 %3252
  %vm3256 = vcmask 654848
  %3257 = vst.msk [vmem:[%s4] sm:$0xff] %vm3256, %v3251
  %3258 = vst.msk [vmem:[%s4 + $0x10] sm:$0xff] %vm3256, %v3253
  %v3259 = vld [vmem:[#allocation3 + $0x8] sm:$0xff]
  %v3260 = vld [vmem:[#allocation3 + $0x48] sm:$0xff]
  %3263 = vrot.lane.b32.xlu0 %v3259, 99
  %v3264 = vpop.permute.xlu0 %3263
  %3265 = vrot.lane.b32.xlu0 %v3260, 99
  %v3266 = vpop.permute.xlu0 %3265
  %vm3269 = vcmask 786048
  %3270 = vst.msk [vmem:[%s4] sm:$0xff] %vm3269, %v3264
  %3271 = vst.msk [vmem:[%s4 + $0x10] sm:$0xff] %vm3269, %v3266
  %v3272 = vld [vmem:[#allocation3 + $0x8] sm:$0xff]
  %v3273 = vld [vmem:[#allocation3 + $0x10] sm:$0xff]
  %v3274 = vld [vmem:[#allocation3 + $0x48] sm:$0xff]
  %v3275 = vld [vmem:[#allocation3 + $0x50] sm:$0xff]
  %3280 = vrot.lane.b32.xlu0 %v3272, 97
  %v3281 = vpop.permute.xlu0 %3280
  %3282 = vrot.lane.b32.xlu0 %v3273, 97
  %v3283 = vpop.permute.xlu0 %3282
  %3284 = vrot.lane.b32.xlu0 %v3274, 97
  %v3285 = vpop.permute.xlu0 %3284
  %3286 = vrot.lane.b32.xlu0 %v3275, 97
  %v3287 = vpop.permute.xlu0 %3286
  %vm3288 = vcmask 793600
  %v3289 = vsel %vm3288, %v3281, %v3283
  %v3290 = vsel %vm3288, %v3285, %v3287
  %vm3293 = vcmask 917248
  %3294 = vst.msk [vmem:[%s4] sm:$0xff] %vm3293, %v3289
  %3295 = vst.msk [vmem:[%s4 + $0x10] sm:$0xff] %vm3293, %v3290
  %v3296 = vld [vmem:[#allocation3 + $0x10] sm:$0xff]
  %v3297 = vld [vmem:[#allocation3 + $0x50] sm:$0xff]
  %3300 = vrot.lane.b32.xlu0 %v3296, 95
  %v3301 = vpop.permute.xlu0 %3300
  %3302 = vrot.lane.b32.xlu0 %v3297, 95
  %v3303 = vpop.permute.xlu0 %3302
  %vm3306 = vcmask 1048448
  %3307 = vst.msk [vmem:[%s4] sm:$0xff] %vm3306, %v3301
  %3308 = vst.msk [vmem:[%s4 + $0x10] sm:$0xff] %vm3306, %v3303
  %v3309 = vld [vmem:[#allocation3 + $0x10] sm:$0xff]
  %v3310 = vld [vmem:[#allocation3 + $0x50] sm:$0xff]
  %3313 = vrot.lane.b32.xlu0 %v3309, 93
  %v3314 = vpop.permute.xlu0 %3313
  %3315 = vrot.lane.b32.xlu0 %v3310, 93
  %v3316 = vpop.permute.xlu0 %3315
  %3319 = vst.msk [vmem:[%s4 + $0x8] sm:$0xff] %vm654, %v3314
  %3320 = vst.msk [vmem:[%s4 + $0x18] sm:$0xff] %vm654, %v3316
  %v3321 = vld [vmem:[#allocation3 + $0x10] sm:$0xff]
  %v3322 = vld [vmem:[#allocation3 + $0x50] sm:$0xff]
  %3325 = vrot.lane.b32.xlu0 %v3321, 91
  %v3326 = vpop.permute.xlu0 %3325
  %3327 = vrot.lane.b32.xlu0 %v3322, 91
  %v3328 = vpop.permute.xlu0 %3327
  %3331 = vst.msk [vmem:[%s4 + $0x8] sm:$0xff] %vm3217, %v3326
  %3332 = vst.msk [vmem:[%s4 + $0x18] sm:$0xff] %vm3217, %v3328
  %v3333 = vld [vmem:[#allocation3 + $0x10] sm:$0xff]
  %v3334 = vld [vmem:[#allocation3 + $0x50] sm:$0xff]
  %3337 = vrot.lane.b32.xlu0 %v3333, 89
  %v3338 = vpop.permute.xlu0 %3337
  %3339 = vrot.lane.b32.xlu0 %v3334, 89
  %v3340 = vpop.permute.xlu0 %3339
  %3343 = vst.msk [vmem:[%s4 + $0x8] sm:$0xff] %vm3230, %v3338
  %3344 = vst.msk [vmem:[%s4 + $0x18] sm:$0xff] %vm3230, %v3340
  %v3345 = vld [vmem:[#allocation3 + $0x10] sm:$0xff]
  %v3346 = vld [vmem:[#allocation3 + $0x50] sm:$0xff]
  %3349 = vrot.lane.b32.xlu0 %v3345, 87
  %v3350 = vpop.permute.xlu0 %3349
  %3351 = vrot.lane.b32.xlu0 %v3346, 87
  %v3352 = vpop.permute.xlu0 %3351
  %3355 = vst.msk [vmem:[%s4 + $0x8] sm:$0xff] %vm3243, %v3350
  %3356 = vst.msk [vmem:[%s4 + $0x18] sm:$0xff] %vm3243, %v3352
  %v3357 = vld [vmem:[#allocation3 + $0x10] sm:$0xff]
  %v3358 = vld [vmem:[#allocation3 + $0x50] sm:$0xff]
  %3361 = vrot.lane.b32.xlu0 %v3357, 85
  %v3362 = vpop.permute.xlu0 %3361
  %3363 = vrot.lane.b32.xlu0 %v3358, 85
  %v3364 = vpop.permute.xlu0 %3363
  %3367 = vst.msk [vmem:[%s4 + $0x8] sm:$0xff] %vm3256, %v3362
  %3368 = vst.msk [vmem:[%s4 + $0x18] sm:$0xff] %vm3256, %v3364
  %v3369 = vld [vmem:[#allocation3 + $0x10] sm:$0xff]
  %v3370 = vld [vmem:[#allocation3 + $0x18] sm:$0xff]
  %v3371 = vld [vmem:[#allocation3 + $0x50] sm:$0xff]
  %v3372 = vld [vmem:[#allocation3 + $0x58] sm:$0xff]
  %3377 = vrot.lane.b32.xlu0 %v3369, 83
  %v3378 = vpop.permute.xlu0 %3377
  %3379 = vrot.lane.b32.xlu0 %v3370, 83
  %v3380 = vpop.permute.xlu0 %3379
  %3381 = vrot.lane.b32.xlu0 %v3371, 83
  %v3382 = vpop.permute.xlu0 %3381
  %3383 = vrot.lane.b32.xlu0 %v3372, 83
  %v3384 = vpop.permute.xlu0 %3383
  %vm3385 = vcmask 678912
  %v3386 = vsel %vm3385, %v3378, %v3380
  %v3387 = vsel %vm3385, %v3382, %v3384
  %3390 = vst.msk [vmem:[%s4 + $0x8] sm:$0xff] %vm3269, %v3386
  %3391 = vst.msk [vmem:[%s4 + $0x18] sm:$0xff] %vm3269, %v3387
  %v3392 = vld [vmem:[#allocation3 + $0x18] sm:$0xff]
  %v3393 = vld [vmem:[#allocation3 + $0x58] sm:$0xff]
  %3396 = vrot.lane.b32.xlu0 %v3392, 81
  %v3397 = vpop.permute.xlu0 %3396
  %3398 = vrot.lane.b32.xlu0 %v3393, 81
  %v3399 = vpop.permute.xlu0 %3398
  %3402 = vst.msk [vmem:[%s4 + $0x8] sm:$0xff] %vm3293, %v3397
  %3403 = vst.msk [vmem:[%s4 + $0x18] sm:$0xff] %vm3293, %v3399
  %v3404 = vld [vmem:[#allocation3 + $0x18] sm:$0xff]
  %v3405 = vld [vmem:[#allocation3 + $0x58] sm:$0xff]
  %3408 = vrot.lane.b32.xlu0 %v3404, 79
  %v3409 = vpop.permute.xlu0 %3408
  %3410 = vrot.lane.b32.xlu0 %v3405, 79
  %v3411 = vpop.permute.xlu0 %3410
  %3414 = vst.msk [vmem:[%s4 + $0x8] sm:$0xff] %vm3306, %v3409
  %3415 = vst.msk [vmem:[%s4 + $0x18] sm:$0xff] %vm3306, %v3411
  %v3416 = vld [vmem:[#allocation3 + $0x18] sm:$0xff]
  %v3417 = vld [vmem:[#allocation3 + $0x58] sm:$0xff]
  %3420 = vrot.lane.b32.xlu0 %v3416, 41
  %v3421 = vpop.permute.xlu0 %3420
  %3422 = vrot.lane.b32.xlu0 %v3417, 41
  %v3423 = vpop.permute.xlu0 %3422
  %s3426 = scalar_lea.vmem %s4, 32
  %3427 = vst.msk [vmem:[%s3426] sm:$0xff] %vm654, %v3421
  %3428 = vst.msk [vmem:[%s3426 + $0x10] sm:$0xff] %vm654, %v3423
  %v3429 = vld [vmem:[#allocation3 + $0x18] sm:$0xff]
  %v3430 = vld [vmem:[#allocation3 + $0x58] sm:$0xff]
  %3433 = vrot.lane.b32.xlu0 %v3429, 39
  %v3434 = vpop.permute.xlu0 %3433
  %3435 = vrot.lane.b32.xlu0 %v3430, 39
  %v3436 = vpop.permute.xlu0 %3435
  %3439 = vst.msk [vmem:[%s3426] sm:$0xff] %vm3217, %v3434
  %3440 = vst.msk [vmem:[%s3426 + $0x10] sm:$0xff] %vm3217, %v3436
  %v3441 = vld [vmem:[#allocation3 + $0x18] sm:$0xff]
  %v3442 = vld [vmem:[#allocation3 + $0x20] sm:$0xff]
  %v3443 = vld [vmem:[#allocation3 + $0x58] sm:$0xff]
  %v3444 = vld [vmem:[#allocation3 + $0x60] sm:$0xff]
  %3449 = vrot.lane.b32.xlu0 %v3441, 37
  %v3450 = vpop.permute.xlu0 %3449
  %3451 = vrot.lane.b32.xlu0 %v3442, 37
  %v3452 = vpop.permute.xlu0 %3451
  %3453 = vrot.lane.b32.xlu0 %v3443, 37
  %v3454 = vpop.permute.xlu0 %3453
  %3455 = vrot.lane.b32.xlu0 %v3444, 37
  %v3456 = vpop.permute.xlu0 %3455
  %vm3457 = vcmask 302080
  %v3458 = vsel %vm3457, %v3450, %v3452
  %v3459 = vsel %vm3457, %v3454, %v3456
  %3462 = vst.msk [vmem:[%s3426] sm:$0xff] %vm3230, %v3458
  %3463 = vst.msk [vmem:[%s3426 + $0x10] sm:$0xff] %vm3230, %v3459
  %v3464 = vld [vmem:[#allocation3 + $0x20] sm:$0xff]
  %v3465 = vld [vmem:[#allocation3 + $0x60] sm:$0xff]
  %3468 = vrot.lane.b32.xlu0 %v3464, 35
  %v3469 = vpop.permute.xlu0 %3468
  %3470 = vrot.lane.b32.xlu0 %v3465, 35
  %v3471 = vpop.permute.xlu0 %3470
  %3474 = vst.msk [vmem:[%s3426] sm:$0xff] %vm3243, %v3469
  %3475 = vst.msk [vmem:[%s3426 + $0x10] sm:$0xff] %vm3243, %v3471
  %v3476 = vld [vmem:[#allocation3 + $0x20] sm:$0xff]
  %v3477 = vld [vmem:[#allocation3 + $0x60] sm:$0xff]
  %3480 = vrot.lane.b32.xlu0 %v3476, 33
  %v3481 = vpop.permute.xlu0 %3480
  %3482 = vrot.lane.b32.xlu0 %v3477, 33
  %v3483 = vpop.permute.xlu0 %3482
  %3486 = vst.msk [vmem:[%s3426] sm:$0xff] %vm3256, %v3481
  %3487 = vst.msk [vmem:[%s3426 + $0x10] sm:$0xff] %vm3256, %v3483
  %v3488 = vld [vmem:[#allocation3 + $0x20] sm:$0xff]
  %v3489 = vld [vmem:[#allocation3 + $0x60] sm:$0xff]
  %3492 = vrot.lane.b32.xlu0 %v3488, 31
  %v3493 = vpop.permute.xlu0 %3492
  %3494 = vrot.lane.b32.xlu0 %v3489, 31
  %v3495 = vpop.permute.xlu0 %3494
  %3498 = vst.msk [vmem:[%s3426] sm:$0xff] %vm3269, %v3493
  %3499 = vst.msk [vmem:[%s3426 + $0x10] sm:$0xff] %vm3269, %v3495
  %v3500 = vld [vmem:[#allocation3 + $0x20] sm:$0xff]
  %v3501 = vld [vmem:[#allocation3 + $0x60] sm:$0xff]
  %3504 = vrot.lane.b32.xlu0 %v3500, 29
  %v3505 = vpop.permute.xlu0 %3504
  %3506 = vrot.lane.b32.xlu0 %v3501, 29
  %v3507 = vpop.permute.xlu0 %3506
  %3510 = vst.msk [vmem:[%s3426] sm:$0xff] %vm3293, %v3505
  %3511 = vst.msk [vmem:[%s3426 + $0x10] sm:$0xff] %vm3293, %v3507
  %v3512 = vld [vmem:[#allocation3 + $0x20] sm:$0xff]
  %v3513 = vld [vmem:[#allocation3 + $0x60] sm:$0xff]
  %3516 = vrot.lane.b32.xlu0 %v3512, 27
  %v3517 = vpop.permute.xlu0 %3516
  %3518 = vrot.lane.b32.xlu0 %v3513, 27
  %v3519 = vpop.permute.xlu0 %3518
  %3522 = vst.msk [vmem:[%s3426] sm:$0xff] %vm3306, %v3517
  %3523 = vst.msk [vmem:[%s3426 + $0x10] sm:$0xff] %vm3306, %v3519
  %v3524 = vld [vmem:[#allocation3 + $0x20] sm:$0xff]
  %v3525 = vld [vmem:[#allocation3 + $0x60] sm:$0xff]
  %3528 = vrot.lane.b32.xlu0 %v3524, 25
  %v3529 = vpop.permute.xlu0 %3528
  %3530 = vrot.lane.b32.xlu0 %v3525, 25
  %v3531 = vpop.permute.xlu0 %3530
  %3534 = vst.msk [vmem:[%s3426 + $0x8] sm:$0xff] %vm654, %v3529
  %3535 = vst.msk [vmem:[%s3426 + $0x18] sm:$0xff] %vm654, %v3531
  %v3536 = vld [vmem:[#allocation3 + $0x20] sm:$0xff]
  %v3537 = vld [vmem:[#allocation3 + $0x28] sm:$0xff]
  %v3538 = vld [vmem:[#allocation3 + $0x60] sm:$0xff]
  %v3539 = vld [vmem:[#allocation3 + $0x68] sm:$0xff]
  %3544 = vrot.lane.b32.xlu0 %v3536, 23
  %v3545 = vpop.permute.xlu0 %3544
  %3546 = vrot.lane.b32.xlu0 %v3537, 23
  %v3547 = vpop.permute.xlu0 %3546
  %3548 = vrot.lane.b32.xlu0 %v3538, 23
  %v3549 = vpop.permute.xlu0 %3548
  %3550 = vrot.lane.b32.xlu0 %v3539, 23
  %v3551 = vpop.permute.xlu0 %3550
  %vm3552 = vcmask 187392
  %v3553 = vsel %vm3552, %v3545, %v3547
  %v3554 = vsel %vm3552, %v3549, %v3551
  %3557 = vst.msk [vmem:[%s3426 + $0x8] sm:$0xff] %vm3217, %v3553
  %3558 = vst.msk [vmem:[%s3426 + $0x18] sm:$0xff] %vm3217, %v3554
  %v3559 = vld [vmem:[#allocation3 + $0x28] sm:$0xff]
  %v3560 = vld [vmem:[#allocation3 + $0x68] sm:$0xff]
  %3563 = vrot.lane.b32.xlu0 %v3559, 21
  %v3564 = vpop.permute.xlu0 %3563
  %3565 = vrot.lane.b32.xlu0 %v3560, 21
  %v3566 = vpop.permute.xlu0 %3565
  %3569 = vst.msk [vmem:[%s3426 + $0x8] sm:$0xff] %vm3230, %v3564
  %3570 = vst.msk [vmem:[%s3426 + $0x18] sm:$0xff] %vm3230, %v3566
  %v3571 = vld [vmem:[#allocation3 + $0x28] sm:$0xff]
  %v3572 = vld [vmem:[#allocation3 + $0x68] sm:$0xff]
  %3575 = vrot.lane.b32.xlu0 %v3571, 19
  %v3576 = vpop.permute.xlu0 %3575
  %3577 = vrot.lane.b32.xlu0 %v3572, 19
  %v3578 = vpop.permute.xlu0 %3577
  %3581 = vst.msk [vmem:[%s3426 + $0x8] sm:$0xff] %vm3243, %v3576
  %3582 = vst.msk [vmem:[%s3426 + $0x18] sm:$0xff] %vm3243, %v3578
  %v3583 = vld [vmem:[#allocation3 + $0x28] sm:$0xff]
  %v3584 = vld [vmem:[#allocation3 + $0x68] sm:$0xff]
  %3587 = vrot.lane.b32.xlu0 %v3583, 17
  %v3588 = vpop.permute.xlu0 %3587
  %3589 = vrot.lane.b32.xlu0 %v3584, 17
  %v3590 = vpop.permute.xlu0 %3589
  %3593 = vst.msk [vmem:[%s3426 + $0x8] sm:$0xff] %vm3256, %v3588
  %3594 = vst.msk [vmem:[%s3426 + $0x18] sm:$0xff] %vm3256, %v3590
  %v3595 = vld [vmem:[#allocation3 + $0x28] sm:$0xff]
  %v3596 = vld [vmem:[#allocation3 + $0x68] sm:$0xff]
  %3599 = vrot.lane.b32.xlu0 %v3595, 15
  %v3600 = vpop.permute.xlu0 %3599
  %3601 = vrot.lane.b32.xlu0 %v3596, 15
  %v3602 = vpop.permute.xlu0 %3601
  %3605 = vst.msk [vmem:[%s3426 + $0x8] sm:$0xff] %vm3269, %v3600
  %3606 = vst.msk [vmem:[%s3426 + $0x18] sm:$0xff] %vm3269, %v3602
  %v3607 = vld [vmem:[#allocation3 + $0x28] sm:$0xff]
  %v3608 = vld [vmem:[#allocation3 + $0x68] sm:$0xff]
  %3611 = vrot.lane.b32.xlu0 %v3607, 13
  %v3612 = vpop.permute.xlu0 %3611
  %3613 = vrot.lane.b32.xlu0 %v3608, 13
  %v3614 = vpop.permute.xlu0 %3613
  %3617 = vst.msk [vmem:[%s3426 + $0x8] sm:$0xff] %vm3293, %v3612
  %3618 = vst.msk [vmem:[%s3426 + $0x18] sm:$0xff] %vm3293, %v3614
  %v3619 = vld [vmem:[#allocation3 + $0x28] sm:$0xff]
  %v3620 = vld [vmem:[#allocation3 + $0x68] sm:$0xff]
  %3623 = vrot.lane.b32.xlu0 %v3619, 11
  %v3624 = vpop.permute.xlu0 %3623
  %3625 = vrot.lane.b32.xlu0 %v3620, 11
  %v3626 = vpop.permute.xlu0 %3625
  %3629 = vst.msk [vmem:[%s3426 + $0x8] sm:$0xff] %vm3306, %v3624
  %3630 = vst.msk [vmem:[%s3426 + $0x18] sm:$0xff] %vm3306, %v3626
  // Predicated region
  $region18: #{representation_network.1} parent=0 // pred_check
    _
  $region19: #{representation_network.1} parent=0 // pred_check_branch
    %3632 = sbr.rel (0) target = $region21
  $region20: #{representation_network.1} parent=0 // pred_region
    _
  $region21: #{representation_network.1} parent=0 // pred_fallthru
    _
  // Predicated region
  $region22: #{representation_network.1} parent=0 // pred_check
    _
  $region23: #{representation_network.1} parent=0 // pred_check_branch
    %3634 = sbr.rel (0) target = $region25
  $region24: #{representation_network.1} parent=0 // pred_region
    _
  $region25: #{representation_network.1} parent=0 // pred_fallthru
    _

</llo_original>
